<compile_context>
chip_gen: v6e
topology: v6e:2x2x1
jax: 0.10.0
libtpu: 0.0.40
codegen_flags: <defaults>
</compile_context>

<pallas_src>
import functools

import jax
import jax.numpy as jnp
from jax.experimental import pallas as pl
from jax.experimental.pallas import tpu as pltpu


def _round_up(n, m):
    return ((n + m - 1) // m) * m


def _choose_tile_h(H):
    """Row-tile height: multiple of 4 (halo BlockSpec), bounded for VMEM."""
    t = 8 if H <= 64 else 32
    return min(t, _round_up(H, 4))


def _resblock_kernel(xm_ref, xh_ref, w1_ref, b1_ref, w2_ref, b2_ref, o_ref,
                     xslab, hbuf, *, H, W, C, tile_h, Wc1, Wc2):
    """One (batch, row-tile) step of the fused ResBlock.

    xm_ref : (1, tile_h, Wc1+2, C)   main rows of the padded input tile
    xh_ref : (1, 4,      Wc1+2, C)   4 halo rows directly below the main rows
    w*_ref : (3, 3, C, C)            HWIO weights (res_scale folded into w2)
    b*_ref : (1, C)                  biases (res_scale folded into b2)
    o_ref  : (1, tile_h, Wc2, C)
    xslab  : (tile_h+4, Wc1+2, C)    VMEM: contiguous padded-input slab
    hbuf   : (tile_h+2, Wc1,   C)    VMEM: conv1 activation incl. conv2's zero halo
    Wc1 / Wc2 are 8-aligned compute widths so every flatten keeps the
    second-minor dim a multiple of the sublane tile.
    """
    t = pl.program_id(1)
    Hs = tile_h + 2                       # conv1 rows needed by conv2

    # Stitch main + halo rows into one contiguous slab (leading-dim stores,
    # stays entirely in VMEM).
    xslab[0:tile_h] = xm_ref[0]
    xslab[tile_h:tile_h + 4] = xh_ref[0]

    # ---- conv1 + bias + ReLU -> hbuf --------------------------------------
    # 3x3 'same' conv as 9 shifted (Hs*Wc1, C) x (C, C) MXU matmuls.
    # TODO(synk): for EDSR-sized C (>=64) pack the 3 dx-taps into one K=3C
    #             matmul and run the matmuls in bf16 to better feed the MXU.
    acc1 = jnp.broadcast_to(b1_ref[...].astype(jnp.float32), (Hs * Wc1, C))
    for dy in range(3):
        for dx in range(3):
            patch = xslab[dy:dy + Hs, dx:dx + Wc1, :].reshape(Hs * Wc1, C)
            acc1 = acc1 + jnp.dot(patch, w1_ref[dy, dx],
                                  preferred_element_type=jnp.float32)
    h = jnp.maximum(acc1, 0.0).reshape(Hs, Wc1, C)

    # conv2 sees a zero-padded conv1 activation: zero rows outside the real
    # image and the zero-halo / width-padding columns (hbuf col c' == h col c'-1).
    row = jax.lax.broadcasted_iota(jnp.int32, (Hs, Wc1, C), 0) + (t * tile_h - 1)
    col = jax.lax.broadcasted_iota(jnp.int32, (Hs, Wc1, C), 1)
    valid = (row >= 0) & (row < H) & (col >= 1) & (col <= W)
    hbuf[...] = jnp.where(valid, h, 0.0).astype(hbuf.dtype)

    # ---- conv2 (res_scale folded) + residual add ---------------------------
    acc2 = jnp.broadcast_to(b2_ref[...].astype(jnp.float32), (tile_h * Wc2, C))
    for dy in range(3):
        for dx in range(3):
            patch = hbuf[dy:dy + tile_h, dx:dx + Wc2, :].reshape(tile_h * Wc2, C)
            acc2 = acc2 + jnp.dot(patch, w2_ref[dy, dx],
                                  preferred_element_type=jnp.float32)

    # Residual input comes straight from the slab already in VMEM (no second
    # HBM read of x).
    x_tile = xslab[2:2 + tile_h, 2:2 + Wc2, :].reshape(tile_h * Wc2, C)
    y = x_tile.astype(jnp.float32) + acc2
    o_ref[0] = y.reshape(tile_h, Wc2, C).astype(o_ref.dtype)


@functools.partial(jax.jit, static_argnames=("res_scale",))
def res_block_forward(x_nchw, w1, b1, w2, b2, *, res_scale=1.0):
    """x_nchw: (B, C, H, W); w*: (C, C, 3, 3) PyTorch OIHW; b*: (C,)."""
    B, C, H, W = x_nchw.shape
    dtype = x_nchw.dtype

    # NCHW -> NHWC (channels last => channels on the lane axis).
    x_nhwc = jnp.transpose(x_nchw, (0, 2, 3, 1))

    # OIHW -> HWIO; fold res_scale into the second conv's weights and bias.
    w1_hwio = jnp.transpose(w1, (2, 3, 1, 0)).astype(dtype)
    w2_hwio = (jnp.transpose(w2, (2, 3, 1, 0)) * res_scale).astype(dtype)
    b1_2d = b1.reshape(1, C).astype(jnp.float32)
    b2_2d = (b2 * res_scale).reshape(1, C).astype(jnp.float32)

    # Row tiling (halo of 4 rows) and 8-aligned compute widths.
    tile_h = _choose_tile_h(H)
    T = pl.cdiv(H, tile_h)
    H_pad = T * tile_h
    halo_blocks = tile_h // 4
    Wc2 = _round_up(W, 8)           # conv2 / output compute width
    Wc1 = _round_up(Wc2 + 2, 8)     # conv1 compute width (>= Wc2 + 2)
    Wslab = Wc1 + 2                 # padded-input slab width

    # Single spatial pad of the input (fuses with the NHWC transpose under
    # jit): 2 rows/cols of conv zero-padding plus halo / alignment rounding.
    # The intermediate activation is NOT padded via XLA anymore.
    xp = jnp.pad(x_nhwc, ((0, 0), (2, H_pad - H + 2), (2, Wslab - 2 - W), (0, 0)))

    kernel = functools.partial(_resblock_kernel, H=H, W=W, C=C,
                               tile_h=tile_h, Wc1=Wc1, Wc2=Wc2)

    out = pl.pallas_call(
        kernel,
        out_shape=jax.ShapeDtypeStruct((B, H_pad, Wc2, C), dtype),
        grid_spec=pltpu.PrefetchScalarGridSpec(
            num_scalar_prefetch=0,
            grid=(B, T),
            in_specs=[
                # Main rows of the padded input for this tile.
                pl.BlockSpec((1, tile_h, Wslab, C), lambda b, t: (b, t, 0, 0)),
                # 4 halo rows directly below (tile_h is a multiple of 4).
                pl.BlockSpec((1, 4, Wslab, C),
                             lambda b, t: (b, (t + 1) * halo_blocks, 0, 0)),
                pl.BlockSpec((3, 3, C, C), lambda b, t: (0, 0, 0, 0)),
                pl.BlockSpec((1, C), lambda b, t: (0, 0)),
                pl.BlockSpec((3, 3, C, C), lambda b, t: (0, 0, 0, 0)),
                pl.BlockSpec((1, C), lambda b, t: (0, 0)),
            ],
            out_specs=pl.BlockSpec((1, tile_h, Wc2, C),
                                   lambda b, t: (b, t, 0, 0)),
            scratch_shapes=[
                pltpu.VMEM((tile_h + 4, Wslab, C), dtype),   # padded-x slab
                pltpu.VMEM((tile_h + 2, Wc1, C), dtype),     # conv1 activation
            ],
        ),
        compiler_params=pltpu.CompilerParams(
            dimension_semantics=("parallel", "parallel"),
            vmem_limit_bytes=48 * 1024 * 1024,
        ),
    )(xp, xp, w1_hwio, b1_2d, w2_hwio, b2_2d)

    y_nhwc = out[:, :H, :W, :]
    return jnp.transpose(y_nhwc, (0, 3, 1, 2))


def _reference(x_nchw, w1, b1, w2, b2, res_scale=1.0):
    dn = jax.lax.conv_dimension_numbers(x_nchw.shape, w1.shape,
                                        ("NCHW", "OIHW", "NCHW"))
    c1 = jax.lax.conv_general_dilated(x_nchw, w1, (1, 1), ((1, 1), (1, 1)),
                                      dimension_numbers=dn)
    c1 = jnp.maximum(c1 + b1[None, :, None, None], 0.0)
    c2 = jax.lax.conv_general_dilated(c1, w2, (1, 1), ((1, 1), (1, 1)),
                                      dimension_numbers=dn)
    c2 = c2 + b2[None, :, None, None]
    return x_nchw + res_scale * c2


if __name__ == "__main__":
    key = jax.random.PRNGKey(0)
    k_x, k_w1, k_b1, k_w2, k_b2 = jax.random.split(key, 5)

    B, C, H, W = 2, 4, 16, 16   # small synthetic config (num_feats=4)
    kernel = 3

    x = jax.random.normal(k_x, (B, C, H, W), jnp.float32)
    w1 = jax.random.normal(k_w1, (C, C, kernel, kernel), jnp.float32) * 0.1
    b1 = jax.random.normal(k_b1, (C,), jnp.float32) * 0.1
    w2 = jax.random.normal(k_w2, (C, C, kernel, kernel), jnp.float32) * 0.1
    b2 = jax.random.normal(k_b2, (C,), jnp.float32) * 0.1

    for res_scale in (1.0, 0.5):   # 0.5 also exercises the res_scale folding
        out = res_block_forward(x, w1, b1, w2, b2, res_scale=res_scale)
        out = jax.block_until_ready(out)
        ref = _reference(x, w1, b1, w2, b2, res_scale)
        assert out.shape == (B, C, H, W)
        assert jnp.allclose(out, ref, atol=1e-4, rtol=1e-4), (
            f"mismatch vs reference (res_scale={res_scale})")
    print("KERNEL_OK")
</pallas_src>

<mosaic_0001>
module attributes {stable_mosaic.version = 11 : i64} {
  func.func @_resblock_kernel(%arg0: i32, %arg1: i32, %arg2: memref<1x8x26x4xf32, #tpu.memory_space<vmem>>, %arg3: memref<1x4x26x4xf32, #tpu.memory_space<vmem>>, %arg4: memref<3x3x4x4xf32, #tpu.memory_space<vmem>>, %arg5: memref<1x4xf32, #tpu.memory_space<vmem>>, %arg6: memref<3x3x4x4xf32, #tpu.memory_space<vmem>>, %arg7: memref<1x4xf32, #tpu.memory_space<vmem>>, %arg8: memref<1x8x16x4xf32, #tpu.memory_space<vmem>>, %arg9: memref<12x26x4xf32, #tpu.memory_space<vmem>>, %arg10: memref<10x24x4xf32, #tpu.memory_space<vmem>>) attributes {dimension_semantics = [#tpu.dimension_semantics<parallel>, #tpu.dimension_semantics<parallel>], iteration_bounds = array<i64: 2, 2>, scalar_prefetch = 0 : i64, scratch_operands = 2 : i64, tpu.core_type = #tpu.core_type<tc>, window_params = [{transform_indices = @transform_0, window_bounds = array<i64: 1, 8, 26, 4>}, {transform_indices = @transform_1, window_bounds = array<i64: 1, 4, 26, 4>}, {pipeline_mode = #tpu.pipeline_mode<synchronous>, transform_indices = @transform_2, window_bounds = array<i64: 3, 3, 4, 4>}, {pipeline_mode = #tpu.pipeline_mode<synchronous>, transform_indices = @transform_3, window_bounds = array<i64: 1, 4>}, {pipeline_mode = #tpu.pipeline_mode<synchronous>, transform_indices = @transform_4, window_bounds = array<i64: 3, 3, 4, 4>}, {pipeline_mode = #tpu.pipeline_mode<synchronous>, transform_indices = @transform_5, window_bounds = array<i64: 1, 4>}, {transform_indices = @transform_6, window_bounds = array<i64: 1, 8, 16, 4>}]} {
    %c0 = arith.constant 0 : index
    %c0_0 = arith.constant 0 : index
    %c0_1 = arith.constant 0 : index
    %c0_2 = arith.constant 0 : index
    %0 = vector.load %arg2[%c0, %c0_0, %c0_1, %c0_2] : memref<1x8x26x4xf32, #tpu.memory_space<vmem>>, vector<1x8x26x4xf32>
    %1 = vector.shape_cast %0 : vector<1x8x26x4xf32> to vector<8x26x4xf32>
    %c0_3 = arith.constant 0 : index
    %c0_4 = arith.constant 0 : index
    %c0_5 = arith.constant 0 : index
    %2 = vector.load %arg9[%c0_3, %c0_4, %c0_5] : memref<12x26x4xf32, #tpu.memory_space<vmem>>, vector<8x26x4xf32>
    tpu.vector_store %arg9[%c0_3, %c0_4, %c0_5], %1 {strides = array<i32>} : memref<12x26x4xf32, #tpu.memory_space<vmem>>, vector<8x26x4xf32>,
    %c0_6 = arith.constant 0 : index
    %c0_7 = arith.constant 0 : index
    %c0_8 = arith.constant 0 : index
    %c0_9 = arith.constant 0 : index
    %3 = vector.load %arg3[%c0_6, %c0_7, %c0_8, %c0_9] : memref<1x4x26x4xf32, #tpu.memory_space<vmem>>, vector<1x4x26x4xf32>
    %4 = vector.shape_cast %3 : vector<1x4x26x4xf32> to vector<4x26x4xf32>
    %c8 = arith.constant 8 : index
    %c0_10 = arith.constant 0 : index
    %c0_11 = arith.constant 0 : index
    %5 = vector.load %arg9[%c8, %c0_10, %c0_11] : memref<12x26x4xf32, #tpu.memory_space<vmem>>, vector<4x26x4xf32>
    tpu.vector_store %arg9[%c8, %c0_10, %c0_11], %4 {strides = array<i32>} : memref<12x26x4xf32, #tpu.memory_space<vmem>>, vector<4x26x4xf32>,
    %c0_12 = arith.constant 0 : index
    %c0_13 = arith.constant 0 : index
    %6 = vector.load %arg5[%c0_12, %c0_13] : memref<1x4xf32, #tpu.memory_space<vmem>>, vector<1x4xf32>
    %7 = vector.shape_cast %6 : vector<1x4xf32> to vector<1x4xf32>
    %8 = vector.broadcast %7 : vector<1x4xf32> to vector<240x4xf32>
    %c0_14 = arith.constant 0 : index
    %c0_15 = arith.constant 0 : index
    %c0_16 = arith.constant 0 : index
    %9 = vector.load %arg9[%c0_14, %c0_15, %c0_16] : memref<12x26x4xf32, #tpu.memory_space<vmem>>, vector<10x24x4xf32>
    %10 = vector.shape_cast %9 : vector<10x24x4xf32> to vector<240x4xf32>
    %c0_17 = arith.constant 0 : index
    %c0_18 = arith.constant 0 : index
    %c0_19 = arith.constant 0 : index
    %c0_20 = arith.constant 0 : index
    %11 = vector.load %arg4[%c0_17, %c0_18, %c0_19, %c0_20] : memref<3x3x4x4xf32, #tpu.memory_space<vmem>>, vector<1x1x4x4xf32>
    %12 = vector.shape_cast %11 : vector<1x1x4x4xf32> to vector<4x4xf32>
    %cst = arith.constant dense<0.000000e+00> : vector<240x4xf32>
    %13 = tpu.matmul %10, %12, %cst {dimension_numbers = #tpu.dot_dimension_numbers<[1], [0], [0], [1], [0, 0, 1, 1], [], []>} : vector<240x4xf32>, vector<4x4xf32>, vector<240x4xf32> -> vector<240x4xf32>
    %14 = arith.addf %8, %13 : vector<240x4xf32>
    %c0_21 = arith.constant 0 : index
    %c1 = arith.constant 1 : index
    %c0_22 = arith.constant 0 : index
    %15 = vector.load %arg9[%c0_21, %c1, %c0_22] : memref<12x26x4xf32, #tpu.memory_space<vmem>>, vector<10x24x4xf32>
    %16 = vector.shape_cast %15 : vector<10x24x4xf32> to vector<240x4xf32>
    %c0_23 = arith.constant 0 : index
    %c1_24 = arith.constant 1 : index
    %c0_25 = arith.constant 0 : index
    %c0_26 = arith.constant 0 : index
    %17 = vector.load %arg4[%c0_23, %c1_24, %c0_25, %c0_26] : memref<3x3x4x4xf32, #tpu.memory_space<vmem>>, vector<1x1x4x4xf32>
    %18 = vector.shape_cast %17 : vector<1x1x4x4xf32> to vector<4x4xf32>
    %cst_27 = arith.constant dense<0.000000e+00> : vector<240x4xf32>
    %19 = tpu.matmul %16, %18, %cst_27 {dimension_numbers = #tpu.dot_dimension_numbers<[1], [0], [0], [1], [0, 0, 1, 1], [], []>} : vector<240x4xf32>, vector<4x4xf32>, vector<240x4xf32> -> vector<240x4xf32>
    %20 = arith.addf %14, %19 : vector<240x4xf32>
    %c0_28 = arith.constant 0 : index
    %c2 = arith.constant 2 : index
    %c0_29 = arith.constant 0 : index
    %21 = vector.load %arg9[%c0_28, %c2, %c0_29] : memref<12x26x4xf32, #tpu.memory_space<vmem>>, vector<10x24x4xf32>
    %22 = vector.shape_cast %21 : vector<10x24x4xf32> to vector<240x4xf32>
    %c0_30 = arith.constant 0 : index
    %c2_31 = arith.constant 2 : index
    %c0_32 = arith.constant 0 : index
    %c0_33 = arith.constant 0 : index
    %23 = vector.load %arg4[%c0_30, %c2_31, %c0_32, %c0_33] : memref<3x3x4x4xf32, #tpu.memory_space<vmem>>, vector<1x1x4x4xf32>
    %24 = vector.shape_cast %23 : vector<1x1x4x4xf32> to vector<4x4xf32>
    %cst_34 = arith.constant dense<0.000000e+00> : vector<240x4xf32>
    %25 = tpu.matmul %22, %24, %cst_34 {dimension_numbers = #tpu.dot_dimension_numbers<[1], [0], [0], [1], [0, 0, 1, 1], [], []>} : vector<240x4xf32>, vector<4x4xf32>, vector<240x4xf32> -> vector<240x4xf32>
    %26 = arith.addf %20, %25 : vector<240x4xf32>
    %c1_35 = arith.constant 1 : index
    %c0_36 = arith.constant 0 : index
    %c0_37 = arith.constant 0 : index
    %27 = vector.load %arg9[%c1_35, %c0_36, %c0_37] : memref<12x26x4xf32, #tpu.memory_space<vmem>>, vector<10x24x4xf32>
    %28 = vector.shape_cast %27 : vector<10x24x4xf32> to vector<240x4xf32>
    %c1_38 = arith.constant 1 : index
    %c0_39 = arith.constant 0 : index
    %c0_40 = arith.constant 0 : index
    %c0_41 = arith.constant 0 : index
    %29 = vector.load %arg4[%c1_38, %c0_39, %c0_40, %c0_41] : memref<3x3x4x4xf32, #tpu.memory_space<vmem>>, vector<1x1x4x4xf32>
    %30 = vector.shape_cast %29 : vector<1x1x4x4xf32> to vector<4x4xf32>
    %cst_42 = arith.constant dense<0.000000e+00> : vector<240x4xf32>
    %31 = tpu.matmul %28, %30, %cst_42 {dimension_numbers = #tpu.dot_dimension_numbers<[1], [0], [0], [1], [0, 0, 1, 1], [], []>} : vector<240x4xf32>, vector<4x4xf32>, vector<240x4xf32> -> vector<240x4xf32>
    %32 = arith.addf %26, %31 : vector<240x4xf32>
    %c1_43 = arith.constant 1 : index
    %c1_44 = arith.constant 1 : index
    %c0_45 = arith.constant 0 : index
    %33 = vector.load %arg9[%c1_43, %c1_44, %c0_45] : memref<12x26x4xf32, #tpu.memory_space<vmem>>, vector<10x24x4xf32>
    %34 = vector.shape_cast %33 : vector<10x24x4xf32> to vector<240x4xf32>
    %c1_46 = arith.constant 1 : index
    %c1_47 = arith.constant 1 : index
    %c0_48 = arith.constant 0 : index
    %c0_49 = arith.constant 0 : index
    %35 = vector.load %arg4[%c1_46, %c1_47, %c0_48, %c0_49] : memref<3x3x4x4xf32, #tpu.memory_space<vmem>>, vector<1x1x4x4xf32>
    %36 = vector.shape_cast %35 : vector<1x1x4x4xf32> to vector<4x4xf32>
    %cst_50 = arith.constant dense<0.000000e+00> : vector<240x4xf32>
    %37 = tpu.matmul %34, %36, %cst_50 {dimension_numbers = #tpu.dot_dimension_numbers<[1], [0], [0], [1], [0, 0, 1, 1], [], []>} : vector<240x4xf32>, vector<4x4xf32>, vector<240x4xf32> -> vector<240x4xf32>
    %38 = arith.addf %32, %37 : vector<240x4xf32>
    %c1_51 = arith.constant 1 : index
    %c2_52 = arith.constant 2 : index
    %c0_53 = arith.constant 0 : index
    %39 = vector.load %arg9[%c1_51, %c2_52, %c0_53] : memref<12x26x4xf32, #tpu.memory_space<vmem>>, vector<10x24x4xf32>
    %40 = vector.shape_cast %39 : vector<10x24x4xf32> to vector<240x4xf32>
    %c1_54 = arith.constant 1 : index
    %c2_55 = arith.constant 2 : index
    %c0_56 = arith.constant 0 : index
    %c0_57 = arith.constant 0 : index
    %41 = vector.load %arg4[%c1_54, %c2_55, %c0_56, %c0_57] : memref<3x3x4x4xf32, #tpu.memory_space<vmem>>, vector<1x1x4x4xf32>
    %42 = vector.shape_cast %41 : vector<1x1x4x4xf32> to vector<4x4xf32>
    %cst_58 = arith.constant dense<0.000000e+00> : vector<240x4xf32>
    %43 = tpu.matmul %40, %42, %cst_58 {dimension_numbers = #tpu.dot_dimension_numbers<[1], [0], [0], [1], [0, 0, 1, 1], [], []>} : vector<240x4xf32>, vector<4x4xf32>, vector<240x4xf32> -> vector<240x4xf32>
    %44 = arith.addf %38, %43 : vector<240x4xf32>
    %c2_59 = arith.constant 2 : index
    %c0_60 = arith.constant 0 : index
    %c0_61 = arith.constant 0 : index
    %45 = vector.load %arg9[%c2_59, %c0_60, %c0_61] : memref<12x26x4xf32, #tpu.memory_space<vmem>>, vector<10x24x4xf32>
    %46 = vector.shape_cast %45 : vector<10x24x4xf32> to vector<240x4xf32>
    %c2_62 = arith.constant 2 : index
    %c0_63 = arith.constant 0 : index
    %c0_64 = arith.constant 0 : index
    %c0_65 = arith.constant 0 : index
    %47 = vector.load %arg4[%c2_62, %c0_63, %c0_64, %c0_65] : memref<3x3x4x4xf32, #tpu.memory_space<vmem>>, vector<1x1x4x4xf32>
    %48 = vector.shape_cast %47 : vector<1x1x4x4xf32> to vector<4x4xf32>
    %cst_66 = arith.constant dense<0.000000e+00> : vector<240x4xf32>
    %49 = tpu.matmul %46, %48, %cst_66 {dimension_numbers = #tpu.dot_dimension_numbers<[1], [0], [0], [1], [0, 0, 1, 1], [], []>} : vector<240x4xf32>, vector<4x4xf32>, vector<240x4xf32> -> vector<240x4xf32>
    %50 = arith.addf %44, %49 : vector<240x4xf32>
    %c2_67 = arith.constant 2 : index
    %c1_68 = arith.constant 1 : index
    %c0_69 = arith.constant 0 : index
    %51 = vector.load %arg9[%c2_67, %c1_68, %c0_69] : memref<12x26x4xf32, #tpu.memory_space<vmem>>, vector<10x24x4xf32>
    %52 = vector.shape_cast %51 : vector<10x24x4xf32> to vector<240x4xf32>
    %c2_70 = arith.constant 2 : index
    %c1_71 = arith.constant 1 : index
    %c0_72 = arith.constant 0 : index
    %c0_73 = arith.constant 0 : index
    %53 = vector.load %arg4[%c2_70, %c1_71, %c0_72, %c0_73] : memref<3x3x4x4xf32, #tpu.memory_space<vmem>>, vector<1x1x4x4xf32>
    %54 = vector.shape_cast %53 : vector<1x1x4x4xf32> to vector<4x4xf32>
    %cst_74 = arith.constant dense<0.000000e+00> : vector<240x4xf32>
    %55 = tpu.matmul %52, %54, %cst_74 {dimension_numbers = #tpu.dot_dimension_numbers<[1], [0], [0], [1], [0, 0, 1, 1], [], []>} : vector<240x4xf32>, vector<4x4xf32>, vector<240x4xf32> -> vector<240x4xf32>
    %56 = arith.addf %50, %55 : vector<240x4xf32>
    %c2_75 = arith.constant 2 : index
    %c2_76 = arith.constant 2 : index
    %c0_77 = arith.constant 0 : index
    %57 = vector.load %arg9[%c2_75, %c2_76, %c0_77] : memref<12x26x4xf32, #tpu.memory_space<vmem>>, vector<10x24x4xf32>
    %58 = vector.shape_cast %57 : vector<10x24x4xf32> to vector<240x4xf32>
    %c2_78 = arith.constant 2 : index
    %c2_79 = arith.constant 2 : index
    %c0_80 = arith.constant 0 : index
    %c0_81 = arith.constant 0 : index
    %59 = vector.load %arg4[%c2_78, %c2_79, %c0_80, %c0_81] : memref<3x3x4x4xf32, #tpu.memory_space<vmem>>, vector<1x1x4x4xf32>
    %60 = vector.shape_cast %59 : vector<1x1x4x4xf32> to vector<4x4xf32>
    %cst_82 = arith.constant dense<0.000000e+00> : vector<240x4xf32>
    %61 = tpu.matmul %58, %60, %cst_82 {dimension_numbers = #tpu.dot_dimension_numbers<[1], [0], [0], [1], [0, 0, 1, 1], [], []>} : vector<240x4xf32>, vector<4x4xf32>, vector<240x4xf32> -> vector<240x4xf32>
    %62 = arith.addf %56, %61 : vector<240x4xf32>
    %cst_83 = arith.constant 0.000000e+00 : f32
    %63 = vector.broadcast %cst_83 : f32 to vector<240x4xf32>
    %64 = arith.maximumf %62, %63 : vector<240x4xf32>
    %65 = vector.shape_cast %64 : vector<240x4xf32> to vector<10x24x4xf32>
    %66 = tpu.iota {dimensions = array<i32: 0>} : vector<10x24x4xi32>
    %c8_i32 = arith.constant 8 : i32
    %67 = arith.muli %arg1, %c8_i32 : i32
    %c1_i32 = arith.constant 1 : i32
    %68 = arith.subi %67, %c1_i32 : i32
    %69 = vector.broadcast %68 : i32 to vector<10x24x4xi32>
    %70 = arith.addi %66, %69 : vector<10x24x4xi32>
    %71 = tpu.iota {dimensions = array<i32: 1>} : vector<10x24x4xi32>
    %c0_i32 = arith.constant 0 : i32
    %72 = vector.broadcast %c0_i32 : i32 to vector<10x24x4xi32>
    %73 = arith.cmpi sge, %70, %72 : vector<10x24x4xi32>
    %c16_i32 = arith.constant 16 : i32
    %74 = vector.broadcast %c16_i32 : i32 to vector<10x24x4xi32>
    %75 = arith.cmpi slt, %70, %74 : vector<10x24x4xi32>
    %76 = arith.andi %73, %75 : vector<10x24x4xi1>
    %c1_i32_84 = arith.constant 1 : i32
    %77 = vector.broadcast %c1_i32_84 : i32 to vector<10x24x4xi32>
    %78 = arith.cmpi sge, %71, %77 : vector<10x24x4xi32>
    %79 = arith.andi %76, %78 : vector<10x24x4xi1>
    %c16_i32_85 = arith.constant 16 : i32
    %80 = vector.broadcast %c16_i32_85 : i32 to vector<10x24x4xi32>
    %81 = arith.cmpi sle, %71, %80 : vector<10x24x4xi32>
    %82 = arith.andi %79, %81 : vector<10x24x4xi1>
    %cst_86 = arith.constant 0.000000e+00 : f32
    %83 = vector.broadcast %cst_86 : f32 to vector<10x24x4xf32>
    %84 = arith.select %82, %65, %83 : vector<10x24x4xi1>, vector<10x24x4xf32>
    %c0_87 = arith.constant 0 : index
    %c0_88 = arith.constant 0 : index
    %c0_89 = arith.constant 0 : index
    %85 = vector.load %arg10[%c0_87, %c0_88, %c0_89] : memref<10x24x4xf32, #tpu.memory_space<vmem>>, vector<10x24x4xf32>
    tpu.vector_store %arg10[%c0_87, %c0_88, %c0_89], %84 {strides = array<i32>} : memref<10x24x4xf32, #tpu.memory_space<vmem>>, vector<10x24x4xf32>,
    %c0_90 = arith.constant 0 : index
    %c0_91 = arith.constant 0 : index
    %86 = vector.load %arg7[%c0_90, %c0_91] : memref<1x4xf32, #tpu.memory_space<vmem>>, vector<1x4xf32>
    %87 = vector.shape_cast %86 : vector<1x4xf32> to vector<1x4xf32>
    %88 = vector.broadcast %87 : vector<1x4xf32> to vector<128x4xf32>
    %c0_92 = arith.constant 0 : index
    %c0_93 = arith.constant 0 : index
    %c0_94 = arith.constant 0 : index
    %89 = vector.load %arg10[%c0_92, %c0_93, %c0_94] : memref<10x24x4xf32, #tpu.memory_space<vmem>>, vector<8x16x4xf32>
    %90 = vector.shape_cast %89 : vector<8x16x4xf32> to vector<128x4xf32>
    %c0_95 = arith.constant 0 : index
    %c0_96 = arith.constant 0 : index
    %c0_97 = arith.constant 0 : index
    %c0_98 = arith.constant 0 : index
    %91 = vector.load %arg6[%c0_95, %c0_96, %c0_97, %c0_98] : memref<3x3x4x4xf32, #tpu.memory_space<vmem>>, vector<1x1x4x4xf32>
    %92 = vector.shape_cast %91 : vector<1x1x4x4xf32> to vector<4x4xf32>
    %cst_99 = arith.constant dense<0.000000e+00> : vector<128x4xf32>
    %93 = tpu.matmul %90, %92, %cst_99 {dimension_numbers = #tpu.dot_dimension_numbers<[1], [0], [0], [1], [0, 0, 1, 1], [], []>} : vector<128x4xf32>, vector<4x4xf32>, vector<128x4xf32> -> vector<128x4xf32>
    %94 = arith.addf %88, %93 : vector<128x4xf32>
    %c0_100 = arith.constant 0 : index
    %c1_101 = arith.constant 1 : index
    %c0_102 = arith.constant 0 : index
    %95 = vector.load %arg10[%c0_100, %c1_101, %c0_102] : memref<10x24x4xf32, #tpu.memory_space<vmem>>, vector<8x16x4xf32>
    %96 = vector.shape_cast %95 : vector<8x16x4xf32> to vector<128x4xf32>
    %c0_103 = arith.constant 0 : index
    %c1_104 = arith.constant 1 : index
    %c0_105 = arith.constant 0 : index
    %c0_106 = arith.constant 0 : index
    %97 = vector.load %arg6[%c0_103, %c1_104, %c0_105, %c0_106] : memref<3x3x4x4xf32, #tpu.memory_space<vmem>>, vector<1x1x4x4xf32>
    %98 = vector.shape_cast %97 : vector<1x1x4x4xf32> to vector<4x4xf32>
    %cst_107 = arith.constant dense<0.000000e+00> : vector<128x4xf32>
    %99 = tpu.matmul %96, %98, %cst_107 {dimension_numbers = #tpu.dot_dimension_numbers<[1], [0], [0], [1], [0, 0, 1, 1], [], []>} : vector<128x4xf32>, vector<4x4xf32>, vector<128x4xf32> -> vector<128x4xf32>
    %100 = arith.addf %94, %99 : vector<128x4xf32>
    %c0_108 = arith.constant 0 : index
    %c2_109 = arith.constant 2 : index
    %c0_110 = arith.constant 0 : index
    %101 = vector.load %arg10[%c0_108, %c2_109, %c0_110] : memref<10x24x4xf32, #tpu.memory_space<vmem>>, vector<8x16x4xf32>
    %102 = vector.shape_cast %101 : vector<8x16x4xf32> to vector<128x4xf32>
    %c0_111 = arith.constant 0 : index
    %c2_112 = arith.constant 2 : index
    %c0_113 = arith.constant 0 : index
    %c0_114 = arith.constant 0 : index
    %103 = vector.load %arg6[%c0_111, %c2_112, %c0_113, %c0_114] : memref<3x3x4x4xf32, #tpu.memory_space<vmem>>, vector<1x1x4x4xf32>
    %104 = vector.shape_cast %103 : vector<1x1x4x4xf32> to vector<4x4xf32>
    %cst_115 = arith.constant dense<0.000000e+00> : vector<128x4xf32>
    %105 = tpu.matmul %102, %104, %cst_115 {dimension_numbers = #tpu.dot_dimension_numbers<[1], [0], [0], [1], [0, 0, 1, 1], [], []>} : vector<128x4xf32>, vector<4x4xf32>, vector<128x4xf32> -> vector<128x4xf32>
    %106 = arith.addf %100, %105 : vector<128x4xf32>
    %c1_116 = arith.constant 1 : index
    %c0_117 = arith.constant 0 : index
    %c0_118 = arith.constant 0 : index
    %107 = vector.load %arg10[%c1_116, %c0_117, %c0_118] : memref<10x24x4xf32, #tpu.memory_space<vmem>>, vector<8x16x4xf32>
    %108 = vector.shape_cast %107 : vector<8x16x4xf32> to vector<128x4xf32>
    %c1_119 = arith.constant 1 : index
    %c0_120 = arith.constant 0 : index
    %c0_121 = arith.constant 0 : index
    %c0_122 = arith.constant 0 : index
    %109 = vector.load %arg6[%c1_119, %c0_120, %c0_121, %c0_122] : memref<3x3x4x4xf32, #tpu.memory_space<vmem>>, vector<1x1x4x4xf32>
    %110 = vector.shape_cast %109 : vector<1x1x4x4xf32> to vector<4x4xf32>
    %cst_123 = arith.constant dense<0.000000e+00> : vector<128x4xf32>
    %111 = tpu.matmul %108, %110, %cst_123 {dimension_numbers = #tpu.dot_dimension_numbers<[1], [0], [0], [1], [0, 0, 1, 1], [], []>} : vector<128x4xf32>, vector<4x4xf32>, vector<128x4xf32> -> vector<128x4xf32>
    %112 = arith.addf %106, %111 : vector<128x4xf32>
    %c1_124 = arith.constant 1 : index
    %c1_125 = arith.constant 1 : index
    %c0_126 = arith.constant 0 : index
    %113 = vector.load %arg10[%c1_124, %c1_125, %c0_126] : memref<10x24x4xf32, #tpu.memory_space<vmem>>, vector<8x16x4xf32>
    %114 = vector.shape_cast %113 : vector<8x16x4xf32> to vector<128x4xf32>
    %c1_127 = arith.constant 1 : index
    %c1_128 = arith.constant 1 : index
    %c0_129 = arith.constant 0 : index
    %c0_130 = arith.constant 0 : index
    %115 = vector.load %arg6[%c1_127, %c1_128, %c0_129, %c0_130] : memref<3x3x4x4xf32, #tpu.memory_space<vmem>>, vector<1x1x4x4xf32>
    %116 = vector.shape_cast %115 : vector<1x1x4x4xf32> to vector<4x4xf32>
    %cst_131 = arith.constant dense<0.000000e+00> : vector<128x4xf32>
    %117 = tpu.matmul %114, %116, %cst_131 {dimension_numbers = #tpu.dot_dimension_numbers<[1], [0], [0], [1], [0, 0, 1, 1], [], []>} : vector<128x4xf32>, vector<4x4xf32>, vector<128x4xf32> -> vector<128x4xf32>
    %118 = arith.addf %112, %117 : vector<128x4xf32>
    %c1_132 = arith.constant 1 : index
    %c2_133 = arith.constant 2 : index
    %c0_134 = arith.constant 0 : index
    %119 = vector.load %arg10[%c1_132, %c2_133, %c0_134] : memref<10x24x4xf32, #tpu.memory_space<vmem>>, vector<8x16x4xf32>
    %120 = vector.shape_cast %119 : vector<8x16x4xf32> to vector<128x4xf32>
    %c1_135 = arith.constant 1 : index
    %c2_136 = arith.constant 2 : index
    %c0_137 = arith.constant 0 : index
    %c0_138 = arith.constant 0 : index
    %121 = vector.load %arg6[%c1_135, %c2_136, %c0_137, %c0_138] : memref<3x3x4x4xf32, #tpu.memory_space<vmem>>, vector<1x1x4x4xf32>
    %122 = vector.shape_cast %121 : vector<1x1x4x4xf32> to vector<4x4xf32>
    %cst_139 = arith.constant dense<0.000000e+00> : vector<128x4xf32>
    %123 = tpu.matmul %120, %122, %cst_139 {dimension_numbers = #tpu.dot_dimension_numbers<[1], [0], [0], [1], [0, 0, 1, 1], [], []>} : vector<128x4xf32>, vector<4x4xf32>, vector<128x4xf32> -> vector<128x4xf32>
    %124 = arith.addf %118, %123 : vector<128x4xf32>
    %c2_140 = arith.constant 2 : index
    %c0_141 = arith.constant 0 : index
    %c0_142 = arith.constant 0 : index
    %125 = vector.load %arg10[%c2_140, %c0_141, %c0_142] : memref<10x24x4xf32, #tpu.memory_space<vmem>>, vector<8x16x4xf32>
    %126 = vector.shape_cast %125 : vector<8x16x4xf32> to vector<128x4xf32>
    %c2_143 = arith.constant 2 : index
    %c0_144 = arith.constant 0 : index
    %c0_145 = arith.constant 0 : index
    %c0_146 = arith.constant 0 : index
    %127 = vector.load %arg6[%c2_143, %c0_144, %c0_145, %c0_146] : memref<3x3x4x4xf32, #tpu.memory_space<vmem>>, vector<1x1x4x4xf32>
    %128 = vector.shape_cast %127 : vector<1x1x4x4xf32> to vector<4x4xf32>
    %cst_147 = arith.constant dense<0.000000e+00> : vector<128x4xf32>
    %129 = tpu.matmul %126, %128, %cst_147 {dimension_numbers = #tpu.dot_dimension_numbers<[1], [0], [0], [1], [0, 0, 1, 1], [], []>} : vector<128x4xf32>, vector<4x4xf32>, vector<128x4xf32> -> vector<128x4xf32>
    %130 = arith.addf %124, %129 : vector<128x4xf32>
    %c2_148 = arith.constant 2 : index
    %c1_149 = arith.constant 1 : index
    %c0_150 = arith.constant 0 : index
    %131 = vector.load %arg10[%c2_148, %c1_149, %c0_150] : memref<10x24x4xf32, #tpu.memory_space<vmem>>, vector<8x16x4xf32>
    %132 = vector.shape_cast %131 : vector<8x16x4xf32> to vector<128x4xf32>
    %c2_151 = arith.constant 2 : index
    %c1_152 = arith.constant 1 : index
    %c0_153 = arith.constant 0 : index
    %c0_154 = arith.constant 0 : index
    %133 = vector.load %arg6[%c2_151, %c1_152, %c0_153, %c0_154] : memref<3x3x4x4xf32, #tpu.memory_space<vmem>>, vector<1x1x4x4xf32>
    %134 = vector.shape_cast %133 : vector<1x1x4x4xf32> to vector<4x4xf32>
    %cst_155 = arith.constant dense<0.000000e+00> : vector<128x4xf32>
    %135 = tpu.matmul %132, %134, %cst_155 {dimension_numbers = #tpu.dot_dimension_numbers<[1], [0], [0], [1], [0, 0, 1, 1], [], []>} : vector<128x4xf32>, vector<4x4xf32>, vector<128x4xf32> -> vector<128x4xf32>
    %136 = arith.addf %130, %135 : vector<128x4xf32>
    %c2_156 = arith.constant 2 : index
    %c2_157 = arith.constant 2 : index
    %c0_158 = arith.constant 0 : index
    %137 = vector.load %arg10[%c2_156, %c2_157, %c0_158] : memref<10x24x4xf32, #tpu.memory_space<vmem>>, vector<8x16x4xf32>
    %138 = vector.shape_cast %137 : vector<8x16x4xf32> to vector<128x4xf32>
    %c2_159 = arith.constant 2 : index
    %c2_160 = arith.constant 2 : index
    %c0_161 = arith.constant 0 : index
    %c0_162 = arith.constant 0 : index
    %139 = vector.load %arg6[%c2_159, %c2_160, %c0_161, %c0_162] : memref<3x3x4x4xf32, #tpu.memory_space<vmem>>, vector<1x1x4x4xf32>
    %140 = vector.shape_cast %139 : vector<1x1x4x4xf32> to vector<4x4xf32>
    %cst_163 = arith.constant dense<0.000000e+00> : vector<128x4xf32>
    %141 = tpu.matmul %138, %140, %cst_163 {dimension_numbers = #tpu.dot_dimension_numbers<[1], [0], [0], [1], [0, 0, 1, 1], [], []>} : vector<128x4xf32>, vector<4x4xf32>, vector<128x4xf32> -> vector<128x4xf32>
    %142 = arith.addf %136, %141 : vector<128x4xf32>
    %c2_164 = arith.constant 2 : index
    %c2_165 = arith.constant 2 : index
    %c0_166 = arith.constant 0 : index
    %143 = vector.load %arg9[%c2_164, %c2_165, %c0_166] : memref<12x26x4xf32, #tpu.memory_space<vmem>>, vector<8x16x4xf32>
    %144 = vector.shape_cast %143 : vector<8x16x4xf32> to vector<128x4xf32>
    %145 = arith.addf %144, %142 : vector<128x4xf32>
    %146 = vector.shape_cast %145 : vector<128x4xf32> to vector<8x16x4xf32>
    %c0_167 = arith.constant 0 : index
    %c0_168 = arith.constant 0 : index
    %c0_169 = arith.constant 0 : index
    %c0_170 = arith.constant 0 : index
    %147 = vector.load %arg8[%c0_167, %c0_168, %c0_169, %c0_170] : memref<1x8x16x4xf32, #tpu.memory_space<vmem>>, vector<1x8x16x4xf32>
    %148 = vector.shape_cast %147 : vector<1x8x16x4xf32> to vector<8x16x4xf32>
    %149 = vector.shape_cast %146 : vector<8x16x4xf32> to vector<1x8x16x4xf32>
    tpu.vector_store %arg8[%c0_167, %c0_168, %c0_169, %c0_170], %149 {strides = array<i32>} : memref<1x8x16x4xf32, #tpu.memory_space<vmem>>, vector<1x8x16x4xf32>,
    return
  }
  func.func @transform_0(%arg0: i32, %arg1: i32) -> (i32, i32, i32, i32) {
    %c0_i32 = arith.constant 0 : i32
    %c0_i32_0 = arith.constant 0 : i32
    %c0_i32_1 = arith.constant 0 : i32
    return %arg0, %arg1, %c0_i32, %c0_i32_0 : i32, i32, i32, i32
  }
  func.func @transform_1(%arg0: i32, %arg1: i32) -> (i32, i32, i32, i32) {
    %c1_i32 = arith.constant 1 : i32
    %0 = arith.addi %arg1, %c1_i32 : i32
    %c2_i32 = arith.constant 2 : i32
    %1 = arith.muli %0, %c2_i32 : i32
    %c0_i32 = arith.constant 0 : i32
    %c0_i32_0 = arith.constant 0 : i32
    %c0_i32_1 = arith.constant 0 : i32
    return %arg0, %1, %c0_i32, %c0_i32_0 : i32, i32, i32, i32
  }
  func.func @transform_2(%arg0: i32, %arg1: i32) -> (i32, i32, i32, i32) {
    %c0_i32 = arith.constant 0 : i32
    %c0_i32_0 = arith.constant 0 : i32
    %c0_i32_1 = arith.constant 0 : i32
    %c0_i32_2 = arith.constant 0 : i32
    %c0_i32_3 = arith.constant 0 : i32
    return %c0_i32, %c0_i32_0, %c0_i32_1, %c0_i32_2 : i32, i32, i32, i32
  }
  func.func @transform_3(%arg0: i32, %arg1: i32) -> (i32, i32) {
    %c0_i32 = arith.constant 0 : i32
    %c0_i32_0 = arith.constant 0 : i32
    %c0_i32_1 = arith.constant 0 : i32
    return %c0_i32, %c0_i32_0 : i32, i32
  }
  func.func @transform_4(%arg0: i32, %arg1: i32) -> (i32, i32, i32, i32) {
    %c0_i32 = arith.constant 0 : i32
    %c0_i32_0 = arith.constant 0 : i32
    %c0_i32_1 = arith.constant 0 : i32
    %c0_i32_2 = arith.constant 0 : i32
    %c0_i32_3 = arith.constant 0 : i32
    return %c0_i32, %c0_i32_0, %c0_i32_1, %c0_i32_2 : i32, i32, i32, i32
  }
  func.func @transform_5(%arg0: i32, %arg1: i32) -> (i32, i32) {
    %c0_i32 = arith.constant 0 : i32
    %c0_i32_0 = arith.constant 0 : i32
    %c0_i32_1 = arith.constant 0 : i32
    return %c0_i32, %c0_i32_0 : i32, i32
  }
  func.func @transform_6(%arg0: i32, %arg1: i32) -> (i32, i32, i32, i32) {
    %c0_i32 = arith.constant 0 : i32
    %c0_i32_0 = arith.constant 0 : i32
    %c0_i32_1 = arith.constant 0 : i32
    return %arg0, %arg1, %c0_i32, %c0_i32_0 : i32, i32, i32, i32
  }
}

</mosaic_0001>

<llo_original>
// kernel: res_block_forward.1
$region0: #{res_block_forward.1}
  #allocation0 [shape = 'u32[]', space=smem, size = 0x4, offset = 0x4, fixed_abs, tag = 'smem constant byte address 0x4 - core index']
  #allocation1 [shape = 'u32[144,128]{1,0:T(1,128)}', space=vmem, size = 0x12000, scoped, tag = 'internal scratch']
  #allocation2 [shape = 'f32[12,26,4]{2,1,0:T(8,128)}', space=vmem, size = 0x30000, scoped, tag = 'scratch operand']
  #allocation3 [shape = 'f32[10,24,4]{2,1,0:T(8,128)}', space=vmem, size = 0x1e000, scoped, tag = 'scratch operand']
  %s0 = inlined_call_operand.vmem [shape: f32[2,20,26,4], index: 0, kind: input, shape index: {}, may-alias: {0,1}]
  %s1 = inlined_call_operand.vmem [shape: f32[2,20,26,4], index: 1, kind: input, shape index: {}, may-alias: {0,1}]
  %s2 = inlined_call_operand.vmem [shape: f32[3,3,4,4], index: 2, kind: input, shape index: {}]
  %s3 = inlined_call_operand.vmem [shape: f32[1,4], index: 3, kind: input, shape index: {}]
  %s4 = inlined_call_operand.vmem [shape: f32[3,3,4,4], index: 4, kind: input, shape index: {}]
  %s5 = inlined_call_operand.vmem [shape: f32[1,4], index: 5, kind: input, shape index: {}]
  %s6 = inlined_call_operand.vmem [shape: f32[2,16,16,4], index: 6, kind: output, shape index: {}]
  %s7 = sld [smem:[#allocation0]]
  $region57: #{res_block_forward.1} parent=0
    _
  %s9 = ssub.s32 1, %s7
  %s10 = scalar_select 0, %s9, %s7
  loop: start=0, step=1, limit=6
  $region2: #{res_block_forward.1} parent=0 // loop_pre_header
    _
  $region3: #{res_block_forward.1} parent=0 // loop_header
    %s12 = sphi 0, %s16
    %p13 = scmp.ge.s32.totalorder %s12, 6
    %s19 = sphi 0, %s31
    %s20 = sphi 0, %s27
    %s21 = sphi 0, %s19
    %s22 = sphi 0, %s20
    %s23 = sphi 0, %s21
    %s24 = sphi 0, %s22
    %s36 = sphi 0, %s38
    %s39 = sphi 0, %s36
    %s40 = sphi 0, %s39
    %s56 = sphi 0, %s40
    %s68 = sphi 0, %s70
    %s71 = sphi 0, %s68
    %s72 = sphi 0, %s71
    %s88 = sphi 0, %s72
    %s92 = sphi 0, %s92
    %s94 = sphi 0, %s92
    %s95 = sphi 0, %s94
    %s109 = sphi 0, %s95
    %s113 = sphi 0, %s113
    %s115 = sphi 0, %s113
    %s116 = sphi 0, %s115
    %s130 = sphi 0, %s116
    %s134 = sphi 0, %s134
    %s136 = sphi 0, %s134
    %s137 = sphi 0, %s136
    %s151 = sphi 0, %s137
    %s155 = sphi 0, %s155
    %s157 = sphi 0, %s155
    %s158 = sphi 0, %s157
    %s172 = sphi 0, %s158
    %s180 = sphi 0, %s182
    %s183 = sphi 0, %s180
    %s184 = sphi 0, %s183
    %s200 = sphi 0, %s184
  $region4: #{res_block_forward.1} parent=0 // loop_header_branch
    %15 = sbr.rel (%p13) target = $region8
  $region5: #{res_block_forward.1} parent=0 // loop_body
    %s17 = ssub.s32 %s12, 1
    %s18 = ssub.s32 %s12, 2
    %s25 = sadd.s32 1, %s20
    %p26 = scmp.ge.s32.totalorder %s25, 2
    %s27 = scalar_select %p26, 0, %s25
    %s28 = sadd.s32 1, %s19
    %s29 = scalar_select %p26, %s28, %s19
    %p30 = scmp.ge.s32.totalorder %s29, 2
    %s31 = scalar_select %p30, 0, %s29
    %s32 = ssub.s32 %s19, %s31
    %s33 = ssub.s32 %s20, %s27
    %s34 = sor.u32 %s32, %s33
    %p35 = scmp.eq.s32.totalorder %s34, 0
    %s37 = sadd.s32 %s36, 1
    %s38 = scalar_select %p35, %s36, %s37
    %p41 = pneg %p35
    %p42 = scmp.eq.s32.totalorder %s12, 3
    %p43 = por %p41, %p42
    %p44 = scmp.ne.s32.totalorder %s36, %s39
    %p45 = scmp.eq.s32.totalorder %s12, 0
    %p46 = por %p44, %p45
    %p47 = scmp.ne.s32.totalorder %s36, %s39
    %p48 = scmp.eq.s32.totalorder %s17, 3
    %p49 = por %p47, %p48
    %p50 = scmp.ne.s32.totalorder %s39, %s40
    %p51 = scmp.eq.s32.totalorder %s17, 0
    %p52 = por %p50, %p51
    %p53 = scmp.ne.s32.totalorder %s39, %s40
    %p54 = scmp.eq.s32.totalorder %s18, 3
    %p55 = por %p53, %p54
    %p57 = scmp.ne.s32.totalorder %s40, %s56
    %p58 = scmp.eq.s32.totalorder %s18, 0
    %p59 = por %p57, %p58
    %s60 = sadd.s32 %s20, 1
    %s61 = smul.u32 %s60, 2
    %s62 = sadd.s32 %s27, 1
    %s63 = smul.u32 %s62, 2
    %s64 = ssub.s32 %s19, %s31
    %s65 = ssub.s32 %s61, %s63
    %s66 = sor.u32 %s64, %s65
    %p67 = scmp.eq.s32.totalorder %s66, 0
    %s69 = sadd.s32 %s68, 1
    %s70 = scalar_select %p67, %s68, %s69
    %p73 = pneg %p67
    %p74 = scmp.eq.s32.totalorder %s12, 3
    %p75 = por %p73, %p74
    %p76 = scmp.ne.s32.totalorder %s68, %s71
    %p77 = scmp.eq.s32.totalorder %s12, 0
    %p78 = por %p76, %p77
    %p79 = scmp.ne.s32.totalorder %s68, %s71
    %p80 = scmp.eq.s32.totalorder %s17, 3
    %p81 = por %p79, %p80
    %p82 = scmp.ne.s32.totalorder %s71, %s72
    %p83 = scmp.eq.s32.totalorder %s17, 0
    %p84 = por %p82, %p83
    %p85 = scmp.ne.s32.totalorder %s71, %s72
    %p86 = scmp.eq.s32.totalorder %s18, 3
    %p87 = por %p85, %p86
    %p89 = scmp.ne.s32.totalorder %s72, %s88
    %p90 = scmp.eq.s32.totalorder %s18, 0
    %p91 = por %p89, %p90
    %s93 = sadd.s32 %s92, 1
    %p96 = scmp.eq.s32.totalorder %s12, 3
    %p97 = scmp.ne.s32.totalorder %s92, %s94
    %p98 = scmp.eq.s32.totalorder %s12, 0
    %p99 = por %p97, %p98
    %p100 = scmp.ne.s32.totalorder %s92, %s94
    %p101 = scmp.eq.s32.totalorder %s17, 3
    %p102 = por %p100, %p101
    %p103 = scmp.ne.s32.totalorder %s94, %s95
    %p104 = scmp.eq.s32.totalorder %s17, 0
    %p105 = por %p103, %p104
    %p106 = scmp.ne.s32.totalorder %s94, %s95
    %p107 = scmp.eq.s32.totalorder %s18, 3
    %p108 = por %p106, %p107
    %p110 = scmp.ne.s32.totalorder %s95, %s109
    %p111 = scmp.eq.s32.totalorder %s18, 0
    %p112 = por %p110, %p111
    %s114 = sadd.s32 %s113, 1
    %p117 = scmp.eq.s32.totalorder %s12, 3
    %p118 = scmp.ne.s32.totalorder %s113, %s115
    %p119 = scmp.eq.s32.totalorder %s12, 0
    %p120 = por %p118, %p119
    %p121 = scmp.ne.s32.totalorder %s113, %s115
    %p122 = scmp.eq.s32.totalorder %s17, 3
    %p123 = por %p121, %p122
    %p124 = scmp.ne.s32.totalorder %s115, %s116
    %p125 = scmp.eq.s32.totalorder %s17, 0
    %p126 = por %p124, %p125
    %p127 = scmp.ne.s32.totalorder %s115, %s116
    %p128 = scmp.eq.s32.totalorder %s18, 3
    %p129 = por %p127, %p128
    %p131 = scmp.ne.s32.totalorder %s116, %s130
    %p132 = scmp.eq.s32.totalorder %s18, 0
    %p133 = por %p131, %p132
    %s135 = sadd.s32 %s134, 1
    %p138 = scmp.eq.s32.totalorder %s12, 3
    %p139 = scmp.ne.s32.totalorder %s134, %s136
    %p140 = scmp.eq.s32.totalorder %s12, 0
    %p141 = por %p139, %p140
    %p142 = scmp.ne.s32.totalorder %s134, %s136
    %p143 = scmp.eq.s32.totalorder %s17, 3
    %p144 = por %p142, %p143
    %p145 = scmp.ne.s32.totalorder %s136, %s137
    %p146 = scmp.eq.s32.totalorder %s17, 0
    %p147 = por %p145, %p146
    %p148 = scmp.ne.s32.totalorder %s136, %s137
    %p149 = scmp.eq.s32.totalorder %s18, 3
    %p150 = por %p148, %p149
    %p152 = scmp.ne.s32.totalorder %s137, %s151
    %p153 = scmp.eq.s32.totalorder %s18, 0
    %p154 = por %p152, %p153
    %s156 = sadd.s32 %s155, 1
    %p159 = scmp.eq.s32.totalorder %s12, 3
    %p160 = scmp.ne.s32.totalorder %s155, %s157
    %p161 = scmp.eq.s32.totalorder %s12, 0
    %p162 = por %p160, %p161
    %p163 = scmp.ne.s32.totalorder %s155, %s157
    %p164 = scmp.eq.s32.totalorder %s17, 3
    %p165 = por %p163, %p164
    %p166 = scmp.ne.s32.totalorder %s157, %s158
    %p167 = scmp.eq.s32.totalorder %s17, 0
    %p168 = por %p166, %p167
    %p169 = scmp.ne.s32.totalorder %s157, %s158
    %p170 = scmp.eq.s32.totalorder %s18, 3
    %p171 = por %p169, %p170
    %p173 = scmp.ne.s32.totalorder %s158, %s172
    %p174 = scmp.eq.s32.totalorder %s18, 0
    %p175 = por %p173, %p174
    %s176 = ssub.s32 %s19, %s31
    %s177 = ssub.s32 %s20, %s27
    %s178 = sor.u32 %s176, %s177
    %p179 = scmp.eq.s32.totalorder %s178, 0
    %s181 = sadd.s32 %s180, 1
    %s182 = scalar_select %p179, %s180, %s181
    %p185 = pneg %p179
    %p186 = scmp.eq.s32.totalorder %s12, 3
    %p187 = por %p185, %p186
    %p188 = scmp.ne.s32.totalorder %s180, %s183
    %p189 = scmp.eq.s32.totalorder %s12, 0
    %p190 = por %p188, %p189
    %p191 = scmp.ne.s32.totalorder %s180, %s183
    %p192 = scmp.eq.s32.totalorder %s17, 3
    %p193 = por %p191, %p192
    %p194 = scmp.ne.s32.totalorder %s183, %s184
    %p195 = scmp.eq.s32.totalorder %s17, 0
    %p196 = por %p194, %p195
    %p197 = scmp.ne.s32.totalorder %s183, %s184
    %p198 = scmp.eq.s32.totalorder %s18, 3
    %p199 = por %p197, %p198
    %p201 = scmp.ne.s32.totalorder %s184, %s200
    %p202 = scmp.eq.s32.totalorder %s18, 0
    %p203 = por %p201, %p202
    %p204 = scmp.le.s32.totalorder 1, %s12
    %p205 = scmp.lt.s32.totalorder %s12, 5
    %p206 = pnand %p204, %p205
    %p207 = pneg %p206
    // Predicated region
    $region9: #{res_block_forward.1} parent=5 // pred_check
      _
    $region10: #{res_block_forward.1} parent=5 // pred_check_branch
      %209 = sbr.rel (%p206) target = $region12
    $region11: #{res_block_forward.1} parent=5 // pred_region
      %s210 = ssub.s32 %s12, 1
      // Predicated region
      $region13: #{res_block_forward.1} parent=11 // pred_check
        %p211 = pneg %p105
      $region14: #{res_block_forward.1} parent=11 // pred_check_branch
        %213 = sbr.rel (%p211) target = $region16
      $region15: #{res_block_forward.1} parent=11 // pred_region
        _
      $region16: #{res_block_forward.1} parent=11 // pred_fallthru
        _
      // Predicated region
      $region17: #{res_block_forward.1} parent=11 // pred_check
        %p214 = pneg %p126
      $region18: #{res_block_forward.1} parent=11 // pred_check_branch
        %216 = sbr.rel (%p214) target = $region20
      $region19: #{res_block_forward.1} parent=11 // pred_region
        _
      $region20: #{res_block_forward.1} parent=11 // pred_fallthru
        _
      // Predicated region
      $region21: #{res_block_forward.1} parent=11 // pred_check
        %p217 = pneg %p147
      $region22: #{res_block_forward.1} parent=11 // pred_check_branch
        %219 = sbr.rel (%p217) target = $region24
      $region23: #{res_block_forward.1} parent=11 // pred_region
        _
      $region24: #{res_block_forward.1} parent=11 // pred_fallthru
        _
      // Predicated region
      $region25: #{res_block_forward.1} parent=11 // pred_check
        %p220 = pneg %p168
      $region26: #{res_block_forward.1} parent=11 // pred_check_branch
        %222 = sbr.rel (%p220) target = $region28
      $region27: #{res_block_forward.1} parent=11 // pred_region
        _
      $region28: #{res_block_forward.1} parent=11 // pred_fallthru
        _
    $region12: #{res_block_forward.1} parent=5 // pred_fallthru
      _
    %p223 = scmp.lt.s32.totalorder %s12, 4
    // Predicated region
    $region29: #{res_block_forward.1} parent=5 // pred_check
      %p224 = pneg %p223
    $region30: #{res_block_forward.1} parent=5 // pred_check_branch
      %226 = sbr.rel (%p224) target = $region32
    $region31: #{res_block_forward.1} parent=5 // pred_region
      // Predicated region
      $region33: #{res_block_forward.1} parent=31 // pred_check
        %p227 = pneg %p46
      $region34: #{res_block_forward.1} parent=31 // pred_check_branch
        %229 = sbr.rel (%p227) target = $region36
      $region35: #{res_block_forward.1} parent=31 // pred_region
        %s230 = smul.u32 8, %s20
        %s231 = ssub.s32 20, %s230
        %p232 = scmp.lt.s32.totalorder %s231, 8
        %s233 = scalar_select %p232, %s231, 8
        %s234 = smul.u32 128, %s233
        %s235 = smul.u32 %s234, 4
        %p236 = scmp.lt.s32.totalorder %s19, 1
        %s237 = scalar_select %p236, %s19, 1
        %p238 = scmp.lt.s32.totalorder %s230, 19
        %s239 = scalar_select %p238, %s230, 19
        %s240 = smul.addr %s239, 4
        %s241 = smul.addr %s237, 80
        %s242 = sadd.s32 %s240, %s241
        %s243 = smul.addr %s242, 8
        %s244 = scalar_lea.vmem %s0, %s243
        %s245 = smul.u32 8, %s20
        %s246 = ssub.s32 20, %s245
        %p247 = scmp.lt.s32.totalorder %s246, 8
        %s248 = scalar_select %p247, %s246, 8
        %s249 = smul.u32 128, %s248
        %s250 = smul.u32 %s249, 4
      $region36: #{res_block_forward.1} parent=31 // pred_fallthru
        _
      // Predicated region
      $region37: #{res_block_forward.1} parent=31 // pred_check
        %p251 = pneg %p78
      $region38: #{res_block_forward.1} parent=31 // pred_check_branch
        %253 = sbr.rel (%p251) target = $region40
      $region39: #{res_block_forward.1} parent=31 // pred_region
        %s254 = sadd.s32 %s20, 1
        %s255 = smul.u32 %s254, 2
        %s256 = smul.u32 4, %s255
        %p257 = scmp.lt.s32.totalorder %s19, 1
        %s258 = scalar_select %p257, %s19, 1
        %p259 = scmp.lt.s32.totalorder %s256, 19
        %s260 = scalar_select %p259, %s256, 19
        %s261 = smul.addr %s260, 4
        %s262 = smul.addr %s258, 80
        %s263 = sadd.s32 %s261, %s262
        %s264 = smul.addr %s263, 8
        %s265 = scalar_lea.vmem %s1, %s264
        %s266 = sadd.s32 %s20, 1
        %s267 = smul.u32 %s266, 2
        %s268 = smul.u32 4, %s267
      $region40: #{res_block_forward.1} parent=31 // pred_fallthru
        _
    $region32: #{res_block_forward.1} parent=5 // pred_fallthru
      _
    %p269 = scmp.le.s32.totalorder 1, %s12
    %p270 = scmp.lt.s32.totalorder %s12, 5
    %p271 = pnand %p269, %p270
    %p272 = pneg %p271
    // Predicated region
    $region41: #{res_block_forward.1} parent=5 // pred_check
      _
    $region42: #{res_block_forward.1} parent=5 // pred_check_branch
      %274 = sbr.rel (%p271) target = $region44
    $region43: #{res_block_forward.1} parent=5 // pred_region
      %s275 = ssub.s32 %s12, 1
      %s276 = smul.u32 8, %s22
      %s277 = ssub.s32 20, %s276
      %p278 = scmp.lt.s32.totalorder %s277, 8
      %s279 = scalar_select %p278, %s277, 8
      %s280 = smul.u32 128, %s279
      %s281 = smul.u32 %s280, 4
      %p282 = scmp.lt.s32.totalorder %s21, 1
      %s283 = scalar_select %p282, %s21, 1
      %p284 = scmp.lt.s32.totalorder %s276, 19
      %s285 = scalar_select %p284, %s276, 19
      %s286 = smul.addr %s285, 4
      %s287 = smul.addr %s283, 80
      %s288 = sadd.s32 %s286, %s287
      %s289 = smul.addr %s288, 8
      %s290 = scalar_lea.vmem %s0, %s289
      %p291 = pneg %p52
      %p292 = pneg %p49
      %s293 = sadd.s32 %s22, 1
      %s294 = smul.u32 %s293, 2
      %s295 = smul.u32 4, %s294
      %p296 = scmp.lt.s32.totalorder %s21, 1
      %s297 = scalar_select %p296, %s21, 1
      %p298 = scmp.lt.s32.totalorder %s295, 19
      %s299 = scalar_select %p298, %s295, 19
      %s300 = smul.addr %s299, 4
      %s301 = smul.addr %s297, 80
      %s302 = sadd.s32 %s300, %s301
      %s303 = smul.addr %s302, 8
      %s304 = scalar_lea.vmem %s1, %s303
      %p305 = pneg %p84
      %p306 = pneg %p81
      %p307 = pneg %p105
      %p308 = pneg %p102
      %p309 = pneg %p126
      %p310 = pneg %p123
      %p311 = pneg %p147
      %p312 = pneg %p144
      %p313 = pneg %p168
      %p314 = pneg %p165
      %p315 = pneg %p196
      %p316 = pneg %p193
      %s317 = smul.u32 8, %s22
      %p318 = scmp.lt.s32.totalorder %s21, 1
      %s319 = scalar_select %p318, %s21, 1
      %p320 = scmp.lt.s32.totalorder %s317, 15
      %s321 = scalar_select %p320, %s317, 15
      %s322 = smul.addr %s321, 2
      %s323 = smul.addr %s319, 32
      %s324 = sadd.s32 %s322, %s323
      %s325 = smul.addr %s324, 8
      %s326 = scalar_lea.vmem %s6, %s325
      %s327 = smul.u32 8, %s22
      %s328 = ssub.s32 20, %s327
      %p329 = scmp.lt.s32.totalorder %s328, 8
      %s330 = scalar_select %p329, %s328, 8
      %s331 = smul.u32 128, %s330
      %s332 = smul.u32 %s331, 4
      %p333 = scmp.lt.s32.totalorder %s21, 1
      %s334 = scalar_select %p333, %s21, 1
      %p335 = scmp.lt.s32.totalorder %s327, 19
      %s336 = scalar_select %p335, %s327, 19
      %s337 = smul.addr %s336, 4
      %s338 = smul.addr %s334, 80
      %s339 = sadd.s32 %s337, %s338
      %s340 = smul.addr %s339, 8
      %s341 = scalar_lea.vmem %s0, %s340
      %s342 = smul.u32 8, %s22
      %s343 = ssub.s32 20, %s342
      %p344 = scmp.lt.s32.totalorder %s343, 8
      %s345 = scalar_select %p344, %s343, 8
      %s346 = smul.u32 128, %s345
      %s347 = smul.u32 %s346, 4
      %s348 = sadd.s32 %s22, 1
      %s349 = smul.u32 %s348, 2
      %s350 = smul.u32 4, %s349
      %p351 = scmp.lt.s32.totalorder %s21, 1
      %s352 = scalar_select %p351, %s21, 1
      %p353 = scmp.lt.s32.totalorder %s350, 19
      %s354 = scalar_select %p353, %s350, 19
      %s355 = smul.addr %s354, 4
      %s356 = smul.addr %s352, 80
      %s357 = sadd.s32 %s355, %s356
      %s358 = smul.addr %s357, 8
      %s359 = scalar_lea.vmem %s1, %s358
      %s360 = sadd.s32 %s22, 1
      %s361 = smul.u32 %s360, 2
      %s362 = smul.u32 4, %s361
      %s363 = smul.u32 8, %s22
      %p364 = scmp.lt.s32.totalorder %s21, 1
      %s365 = scalar_select %p364, %s21, 1
      %p366 = scmp.lt.s32.totalorder %s363, 15
      %s367 = scalar_select %p366, %s363, 15
      %s368 = smul.addr %s367, 2
      %s369 = smul.addr %s365, 32
      %s370 = sadd.s32 %s368, %s369
      %s371 = smul.addr %s370, 8
      %s372 = scalar_lea.vmem %s6, %s371
      %s373 = smul.u32 8, %s22
      %v374 = vld [vmem:[%s341] sm:$0xff]
      %v375 = vld [vmem:[%s341 + $0x8] sm:$0xff]
      %v376 = vld [vmem:[%s341 + $0x10] sm:$0xff]
      %v377 = vld [vmem:[%s341 + $0x18] sm:$0x3]
      %v378 = vld [vmem:[%s341 + $0x20] sm:$0xff]
      %v379 = vld [vmem:[%s341 + $0x28] sm:$0xff]
      %v380 = vld [vmem:[%s341 + $0x30] sm:$0xff]
      %v381 = vld [vmem:[%s341 + $0x38] sm:$0x3]
      %v382 = vld [vmem:[%s341 + $0x40] sm:$0xff]
      %v383 = vld [vmem:[%s341 + $0x48] sm:$0xff]
      %v384 = vld [vmem:[%s341 + $0x50] sm:$0xff]
      %v385 = vld [vmem:[%s341 + $0x58] sm:$0x3]
      %v386 = vld [vmem:[%s341 + $0x60] sm:$0xff]
      %v387 = vld [vmem:[%s341 + $0x68] sm:$0xff]
      %v388 = vld [vmem:[%s341 + $0x70] sm:$0xff]
      %v389 = vld [vmem:[%s341 + $0x78] sm:$0x3]
      %v390 = vld [vmem:[%s341 + $0x80] sm:$0xff]
      %v391 = vld [vmem:[%s341 + $0x88] sm:$0xff]
      %v392 = vld [vmem:[%s341 + $0x90] sm:$0xff]
      %v393 = vld [vmem:[%s341 + $0x98] sm:$0x3]
      %v394 = vld [vmem:[%s341 + $0xa0] sm:$0xff]
      %v395 = vld [vmem:[%s341 + $0xa8] sm:$0xff]
      %v396 = vld [vmem:[%s341 + $0xb0] sm:$0xff]
      %v397 = vld [vmem:[%s341 + $0xb8] sm:$0x3]
      %v398 = vld [vmem:[%s341 + $0xc0] sm:$0xff]
      %v399 = vld [vmem:[%s341 + $0xc8] sm:$0xff]
      %v400 = vld [vmem:[%s341 + $0xd0] sm:$0xff]
      %v401 = vld [vmem:[%s341 + $0xd8] sm:$0x3]
      %v402 = vld [vmem:[%s341 + $0xe0] sm:$0xff]
      %v403 = vld [vmem:[%s341 + $0xe8] sm:$0xff]
      %v404 = vld [vmem:[%s341 + $0xf0] sm:$0xff]
      %v405 = vld [vmem:[%s341 + $0xf8] sm:$0x3]
      %vm406 = vcmask 31744
      %407 = vst.msk [vmem:[#allocation2] sm:$0xff] %vm406, %v374
      %408 = vst.msk [vmem:[#allocation2 + $0x8] sm:$0xff] %vm406, %v375
      %409 = vst.msk [vmem:[#allocation2 + $0x10] sm:$0xff] %vm406, %v376
      %vm410 = vcmask 25600
      %411 = vst.msk [vmem:[#allocation2 + $0x18] sm:$0x3] %vm410, %v377
      %412 = vst.msk [vmem:[#allocation2 + $0x20] sm:$0xff] %vm406, %v378
      %413 = vst.msk [vmem:[#allocation2 + $0x28] sm:$0xff] %vm406, %v379
      %414 = vst.msk [vmem:[#allocation2 + $0x30] sm:$0xff] %vm406, %v380
      %415 = vst.msk [vmem:[#allocation2 + $0x38] sm:$0x3] %vm410, %v381
      %416 = vst.msk [vmem:[#allocation2 + $0x40] sm:$0xff] %vm406, %v382
      %417 = vst.msk [vmem:[#allocation2 + $0x48] sm:$0xff] %vm406, %v383
      %418 = vst.msk [vmem:[#allocation2 + $0x50] sm:$0xff] %vm406, %v384
      %419 = vst.msk [vmem:[#allocation2 + $0x58] sm:$0x3] %vm410, %v385
      %420 = vst.msk [vmem:[#allocation2 + $0x60] sm:$0xff] %vm406, %v386
      %421 = vst.msk [vmem:[#allocation2 + $0x68] sm:$0xff] %vm406, %v387
      %422 = vst.msk [vmem:[#allocation2 + $0x70] sm:$0xff] %vm406, %v388
      %423 = vst.msk [vmem:[#allocation2 + $0x78] sm:$0x3] %vm410, %v389
      %424 = vst.msk [vmem:[#allocation2 + $0x80] sm:$0xff] %vm406, %v390
      %425 = vst.msk [vmem:[#allocation2 + $0x88] sm:$0xff] %vm406, %v391
      %426 = vst.msk [vmem:[#allocation2 + $0x90] sm:$0xff] %vm406, %v392
      %427 = vst.msk [vmem:[#allocation2 + $0x98] sm:$0x3] %vm410, %v393
      %428 = vst.msk [vmem:[#allocation2 + $0xa0] sm:$0xff] %vm406, %v394
      %429 = vst.msk [vmem:[#allocation2 + $0xa8] sm:$0xff] %vm406, %v395
      %430 = vst.msk [vmem:[#allocation2 + $0xb0] sm:$0xff] %vm406, %v396
      %431 = vst.msk [vmem:[#allocation2 + $0xb8] sm:$0x3] %vm410, %v397
      %432 = vst.msk [vmem:[#allocation2 + $0xc0] sm:$0xff] %vm406, %v398
      %433 = vst.msk [vmem:[#allocation2 + $0xc8] sm:$0xff] %vm406, %v399
      %434 = vst.msk [vmem:[#allocation2 + $0xd0] sm:$0xff] %vm406, %v400
      %435 = vst.msk [vmem:[#allocation2 + $0xd8] sm:$0x3] %vm410, %v401
      %436 = vst.msk [vmem:[#allocation2 + $0xe0] sm:$0xff] %vm406, %v402
      %437 = vst.msk [vmem:[#allocation2 + $0xe8] sm:$0xff] %vm406, %v403
      %438 = vst.msk [vmem:[#allocation2 + $0xf0] sm:$0xff] %vm406, %v404
      %439 = vst.msk [vmem:[#allocation2 + $0xf8] sm:$0x3] %vm410, %v405
      %v440 = vld [vmem:[%s359] sm:$0xff]
      %v441 = vld [vmem:[%s359 + $0x8] sm:$0xff]
      %v442 = vld [vmem:[%s359 + $0x10] sm:$0xff]
      %v443 = vld [vmem:[%s359 + $0x18] sm:$0x3]
      %v444 = vld [vmem:[%s359 + $0x20] sm:$0xff]
      %v445 = vld [vmem:[%s359 + $0x28] sm:$0xff]
      %v446 = vld [vmem:[%s359 + $0x30] sm:$0xff]
      %v447 = vld [vmem:[%s359 + $0x38] sm:$0x3]
      %v448 = vld [vmem:[%s359 + $0x40] sm:$0xff]
      %v449 = vld [vmem:[%s359 + $0x48] sm:$0xff]
      %v450 = vld [vmem:[%s359 + $0x50] sm:$0xff]
      %v451 = vld [vmem:[%s359 + $0x58] sm:$0x3]
      %v452 = vld [vmem:[%s359 + $0x60] sm:$0xff]
      %v453 = vld [vmem:[%s359 + $0x68] sm:$0xff]
      %v454 = vld [vmem:[%s359 + $0x70] sm:$0xff]
      %v455 = vld [vmem:[%s359 + $0x78] sm:$0x3]
      %s456 = scalar_lea.vmem [#allocation2], 256
      %457 = vst.msk [vmem:[%s456] sm:$0xff] %vm406, %v440
      %458 = vst.msk [vmem:[%s456 + $0x8] sm:$0xff] %vm406, %v441
      %459 = vst.msk [vmem:[%s456 + $0x10] sm:$0xff] %vm406, %v442
      %460 = vst.msk [vmem:[%s456 + $0x18] sm:$0x3] %vm410, %v443
      %461 = vst.msk [vmem:[%s456 + $0x20] sm:$0xff] %vm406, %v444
      %462 = vst.msk [vmem:[%s456 + $0x28] sm:$0xff] %vm406, %v445
      %463 = vst.msk [vmem:[%s456 + $0x30] sm:$0xff] %vm406, %v446
      %464 = vst.msk [vmem:[%s456 + $0x38] sm:$0x3] %vm410, %v447
      %465 = vst.msk [vmem:[%s456 + $0x40] sm:$0xff] %vm406, %v448
      %466 = vst.msk [vmem:[%s456 + $0x48] sm:$0xff] %vm406, %v449
      %467 = vst.msk [vmem:[%s456 + $0x50] sm:$0xff] %vm406, %v450
      %468 = vst.msk [vmem:[%s456 + $0x58] sm:$0x3] %vm410, %v451
      %469 = vst.msk [vmem:[%s456 + $0x60] sm:$0xff] %vm406, %v452
      %470 = vst.msk [vmem:[%s456 + $0x68] sm:$0xff] %vm406, %v453
      %471 = vst.msk [vmem:[%s456 + $0x70] sm:$0xff] %vm406, %v454
      %472 = vst.msk [vmem:[%s456 + $0x78] sm:$0x3] %vm410, %v455
      %v473 = vld [vmem:[%s3] sm:$0x1]
      %v475 = vlaneseq
      %v476 = vshrl.u32 %v475, 7
      %v477 = vsub.s32 0, %v476
      %v478 = vrot.slane %v473, %v477
      %v480 = vld [vmem:[#allocation2] sm:$0xff]
      %v481 = vld [vmem:[#allocation2 + $0x8] sm:$0xff]
      %v482 = vld [vmem:[#allocation2 + $0x10] sm:$0xff]
      %v483 = vld [vmem:[#allocation2 + $0x20] sm:$0xff]
      %v484 = vld [vmem:[#allocation2 + $0x28] sm:$0xff]
      %v485 = vld [vmem:[#allocation2 + $0x30] sm:$0xff]
      %v486 = vld [vmem:[#allocation2 + $0x40] sm:$0xff]
      %v487 = vld [vmem:[#allocation2 + $0x48] sm:$0xff]
      %v488 = vld [vmem:[#allocation2 + $0x50] sm:$0xff]
      %v489 = vld [vmem:[#allocation2 + $0x60] sm:$0xff]
      %v490 = vld [vmem:[#allocation2 + $0x68] sm:$0xff]
      %v491 = vld [vmem:[#allocation2 + $0x70] sm:$0xff]
      %v492 = vld [vmem:[#allocation2 + $0x80] sm:$0xff]
      %v493 = vld [vmem:[#allocation2 + $0x88] sm:$0xff]
      %v494 = vld [vmem:[#allocation2 + $0x90] sm:$0xff]
      %v495 = vld [vmem:[#allocation2 + $0xa0] sm:$0xff]
      %v496 = vld [vmem:[#allocation2 + $0xa8] sm:$0xff]
      %v497 = vld [vmem:[#allocation2 + $0xb0] sm:$0xff]
      %v498 = vld [vmem:[#allocation2 + $0xc0] sm:$0xff]
      %v499 = vld [vmem:[#allocation2 + $0xc8] sm:$0xff]
      %v500 = vld [vmem:[#allocation2 + $0xd0] sm:$0xff]
      %v501 = vld [vmem:[#allocation2 + $0xe0] sm:$0xff]
      %v502 = vld [vmem:[#allocation2 + $0xe8] sm:$0xff]
      %v503 = vld [vmem:[#allocation2 + $0xf0] sm:$0xff]
      %v504 = vld [vmem:[#allocation2 + $0x100] sm:$0xff]
      %v505 = vld [vmem:[#allocation2 + $0x108] sm:$0xff]
      %v506 = vld [vmem:[#allocation2 + $0x110] sm:$0xff]
      %v507 = vld [vmem:[#allocation2 + $0x120] sm:$0xff]
      %v508 = vld [vmem:[#allocation2 + $0x128] sm:$0xff]
      %v509 = vld [vmem:[#allocation2 + $0x130] sm:$0xff]
      %v510 = vld [vmem:[%s2] sm:$0xf]
      %v512 = vsel %vm406, %v480, 0
      %v515 = vsel %vm406, %v481, 0
      %v518 = vsel %vm406, %v482, 0
      %v521 = vsel %vm406, %v483, 0
      %v524 = vsel %vm406, %v484, 0
      %v527 = vsel %vm406, %v485, 0
      %v530 = vsel %vm406, %v486, 0
      %v533 = vsel %vm406, %v487, 0
      %v536 = vsel %vm406, %v488, 0
      %v539 = vsel %vm406, %v489, 0
      %v542 = vsel %vm406, %v490, 0
      %v545 = vsel %vm406, %v491, 0
      %v548 = vsel %vm406, %v492, 0
      %v551 = vsel %vm406, %v493, 0
      %v554 = vsel %vm406, %v494, 0
      %v557 = vsel %vm406, %v495, 0
      %v560 = vsel %vm406, %v496, 0
      %v563 = vsel %vm406, %v497, 0
      %v566 = vsel %vm406, %v498, 0
      %v569 = vsel %vm406, %v499, 0
      %v572 = vsel %vm406, %v500, 0
      %v575 = vsel %vm406, %v501, 0
      %v578 = vsel %vm406, %v502, 0
      %v581 = vsel %vm406, %v503, 0
      %v584 = vsel %vm406, %v504, 0
      %v587 = vsel %vm406, %v505, 0
      %v590 = vsel %vm406, %v506, 0
      %v593 = vsel %vm406, %v507, 0
      %v596 = vsel %vm406, %v508, 0
      %v599 = vsel %vm406, %v509, 0
      %vm601 = vcmask 1043456
      %v603 = vsel %vm601, %v510, 0
      %605 = vmatprep.subr.mxu0 0.0
      %606 = vmatpush1.msra.mxu0 0.0
      %607 = vmatprep.subr.mxu0 0.0
      %608 = vmatpush1.msra.mxu0 0.0
      %609 = vmatprep.subr.mxu0 0.0
      %610 = vmatpush1.msra.mxu0 0.0
      %611 = vmatprep.subr.mxu0 0.0
      %612 = vmatpush1.msra.mxu0 0.0
      %613 = vmatprep.subr.mxu0 0.0
      %614 = vmatpush1.msra.mxu0 0.0
      %615 = vmatprep.subr.mxu0 0.0
      %616 = vmatpush1.msra.mxu0 0.0
      %617 = vmatprep.subr.mxu0 0.0
      %618 = vmatpush1.msra.mxu0 0.0
      %619 = vmatprep.subr.mxu0 0.0
      %620 = vmatpush1.msra.mxu0 0.0
      %621 = vmatprep.subr.mxu0 0.0
      %622 = vmatpush1.msra.mxu0 0.0
      %623 = vmatprep.subr.mxu0 0.0
      %624 = vmatpush1.msra.mxu0 0.0
      %625 = vmatprep.subr.mxu0 0.0
      %626 = vmatpush1.msra.mxu0 0.0
      %627 = vmatprep.subr.mxu0 0.0
      %628 = vmatpush1.msra.mxu0 0.0
      %629 = vmatprep.subr.mxu0 0.0
      %630 = vmatpush1.msra.mxu0 0.0
      %631 = vmatprep.subr.mxu0 0.0
      %632 = vmatpush1.msra.mxu0 0.0
      %633 = vmatprep.subr.mxu0 0.0
      %634 = vmatpush1.msra.mxu0 0.0
      %635 = vmatprep.subr.mxu0 0.0
      %636 = vmatpush1.msra.mxu0 %v603
      %637 = vmatprep.subr.mxu0 0.0
      %638 = vmatpush2.msra.mxu0 0.0
      %639 = vmatprep.subr.mxu0 0.0
      %640 = vmatpush2.msra.mxu0 0.0
      %641 = vmatprep.subr.mxu0 0.0
      %642 = vmatpush2.msra.mxu0 0.0
      %643 = vmatprep.subr.mxu0 0.0
      %644 = vmatpush2.msra.mxu0 0.0
      %645 = vmatprep.subr.mxu0 0.0
      %646 = vmatpush2.msra.mxu0 0.0
      %647 = vmatprep.subr.mxu0 0.0
      %648 = vmatpush2.msra.mxu0 0.0
      %649 = vmatprep.subr.mxu0 0.0
      %650 = vmatpush2.msra.mxu0 0.0
      %651 = vmatprep.subr.mxu0 0.0
      %652 = vmatpush2.msra.mxu0 0.0
      %653 = vmatprep.subr.mxu0 0.0
      %654 = vmatpush2.msra.mxu0 0.0
      %655 = vmatprep.subr.mxu0 0.0
      %656 = vmatpush2.msra.mxu0 0.0
      %657 = vmatprep.subr.mxu0 0.0
      %658 = vmatpush2.msra.mxu0 0.0
      %659 = vmatprep.subr.mxu0 0.0
      %660 = vmatpush2.msra.mxu0 0.0
      %661 = vmatprep.subr.mxu0 0.0
      %662 = vmatpush2.msra.mxu0 0.0
      %663 = vmatprep.subr.mxu0 0.0
      %664 = vmatpush2.msra.mxu0 0.0
      %665 = vmatprep.subr.mxu0 0.0
      %666 = vmatpush2.msra.mxu0 0.0
      %667 = vmatprep.subr.mxu0 0.0
      %668 = vmatpush2.msra.mxu0 0.0
      %669 = vmatprep.mubr.f32.mxu0 0.0
      %670 = vmatmul.mubr.f32.gmra.mxu0 %v512
      %v671 = vpop.f32.mrf.mxu0
      %v672 = vadd.f32 0.0, %v671
      %v673 = vpop.f32.mrf.mxu0
      %674 = vmatprep.mubr.f32.mxu0 0.0
      %675 = vmatmul.mubr.f32.gmra.mxu0 %v515
      %v676 = vpop.f32.mrf.mxu0
      %v677 = vadd.f32 0.0, %v676
      %v678 = vpop.f32.mrf.mxu0
      %679 = vmatprep.mubr.f32.mxu0 0.0
      %680 = vmatmul.mubr.f32.gmra.mxu0 %v518
      %v681 = vpop.f32.mrf.mxu0
      %v682 = vadd.f32 0.0, %v681
      %v683 = vpop.f32.mrf.mxu0
      %684 = vmatprep.mubr.f32.mxu0 0.0
      %685 = vmatmul.mubr.f32.gmra.mxu0 %v521
      %v686 = vpop.f32.mrf.mxu0
      %v687 = vadd.f32 0.0, %v686
      %v688 = vpop.f32.mrf.mxu0
      %689 = vmatprep.mubr.f32.mxu0 0.0
      %690 = vmatmul.mubr.f32.gmra.mxu0 %v524
      %v691 = vpop.f32.mrf.mxu0
      %v692 = vadd.f32 0.0, %v691
      %v693 = vpop.f32.mrf.mxu0
      %694 = vmatprep.mubr.f32.mxu0 0.0
      %695 = vmatmul.mubr.f32.gmra.mxu0 %v527
      %v696 = vpop.f32.mrf.mxu0
      %v697 = vadd.f32 0.0, %v696
      %v698 = vpop.f32.mrf.mxu0
      %699 = vmatprep.mubr.f32.mxu0 0.0
      %700 = vmatmul.mubr.f32.gmra.mxu0 %v530
      %v701 = vpop.f32.mrf.mxu0
      %v702 = vadd.f32 0.0, %v701
      %v703 = vpop.f32.mrf.mxu0
      %704 = vmatprep.mubr.f32.mxu0 0.0
      %705 = vmatmul.mubr.f32.gmra.mxu0 %v533
      %v706 = vpop.f32.mrf.mxu0
      %v707 = vadd.f32 0.0, %v706
      %v708 = vpop.f32.mrf.mxu0
      %709 = vmatprep.mubr.f32.mxu0 0.0
      %710 = vmatmul.mubr.f32.gmra.mxu0 %v536
      %v711 = vpop.f32.mrf.mxu0
      %v712 = vadd.f32 0.0, %v711
      %v713 = vpop.f32.mrf.mxu0
      %714 = vmatprep.mubr.f32.mxu0 0.0
      %715 = vmatmul.mubr.f32.gmra.mxu0 %v539
      %v716 = vpop.f32.mrf.mxu0
      %v717 = vadd.f32 0.0, %v716
      %v718 = vpop.f32.mrf.mxu0
      %719 = vmatprep.mubr.f32.mxu0 0.0
      %720 = vmatmul.mubr.f32.gmra.mxu0 %v542
      %v721 = vpop.f32.mrf.mxu0
      %v722 = vadd.f32 0.0, %v721
      %v723 = vpop.f32.mrf.mxu0
      %724 = vmatprep.mubr.f32.mxu0 0.0
      %725 = vmatmul.mubr.f32.gmra.mxu0 %v545
      %v726 = vpop.f32.mrf.mxu0
      %v727 = vadd.f32 0.0, %v726
      %v728 = vpop.f32.mrf.mxu0
      %729 = vmatprep.mubr.f32.mxu0 0.0
      %730 = vmatmul.mubr.f32.gmra.mxu0 %v548
      %v731 = vpop.f32.mrf.mxu0
      %v732 = vadd.f32 0.0, %v731
      %v733 = vpop.f32.mrf.mxu0
      %734 = vmatprep.mubr.f32.mxu0 0.0
      %735 = vmatmul.mubr.f32.gmra.mxu0 %v551
      %v736 = vpop.f32.mrf.mxu0
      %v737 = vadd.f32 0.0, %v736
      %v738 = vpop.f32.mrf.mxu0
      %739 = vmatprep.mubr.f32.mxu0 0.0
      %740 = vmatmul.mubr.f32.gmra.mxu0 %v554
      %v741 = vpop.f32.mrf.mxu0
      %v742 = vadd.f32 0.0, %v741
      %v743 = vpop.f32.mrf.mxu0
      %744 = vmatprep.mubr.f32.mxu0 0.0
      %745 = vmatmul.mubr.f32.gmra.mxu0 %v557
      %v746 = vpop.f32.mrf.mxu0
      %v747 = vadd.f32 0.0, %v746
      %v748 = vpop.f32.mrf.mxu0
      %749 = vmatprep.mubr.f32.mxu0 0.0
      %750 = vmatmul.mubr.f32.gmra.mxu0 %v560
      %v751 = vpop.f32.mrf.mxu0
      %v752 = vadd.f32 0.0, %v751
      %v753 = vpop.f32.mrf.mxu0
      %754 = vmatprep.mubr.f32.mxu0 0.0
      %755 = vmatmul.mubr.f32.gmra.mxu0 %v563
      %v756 = vpop.f32.mrf.mxu0
      %v757 = vadd.f32 0.0, %v756
      %v758 = vpop.f32.mrf.mxu0
      %759 = vmatprep.mubr.f32.mxu0 0.0
      %760 = vmatmul.mubr.f32.gmra.mxu0 %v566
      %v761 = vpop.f32.mrf.mxu0
      %v762 = vadd.f32 0.0, %v761
      %v763 = vpop.f32.mrf.mxu0
      %764 = vmatprep.mubr.f32.mxu0 0.0
      %765 = vmatmul.mubr.f32.gmra.mxu0 %v569
      %v766 = vpop.f32.mrf.mxu0
      %v767 = vadd.f32 0.0, %v766
      %v768 = vpop.f32.mrf.mxu0
      %769 = vmatprep.mubr.f32.mxu0 0.0
      %770 = vmatmul.mubr.f32.gmra.mxu0 %v572
      %v771 = vpop.f32.mrf.mxu0
      %v772 = vadd.f32 0.0, %v771
      %v773 = vpop.f32.mrf.mxu0
      %774 = vmatprep.mubr.f32.mxu0 0.0
      %775 = vmatmul.mubr.f32.gmra.mxu0 %v575
      %v776 = vpop.f32.mrf.mxu0
      %v777 = vadd.f32 0.0, %v776
      %v778 = vpop.f32.mrf.mxu0
      %779 = vmatprep.mubr.f32.mxu0 0.0
      %780 = vmatmul.mubr.f32.gmra.mxu0 %v578
      %v781 = vpop.f32.mrf.mxu0
      %v782 = vadd.f32 0.0, %v781
      %v783 = vpop.f32.mrf.mxu0
      %784 = vmatprep.mubr.f32.mxu0 0.0
      %785 = vmatmul.mubr.f32.gmra.mxu0 %v581
      %v786 = vpop.f32.mrf.mxu0
      %v787 = vadd.f32 0.0, %v786
      %v788 = vpop.f32.mrf.mxu0
      %789 = vmatprep.mubr.f32.mxu0 0.0
      %790 = vmatmul.mubr.f32.gmra.mxu0 %v584
      %v791 = vpop.f32.mrf.mxu0
      %v792 = vadd.f32 0.0, %v791
      %v793 = vpop.f32.mrf.mxu0
      %794 = vmatprep.mubr.f32.mxu0 0.0
      %795 = vmatmul.mubr.f32.gmra.mxu0 %v587
      %v796 = vpop.f32.mrf.mxu0
      %v797 = vadd.f32 0.0, %v796
      %v798 = vpop.f32.mrf.mxu0
      %799 = vmatprep.mubr.f32.mxu0 0.0
      %800 = vmatmul.mubr.f32.gmra.mxu0 %v590
      %v801 = vpop.f32.mrf.mxu0
      %v802 = vadd.f32 0.0, %v801
      %v803 = vpop.f32.mrf.mxu0
      %804 = vmatprep.mubr.f32.mxu0 0.0
      %805 = vmatmul.mubr.f32.gmra.mxu0 %v593
      %v806 = vpop.f32.mrf.mxu0
      %v807 = vadd.f32 0.0, %v806
      %v808 = vpop.f32.mrf.mxu0
      %809 = vmatprep.mubr.f32.mxu0 0.0
      %810 = vmatmul.mubr.f32.gmra.mxu0 %v596
      %v811 = vpop.f32.mrf.mxu0
      %v812 = vadd.f32 0.0, %v811
      %v813 = vpop.f32.mrf.mxu0
      %814 = vmatprep.mubr.f32.mxu0 0.0
      %815 = vmatmul.mubr.f32.gmra.mxu0 %v599
      %v816 = vpop.f32.mrf.mxu0
      %v817 = vadd.f32 0.0, %v816
      %v818 = vpop.f32.mrf.mxu0
      %819 = vdwg.mxu0
      %v820 = vadd.f32 %v478, %v672
      %v821 = vadd.f32 %v478, %v677
      %v822 = vadd.f32 %v478, %v682
      %v823 = vadd.f32 %v478, %v687
      %v824 = vadd.f32 %v478, %v692
      %v825 = vadd.f32 %v478, %v697
      %v826 = vadd.f32 %v478, %v702
      %v827 = vadd.f32 %v478, %v707
      %v828 = vadd.f32 %v478, %v712
      %v829 = vadd.f32 %v478, %v717
      %v830 = vadd.f32 %v478, %v722
      %v831 = vadd.f32 %v478, %v727
      %v832 = vadd.f32 %v478, %v732
      %v833 = vadd.f32 %v478, %v737
      %v834 = vadd.f32 %v478, %v742
      %v835 = vadd.f32 %v478, %v747
      %v836 = vadd.f32 %v478, %v752
      %v837 = vadd.f32 %v478, %v757
      %v838 = vadd.f32 %v478, %v762
      %v839 = vadd.f32 %v478, %v767
      %v840 = vadd.f32 %v478, %v772
      %v841 = vadd.f32 %v478, %v777
      %v842 = vadd.f32 %v478, %v782
      %v843 = vadd.f32 %v478, %v787
      %v844 = vadd.f32 %v478, %v792
      %v845 = vadd.f32 %v478, %v797
      %v846 = vadd.f32 %v478, %v802
      %v847 = vadd.f32 %v478, %v807
      %v848 = vadd.f32 %v478, %v812
      %v849 = vadd.f32 %v478, %v817
      %v850 = vld [vmem:[#allocation2 + $0x1] sm:$0xff]
      %v851 = vld [vmem:[#allocation2 + $0x9] sm:$0xff]
      %v852 = vld [vmem:[#allocation2 + $0x11] sm:$0xff]
      %v853 = vld [vmem:[#allocation2 + $0x21] sm:$0xff]
      %v854 = vld [vmem:[#allocation2 + $0x29] sm:$0xff]
      %v855 = vld [vmem:[#allocation2 + $0x31] sm:$0xff]
      %v856 = vld [vmem:[#allocation2 + $0x41] sm:$0xff]
      %v857 = vld [vmem:[#allocation2 + $0x49] sm:$0xff]
      %v858 = vld [vmem:[#allocation2 + $0x51] sm:$0xff]
      %v859 = vld [vmem:[#allocation2 + $0x61] sm:$0xff]
      %v860 = vld [vmem:[#allocation2 + $0x69] sm:$0xff]
      %v861 = vld [vmem:[#allocation2 + $0x71] sm:$0xff]
      %v862 = vld [vmem:[#allocation2 + $0x81] sm:$0xff]
      %v863 = vld [vmem:[#allocation2 + $0x89] sm:$0xff]
      %v864 = vld [vmem:[#allocation2 + $0x91] sm:$0xff]
      %v865 = vld [vmem:[#allocation2 + $0xa1] sm:$0xff]
      %v866 = vld [vmem:[#allocation2 + $0xa9] sm:$0xff]
      %v867 = vld [vmem:[#allocation2 + $0xb1] sm:$0xff]
      %v868 = vld [vmem:[#allocation2 + $0xc1] sm:$0xff]
      %v869 = vld [vmem:[#allocation2 + $0xc9] sm:$0xff]
      %v870 = vld [vmem:[#allocation2 + $0xd1] sm:$0xff]
      %v871 = vld [vmem:[#allocation2 + $0xe1] sm:$0xff]
      %v872 = vld [vmem:[#allocation2 + $0xe9] sm:$0xff]
      %v873 = vld [vmem:[#allocation2 + $0xf1] sm:$0xff]
      %v874 = vld [vmem:[#allocation2 + $0x101] sm:$0xff]
      %v875 = vld [vmem:[#allocation2 + $0x109] sm:$0xff]
      %v876 = vld [vmem:[#allocation2 + $0x111] sm:$0xff]
      %v877 = vld [vmem:[#allocation2 + $0x121] sm:$0xff]
      %v878 = vld [vmem:[#allocation2 + $0x129] sm:$0xff]
      %v879 = vld [vmem:[#allocation2 + $0x131] sm:$0xff]
      %s880 = scalar_lea.vmem %s2, 4
      %v881 = vld [vmem:[%s880] sm:$0xf]
      %v883 = vsel %vm406, %v850, 0
      %v886 = vsel %vm406, %v851, 0
      %v889 = vsel %vm406, %v852, 0
      %v892 = vsel %vm406, %v853, 0
      %v895 = vsel %vm406, %v854, 0
      %v898 = vsel %vm406, %v855, 0
      %v901 = vsel %vm406, %v856, 0
      %v904 = vsel %vm406, %v857, 0
      %v907 = vsel %vm406, %v858, 0
      %v910 = vsel %vm406, %v859, 0
      %v913 = vsel %vm406, %v860, 0
      %v916 = vsel %vm406, %v861, 0
      %v919 = vsel %vm406, %v862, 0
      %v922 = vsel %vm406, %v863, 0
      %v925 = vsel %vm406, %v864, 0
      %v928 = vsel %vm406, %v865, 0
      %v931 = vsel %vm406, %v866, 0
      %v934 = vsel %vm406, %v867, 0
      %v937 = vsel %vm406, %v868, 0
      %v940 = vsel %vm406, %v869, 0
      %v943 = vsel %vm406, %v870, 0
      %v946 = vsel %vm406, %v871, 0
      %v949 = vsel %vm406, %v872, 0
      %v952 = vsel %vm406, %v873, 0
      %v955 = vsel %vm406, %v874, 0
      %v958 = vsel %vm406, %v875, 0
      %v961 = vsel %vm406, %v876, 0
      %v964 = vsel %vm406, %v877, 0
      %v967 = vsel %vm406, %v878, 0
      %v970 = vsel %vm406, %v879, 0
      %v973 = vsel %vm601, %v881, 0
      %975 = vmatprep.subr.mxu0 0.0
      %976 = vmatpush1.msra.mxu0 0.0
      %977 = vmatprep.subr.mxu0 0.0
      %978 = vmatpush1.msra.mxu0 0.0
      %979 = vmatprep.subr.mxu0 0.0
      %980 = vmatpush1.msra.mxu0 0.0
      %981 = vmatprep.subr.mxu0 0.0
      %982 = vmatpush1.msra.mxu0 0.0
      %983 = vmatprep.subr.mxu0 0.0
      %984 = vmatpush1.msra.mxu0 0.0
      %985 = vmatprep.subr.mxu0 0.0
      %986 = vmatpush1.msra.mxu0 0.0
      %987 = vmatprep.subr.mxu0 0.0
      %988 = vmatpush1.msra.mxu0 0.0
      %989 = vmatprep.subr.mxu0 0.0
      %990 = vmatpush1.msra.mxu0 0.0
      %991 = vmatprep.subr.mxu0 0.0
      %992 = vmatpush1.msra.mxu0 0.0
      %993 = vmatprep.subr.mxu0 0.0
      %994 = vmatpush1.msra.mxu0 0.0
      %995 = vmatprep.subr.mxu0 0.0
      %996 = vmatpush1.msra.mxu0 0.0
      %997 = vmatprep.subr.mxu0 0.0
      %998 = vmatpush1.msra.mxu0 0.0
      %999 = vmatprep.subr.mxu0 0.0
      %1000 = vmatpush1.msra.mxu0 0.0
      %1001 = vmatprep.subr.mxu0 0.0
      %1002 = vmatpush1.msra.mxu0 0.0
      %1003 = vmatprep.subr.mxu0 0.0
      %1004 = vmatpush1.msra.mxu0 0.0
      %1005 = vmatprep.subr.mxu0 0.0
      %1006 = vmatpush1.msra.mxu0 %v973
      %1007 = vmatprep.subr.mxu0 0.0
      %1008 = vmatpush2.msra.mxu0 0.0
      %1009 = vmatprep.subr.mxu0 0.0
      %1010 = vmatpush2.msra.mxu0 0.0
      %1011 = vmatprep.subr.mxu0 0.0
      %1012 = vmatpush2.msra.mxu0 0.0
      %1013 = vmatprep.subr.mxu0 0.0
      %1014 = vmatpush2.msra.mxu0 0.0
      %1015 = vmatprep.subr.mxu0 0.0
      %1016 = vmatpush2.msra.mxu0 0.0
      %1017 = vmatprep.subr.mxu0 0.0
      %1018 = vmatpush2.msra.mxu0 0.0
      %1019 = vmatprep.subr.mxu0 0.0
      %1020 = vmatpush2.msra.mxu0 0.0
      %1021 = vmatprep.subr.mxu0 0.0
      %1022 = vmatpush2.msra.mxu0 0.0
      %1023 = vmatprep.subr.mxu0 0.0
      %1024 = vmatpush2.msra.mxu0 0.0
      %1025 = vmatprep.subr.mxu0 0.0
      %1026 = vmatpush2.msra.mxu0 0.0
      %1027 = vmatprep.subr.mxu0 0.0
      %1028 = vmatpush2.msra.mxu0 0.0
      %1029 = vmatprep.subr.mxu0 0.0
      %1030 = vmatpush2.msra.mxu0 0.0
      %1031 = vmatprep.subr.mxu0 0.0
      %1032 = vmatpush2.msra.mxu0 0.0
      %1033 = vmatprep.subr.mxu0 0.0
      %1034 = vmatpush2.msra.mxu0 0.0
      %1035 = vmatprep.subr.mxu0 0.0
      %1036 = vmatpush2.msra.mxu0 0.0
      %1037 = vmatprep.subr.mxu0 0.0
      %1038 = vmatpush2.msra.mxu0 0.0
      %1039 = vmatprep.mubr.f32.mxu0 0.0
      %1040 = vmatmul.mubr.f32.gmra.mxu0 %v883
      %v1041 = vpop.f32.mrf.mxu0
      %v1042 = vadd.f32 0.0, %v1041
      %v1043 = vpop.f32.mrf.mxu0
      %1044 = vmatprep.mubr.f32.mxu0 0.0
      %1045 = vmatmul.mubr.f32.gmra.mxu0 %v886
      %v1046 = vpop.f32.mrf.mxu0
      %v1047 = vadd.f32 0.0, %v1046
      %v1048 = vpop.f32.mrf.mxu0
      %1049 = vmatprep.mubr.f32.mxu0 0.0
      %1050 = vmatmul.mubr.f32.gmra.mxu0 %v889
      %v1051 = vpop.f32.mrf.mxu0
      %v1052 = vadd.f32 0.0, %v1051
      %v1053 = vpop.f32.mrf.mxu0
      %1054 = vmatprep.mubr.f32.mxu0 0.0
      %1055 = vmatmul.mubr.f32.gmra.mxu0 %v892
      %v1056 = vpop.f32.mrf.mxu0
      %v1057 = vadd.f32 0.0, %v1056
      %v1058 = vpop.f32.mrf.mxu0
      %1059 = vmatprep.mubr.f32.mxu0 0.0
      %1060 = vmatmul.mubr.f32.gmra.mxu0 %v895
      %v1061 = vpop.f32.mrf.mxu0
      %v1062 = vadd.f32 0.0, %v1061
      %v1063 = vpop.f32.mrf.mxu0
      %1064 = vmatprep.mubr.f32.mxu0 0.0
      %1065 = vmatmul.mubr.f32.gmra.mxu0 %v898
      %v1066 = vpop.f32.mrf.mxu0
      %v1067 = vadd.f32 0.0, %v1066
      %v1068 = vpop.f32.mrf.mxu0
      %1069 = vmatprep.mubr.f32.mxu0 0.0
      %1070 = vmatmul.mubr.f32.gmra.mxu0 %v901
      %v1071 = vpop.f32.mrf.mxu0
      %v1072 = vadd.f32 0.0, %v1071
      %v1073 = vpop.f32.mrf.mxu0
      %1074 = vmatprep.mubr.f32.mxu0 0.0
      %1075 = vmatmul.mubr.f32.gmra.mxu0 %v904
      %v1076 = vpop.f32.mrf.mxu0
      %v1077 = vadd.f32 0.0, %v1076
      %v1078 = vpop.f32.mrf.mxu0
      %1079 = vmatprep.mubr.f32.mxu0 0.0
      %1080 = vmatmul.mubr.f32.gmra.mxu0 %v907
      %v1081 = vpop.f32.mrf.mxu0
      %v1082 = vadd.f32 0.0, %v1081
      %v1083 = vpop.f32.mrf.mxu0
      %1084 = vmatprep.mubr.f32.mxu0 0.0
      %1085 = vmatmul.mubr.f32.gmra.mxu0 %v910
      %v1086 = vpop.f32.mrf.mxu0
      %v1087 = vadd.f32 0.0, %v1086
      %v1088 = vpop.f32.mrf.mxu0
      %1089 = vmatprep.mubr.f32.mxu0 0.0
      %1090 = vmatmul.mubr.f32.gmra.mxu0 %v913
      %v1091 = vpop.f32.mrf.mxu0
      %v1092 = vadd.f32 0.0, %v1091
      %v1093 = vpop.f32.mrf.mxu0
      %1094 = vmatprep.mubr.f32.mxu0 0.0
      %1095 = vmatmul.mubr.f32.gmra.mxu0 %v916
      %v1096 = vpop.f32.mrf.mxu0
      %v1097 = vadd.f32 0.0, %v1096
      %v1098 = vpop.f32.mrf.mxu0
      %1099 = vmatprep.mubr.f32.mxu0 0.0
      %1100 = vmatmul.mubr.f32.gmra.mxu0 %v919
      %v1101 = vpop.f32.mrf.mxu0
      %v1102 = vadd.f32 0.0, %v1101
      %v1103 = vpop.f32.mrf.mxu0
      %1104 = vmatprep.mubr.f32.mxu0 0.0
      %1105 = vmatmul.mubr.f32.gmra.mxu0 %v922
      %v1106 = vpop.f32.mrf.mxu0
      %v1107 = vadd.f32 0.0, %v1106
      %v1108 = vpop.f32.mrf.mxu0
      %1109 = vmatprep.mubr.f32.mxu0 0.0
      %1110 = vmatmul.mubr.f32.gmra.mxu0 %v925
      %v1111 = vpop.f32.mrf.mxu0
      %v1112 = vadd.f32 0.0, %v1111
      %v1113 = vpop.f32.mrf.mxu0
      %1114 = vmatprep.mubr.f32.mxu0 0.0
      %1115 = vmatmul.mubr.f32.gmra.mxu0 %v928
      %v1116 = vpop.f32.mrf.mxu0
      %v1117 = vadd.f32 0.0, %v1116
      %v1118 = vpop.f32.mrf.mxu0
      %1119 = vmatprep.mubr.f32.mxu0 0.0
      %1120 = vmatmul.mubr.f32.gmra.mxu0 %v931
      %v1121 = vpop.f32.mrf.mxu0
      %v1122 = vadd.f32 0.0, %v1121
      %v1123 = vpop.f32.mrf.mxu0
      %1124 = vmatprep.mubr.f32.mxu0 0.0
      %1125 = vmatmul.mubr.f32.gmra.mxu0 %v934
      %v1126 = vpop.f32.mrf.mxu0
      %v1127 = vadd.f32 0.0, %v1126
      %v1128 = vpop.f32.mrf.mxu0
      %1129 = vmatprep.mubr.f32.mxu0 0.0
      %1130 = vmatmul.mubr.f32.gmra.mxu0 %v937
      %v1131 = vpop.f32.mrf.mxu0
      %v1132 = vadd.f32 0.0, %v1131
      %v1133 = vpop.f32.mrf.mxu0
      %1134 = vmatprep.mubr.f32.mxu0 0.0
      %1135 = vmatmul.mubr.f32.gmra.mxu0 %v940
      %v1136 = vpop.f32.mrf.mxu0
      %v1137 = vadd.f32 0.0, %v1136
      %v1138 = vpop.f32.mrf.mxu0
      %1139 = vmatprep.mubr.f32.mxu0 0.0
      %1140 = vmatmul.mubr.f32.gmra.mxu0 %v943
      %v1141 = vpop.f32.mrf.mxu0
      %v1142 = vadd.f32 0.0, %v1141
      %v1143 = vpop.f32.mrf.mxu0
      %1144 = vmatprep.mubr.f32.mxu0 0.0
      %1145 = vmatmul.mubr.f32.gmra.mxu0 %v946
      %v1146 = vpop.f32.mrf.mxu0
      %v1147 = vadd.f32 0.0, %v1146
      %v1148 = vpop.f32.mrf.mxu0
      %1149 = vmatprep.mubr.f32.mxu0 0.0
      %1150 = vmatmul.mubr.f32.gmra.mxu0 %v949
      %v1151 = vpop.f32.mrf.mxu0
      %v1152 = vadd.f32 0.0, %v1151
      %v1153 = vpop.f32.mrf.mxu0
      %1154 = vmatprep.mubr.f32.mxu0 0.0
      %1155 = vmatmul.mubr.f32.gmra.mxu0 %v952
      %v1156 = vpop.f32.mrf.mxu0
      %v1157 = vadd.f32 0.0, %v1156
      %v1158 = vpop.f32.mrf.mxu0
      %1159 = vmatprep.mubr.f32.mxu0 0.0
      %1160 = vmatmul.mubr.f32.gmra.mxu0 %v955
      %v1161 = vpop.f32.mrf.mxu0
      %v1162 = vadd.f32 0.0, %v1161
      %v1163 = vpop.f32.mrf.mxu0
      %1164 = vmatprep.mubr.f32.mxu0 0.0
      %1165 = vmatmul.mubr.f32.gmra.mxu0 %v958
      %v1166 = vpop.f32.mrf.mxu0
      %v1167 = vadd.f32 0.0, %v1166
      %v1168 = vpop.f32.mrf.mxu0
      %1169 = vmatprep.mubr.f32.mxu0 0.0
      %1170 = vmatmul.mubr.f32.gmra.mxu0 %v961
      %v1171 = vpop.f32.mrf.mxu0
      %v1172 = vadd.f32 0.0, %v1171
      %v1173 = vpop.f32.mrf.mxu0
      %1174 = vmatprep.mubr.f32.mxu0 0.0
      %1175 = vmatmul.mubr.f32.gmra.mxu0 %v964
      %v1176 = vpop.f32.mrf.mxu0
      %v1177 = vadd.f32 0.0, %v1176
      %v1178 = vpop.f32.mrf.mxu0
      %1179 = vmatprep.mubr.f32.mxu0 0.0
      %1180 = vmatmul.mubr.f32.gmra.mxu0 %v967
      %v1181 = vpop.f32.mrf.mxu0
      %v1182 = vadd.f32 0.0, %v1181
      %v1183 = vpop.f32.mrf.mxu0
      %1184 = vmatprep.mubr.f32.mxu0 0.0
      %1185 = vmatmul.mubr.f32.gmra.mxu0 %v970
      %v1186 = vpop.f32.mrf.mxu0
      %v1187 = vadd.f32 0.0, %v1186
      %v1188 = vpop.f32.mrf.mxu0
      %1189 = vdwg.mxu0
      %v1190 = vadd.f32 %v820, %v1042
      %v1191 = vadd.f32 %v821, %v1047
      %v1192 = vadd.f32 %v822, %v1052
      %v1193 = vadd.f32 %v823, %v1057
      %v1194 = vadd.f32 %v824, %v1062
      %v1195 = vadd.f32 %v825, %v1067
      %v1196 = vadd.f32 %v826, %v1072
      %v1197 = vadd.f32 %v827, %v1077
      %v1198 = vadd.f32 %v828, %v1082
      %v1199 = vadd.f32 %v829, %v1087
      %v1200 = vadd.f32 %v830, %v1092
      %v1201 = vadd.f32 %v831, %v1097
      %v1202 = vadd.f32 %v832, %v1102
      %v1203 = vadd.f32 %v833, %v1107
      %v1204 = vadd.f32 %v834, %v1112
      %v1205 = vadd.f32 %v835, %v1117
      %v1206 = vadd.f32 %v836, %v1122
      %v1207 = vadd.f32 %v837, %v1127
      %v1208 = vadd.f32 %v838, %v1132
      %v1209 = vadd.f32 %v839, %v1137
      %v1210 = vadd.f32 %v840, %v1142
      %v1211 = vadd.f32 %v841, %v1147
      %v1212 = vadd.f32 %v842, %v1152
      %v1213 = vadd.f32 %v843, %v1157
      %v1214 = vadd.f32 %v844, %v1162
      %v1215 = vadd.f32 %v845, %v1167
      %v1216 = vadd.f32 %v846, %v1172
      %v1217 = vadd.f32 %v847, %v1177
      %v1218 = vadd.f32 %v848, %v1182
      %v1219 = vadd.f32 %v849, %v1187
      %v1220 = vld [vmem:[#allocation2 + $0x2] sm:$0xff]
      %v1221 = vld [vmem:[#allocation2 + $0xa] sm:$0xff]
      %v1222 = vld [vmem:[#allocation2 + $0x12] sm:$0xff]
      %v1223 = vld [vmem:[#allocation2 + $0x22] sm:$0xff]
      %v1224 = vld [vmem:[#allocation2 + $0x2a] sm:$0xff]
      %v1225 = vld [vmem:[#allocation2 + $0x32] sm:$0xff]
      %v1226 = vld [vmem:[#allocation2 + $0x42] sm:$0xff]
      %v1227 = vld [vmem:[#allocation2 + $0x4a] sm:$0xff]
      %v1228 = vld [vmem:[#allocation2 + $0x52] sm:$0xff]
      %v1229 = vld [vmem:[#allocation2 + $0x62] sm:$0xff]
      %v1230 = vld [vmem:[#allocation2 + $0x6a] sm:$0xff]
      %v1231 = vld [vmem:[#allocation2 + $0x72] sm:$0xff]
      %v1232 = vld [vmem:[#allocation2 + $0x82] sm:$0xff]
      %v1233 = vld [vmem:[#allocation2 + $0x8a] sm:$0xff]
      %v1234 = vld [vmem:[#allocation2 + $0x92] sm:$0xff]
      %v1235 = vld [vmem:[#allocation2 + $0xa2] sm:$0xff]
      %v1236 = vld [vmem:[#allocation2 + $0xaa] sm:$0xff]
      %v1237 = vld [vmem:[#allocation2 + $0xb2] sm:$0xff]
      %v1238 = vld [vmem:[#allocation2 + $0xc2] sm:$0xff]
      %v1239 = vld [vmem:[#allocation2 + $0xca] sm:$0xff]
      %v1240 = vld [vmem:[#allocation2 + $0xd2] sm:$0xff]
      %v1241 = vld [vmem:[#allocation2 + $0xe2] sm:$0xff]
      %v1242 = vld [vmem:[#allocation2 + $0xea] sm:$0xff]
      %v1243 = vld [vmem:[#allocation2 + $0xf2] sm:$0xff]
      %v1244 = vld [vmem:[#allocation2 + $0x102] sm:$0xff]
      %v1245 = vld [vmem:[#allocation2 + $0x10a] sm:$0xff]
      %v1246 = vld [vmem:[#allocation2 + $0x112] sm:$0xff]
      %v1247 = vld [vmem:[#allocation2 + $0x122] sm:$0xff]
      %v1248 = vld [vmem:[#allocation2 + $0x12a] sm:$0xff]
      %v1249 = vld [vmem:[#allocation2 + $0x132] sm:$0xff]
      %s1250 = scalar_lea.vmem %s2, 8
      %v1251 = vld [vmem:[%s1250] sm:$0xf]
      %v1253 = vsel %vm406, %v1220, 0
      %v1256 = vsel %vm406, %v1221, 0
      %v1259 = vsel %vm406, %v1222, 0
      %v1262 = vsel %vm406, %v1223, 0
      %v1265 = vsel %vm406, %v1224, 0
      %v1268 = vsel %vm406, %v1225, 0
      %v1271 = vsel %vm406, %v1226, 0
      %v1274 = vsel %vm406, %v1227, 0
      %v1277 = vsel %vm406, %v1228, 0
      %v1280 = vsel %vm406, %v1229, 0
      %v1283 = vsel %vm406, %v1230, 0
      %v1286 = vsel %vm406, %v1231, 0
      %v1289 = vsel %vm406, %v1232, 0
      %v1292 = vsel %vm406, %v1233, 0
      %v1295 = vsel %vm406, %v1234, 0
      %v1298 = vsel %vm406, %v1235, 0
      %v1301 = vsel %vm406, %v1236, 0
      %v1304 = vsel %vm406, %v1237, 0
      %v1307 = vsel %vm406, %v1238, 0
      %v1310 = vsel %vm406, %v1239, 0
      %v1313 = vsel %vm406, %v1240, 0
      %v1316 = vsel %vm406, %v1241, 0
      %v1319 = vsel %vm406, %v1242, 0
      %v1322 = vsel %vm406, %v1243, 0
      %v1325 = vsel %vm406, %v1244, 0
      %v1328 = vsel %vm406, %v1245, 0
      %v1331 = vsel %vm406, %v1246, 0
      %v1334 = vsel %vm406, %v1247, 0
      %v1337 = vsel %vm406, %v1248, 0
      %v1340 = vsel %vm406, %v1249, 0
      %v1343 = vsel %vm601, %v1251, 0
      %1345 = vmatprep.subr.mxu0 0.0
      %1346 = vmatpush1.msra.mxu0 0.0
      %1347 = vmatprep.subr.mxu0 0.0
      %1348 = vmatpush1.msra.mxu0 0.0
      %1349 = vmatprep.subr.mxu0 0.0
      %1350 = vmatpush1.msra.mxu0 0.0
      %1351 = vmatprep.subr.mxu0 0.0
      %1352 = vmatpush1.msra.mxu0 0.0
      %1353 = vmatprep.subr.mxu0 0.0
      %1354 = vmatpush1.msra.mxu0 0.0
      %1355 = vmatprep.subr.mxu0 0.0
      %1356 = vmatpush1.msra.mxu0 0.0
      %1357 = vmatprep.subr.mxu0 0.0
      %1358 = vmatpush1.msra.mxu0 0.0
      %1359 = vmatprep.subr.mxu0 0.0
      %1360 = vmatpush1.msra.mxu0 0.0
      %1361 = vmatprep.subr.mxu0 0.0
      %1362 = vmatpush1.msra.mxu0 0.0
      %1363 = vmatprep.subr.mxu0 0.0
      %1364 = vmatpush1.msra.mxu0 0.0
      %1365 = vmatprep.subr.mxu0 0.0
      %1366 = vmatpush1.msra.mxu0 0.0
      %1367 = vmatprep.subr.mxu0 0.0
      %1368 = vmatpush1.msra.mxu0 0.0
      %1369 = vmatprep.subr.mxu0 0.0
      %1370 = vmatpush1.msra.mxu0 0.0
      %1371 = vmatprep.subr.mxu0 0.0
      %1372 = vmatpush1.msra.mxu0 0.0
      %1373 = vmatprep.subr.mxu0 0.0
      %1374 = vmatpush1.msra.mxu0 0.0
      %1375 = vmatprep.subr.mxu0 0.0
      %1376 = vmatpush1.msra.mxu0 %v1343
      %1377 = vmatprep.subr.mxu0 0.0
      %1378 = vmatpush2.msra.mxu0 0.0
      %1379 = vmatprep.subr.mxu0 0.0
      %1380 = vmatpush2.msra.mxu0 0.0
      %1381 = vmatprep.subr.mxu0 0.0
      %1382 = vmatpush2.msra.mxu0 0.0
      %1383 = vmatprep.subr.mxu0 0.0
      %1384 = vmatpush2.msra.mxu0 0.0
      %1385 = vmatprep.subr.mxu0 0.0
      %1386 = vmatpush2.msra.mxu0 0.0
      %1387 = vmatprep.subr.mxu0 0.0
      %1388 = vmatpush2.msra.mxu0 0.0
      %1389 = vmatprep.subr.mxu0 0.0
      %1390 = vmatpush2.msra.mxu0 0.0
      %1391 = vmatprep.subr.mxu0 0.0
      %1392 = vmatpush2.msra.mxu0 0.0
      %1393 = vmatprep.subr.mxu0 0.0
      %1394 = vmatpush2.msra.mxu0 0.0
      %1395 = vmatprep.subr.mxu0 0.0
      %1396 = vmatpush2.msra.mxu0 0.0
      %1397 = vmatprep.subr.mxu0 0.0
      %1398 = vmatpush2.msra.mxu0 0.0
      %1399 = vmatprep.subr.mxu0 0.0
      %1400 = vmatpush2.msra.mxu0 0.0
      %1401 = vmatprep.subr.mxu0 0.0
      %1402 = vmatpush2.msra.mxu0 0.0
      %1403 = vmatprep.subr.mxu0 0.0
      %1404 = vmatpush2.msra.mxu0 0.0
      %1405 = vmatprep.subr.mxu0 0.0
      %1406 = vmatpush2.msra.mxu0 0.0
      %1407 = vmatprep.subr.mxu0 0.0
      %1408 = vmatpush2.msra.mxu0 0.0
      %1409 = vmatprep.mubr.f32.mxu0 0.0
      %1410 = vmatmul.mubr.f32.gmra.mxu0 %v1253
      %v1411 = vpop.f32.mrf.mxu0
      %v1412 = vadd.f32 0.0, %v1411
      %v1413 = vpop.f32.mrf.mxu0
      %1414 = vmatprep.mubr.f32.mxu0 0.0
      %1415 = vmatmul.mubr.f32.gmra.mxu0 %v1256
      %v1416 = vpop.f32.mrf.mxu0
      %v1417 = vadd.f32 0.0, %v1416
      %v1418 = vpop.f32.mrf.mxu0
      %1419 = vmatprep.mubr.f32.mxu0 0.0
      %1420 = vmatmul.mubr.f32.gmra.mxu0 %v1259
      %v1421 = vpop.f32.mrf.mxu0
      %v1422 = vadd.f32 0.0, %v1421
      %v1423 = vpop.f32.mrf.mxu0
      %1424 = vmatprep.mubr.f32.mxu0 0.0
      %1425 = vmatmul.mubr.f32.gmra.mxu0 %v1262
      %v1426 = vpop.f32.mrf.mxu0
      %v1427 = vadd.f32 0.0, %v1426
      %v1428 = vpop.f32.mrf.mxu0
      %1429 = vmatprep.mubr.f32.mxu0 0.0
      %1430 = vmatmul.mubr.f32.gmra.mxu0 %v1265
      %v1431 = vpop.f32.mrf.mxu0
      %v1432 = vadd.f32 0.0, %v1431
      %v1433 = vpop.f32.mrf.mxu0
      %1434 = vmatprep.mubr.f32.mxu0 0.0
      %1435 = vmatmul.mubr.f32.gmra.mxu0 %v1268
      %v1436 = vpop.f32.mrf.mxu0
      %v1437 = vadd.f32 0.0, %v1436
      %v1438 = vpop.f32.mrf.mxu0
      %1439 = vmatprep.mubr.f32.mxu0 0.0
      %1440 = vmatmul.mubr.f32.gmra.mxu0 %v1271
      %v1441 = vpop.f32.mrf.mxu0
      %v1442 = vadd.f32 0.0, %v1441
      %v1443 = vpop.f32.mrf.mxu0
      %1444 = vmatprep.mubr.f32.mxu0 0.0
      %1445 = vmatmul.mubr.f32.gmra.mxu0 %v1274
      %v1446 = vpop.f32.mrf.mxu0
      %v1447 = vadd.f32 0.0, %v1446
      %v1448 = vpop.f32.mrf.mxu0
      %1449 = vmatprep.mubr.f32.mxu0 0.0
      %1450 = vmatmul.mubr.f32.gmra.mxu0 %v1277
      %v1451 = vpop.f32.mrf.mxu0
      %v1452 = vadd.f32 0.0, %v1451
      %v1453 = vpop.f32.mrf.mxu0
      %1454 = vmatprep.mubr.f32.mxu0 0.0
      %1455 = vmatmul.mubr.f32.gmra.mxu0 %v1280
      %v1456 = vpop.f32.mrf.mxu0
      %v1457 = vadd.f32 0.0, %v1456
      %v1458 = vpop.f32.mrf.mxu0
      %1459 = vmatprep.mubr.f32.mxu0 0.0
      %1460 = vmatmul.mubr.f32.gmra.mxu0 %v1283
      %v1461 = vpop.f32.mrf.mxu0
      %v1462 = vadd.f32 0.0, %v1461
      %v1463 = vpop.f32.mrf.mxu0
      %1464 = vmatprep.mubr.f32.mxu0 0.0
      %1465 = vmatmul.mubr.f32.gmra.mxu0 %v1286
      %v1466 = vpop.f32.mrf.mxu0
      %v1467 = vadd.f32 0.0, %v1466
      %v1468 = vpop.f32.mrf.mxu0
      %1469 = vmatprep.mubr.f32.mxu0 0.0
      %1470 = vmatmul.mubr.f32.gmra.mxu0 %v1289
      %v1471 = vpop.f32.mrf.mxu0
      %v1472 = vadd.f32 0.0, %v1471
      %v1473 = vpop.f32.mrf.mxu0
      %1474 = vmatprep.mubr.f32.mxu0 0.0
      %1475 = vmatmul.mubr.f32.gmra.mxu0 %v1292
      %v1476 = vpop.f32.mrf.mxu0
      %v1477 = vadd.f32 0.0, %v1476
      %v1478 = vpop.f32.mrf.mxu0
      %1479 = vmatprep.mubr.f32.mxu0 0.0
      %1480 = vmatmul.mubr.f32.gmra.mxu0 %v1295
      %v1481 = vpop.f32.mrf.mxu0
      %v1482 = vadd.f32 0.0, %v1481
      %v1483 = vpop.f32.mrf.mxu0
      %1484 = vmatprep.mubr.f32.mxu0 0.0
      %1485 = vmatmul.mubr.f32.gmra.mxu0 %v1298
      %v1486 = vpop.f32.mrf.mxu0
      %v1487 = vadd.f32 0.0, %v1486
      %v1488 = vpop.f32.mrf.mxu0
      %1489 = vmatprep.mubr.f32.mxu0 0.0
      %1490 = vmatmul.mubr.f32.gmra.mxu0 %v1301
      %v1491 = vpop.f32.mrf.mxu0
      %v1492 = vadd.f32 0.0, %v1491
      %v1493 = vpop.f32.mrf.mxu0
      %1494 = vmatprep.mubr.f32.mxu0 0.0
      %1495 = vmatmul.mubr.f32.gmra.mxu0 %v1304
      %v1496 = vpop.f32.mrf.mxu0
      %v1497 = vadd.f32 0.0, %v1496
      %v1498 = vpop.f32.mrf.mxu0
      %1499 = vmatprep.mubr.f32.mxu0 0.0
      %1500 = vmatmul.mubr.f32.gmra.mxu0 %v1307
      %v1501 = vpop.f32.mrf.mxu0
      %v1502 = vadd.f32 0.0, %v1501
      %v1503 = vpop.f32.mrf.mxu0
      %1504 = vmatprep.mubr.f32.mxu0 0.0
      %1505 = vmatmul.mubr.f32.gmra.mxu0 %v1310
      %v1506 = vpop.f32.mrf.mxu0
      %v1507 = vadd.f32 0.0, %v1506
      %v1508 = vpop.f32.mrf.mxu0
      %1509 = vmatprep.mubr.f32.mxu0 0.0
      %1510 = vmatmul.mubr.f32.gmra.mxu0 %v1313
      %v1511 = vpop.f32.mrf.mxu0
      %v1512 = vadd.f32 0.0, %v1511
      %v1513 = vpop.f32.mrf.mxu0
      %1514 = vmatprep.mubr.f32.mxu0 0.0
      %1515 = vmatmul.mubr.f32.gmra.mxu0 %v1316
      %v1516 = vpop.f32.mrf.mxu0
      %v1517 = vadd.f32 0.0, %v1516
      %v1518 = vpop.f32.mrf.mxu0
      %1519 = vmatprep.mubr.f32.mxu0 0.0
      %1520 = vmatmul.mubr.f32.gmra.mxu0 %v1319
      %v1521 = vpop.f32.mrf.mxu0
      %v1522 = vadd.f32 0.0, %v1521
      %v1523 = vpop.f32.mrf.mxu0
      %1524 = vmatprep.mubr.f32.mxu0 0.0
      %1525 = vmatmul.mubr.f32.gmra.mxu0 %v1322
      %v1526 = vpop.f32.mrf.mxu0
      %v1527 = vadd.f32 0.0, %v1526
      %v1528 = vpop.f32.mrf.mxu0
      %1529 = vmatprep.mubr.f32.mxu0 0.0
      %1530 = vmatmul.mubr.f32.gmra.mxu0 %v1325
      %v1531 = vpop.f32.mrf.mxu0
      %v1532 = vadd.f32 0.0, %v1531
      %v1533 = vpop.f32.mrf.mxu0
      %1534 = vmatprep.mubr.f32.mxu0 0.0
      %1535 = vmatmul.mubr.f32.gmra.mxu0 %v1328
      %v1536 = vpop.f32.mrf.mxu0
      %v1537 = vadd.f32 0.0, %v1536
      %v1538 = vpop.f32.mrf.mxu0
      %1539 = vmatprep.mubr.f32.mxu0 0.0
      %1540 = vmatmul.mubr.f32.gmra.mxu0 %v1331
      %v1541 = vpop.f32.mrf.mxu0
      %v1542 = vadd.f32 0.0, %v1541
      %v1543 = vpop.f32.mrf.mxu0
      %1544 = vmatprep.mubr.f32.mxu0 0.0
      %1545 = vmatmul.mubr.f32.gmra.mxu0 %v1334
      %v1546 = vpop.f32.mrf.mxu0
      %v1547 = vadd.f32 0.0, %v1546
      %v1548 = vpop.f32.mrf.mxu0
      %1549 = vmatprep.mubr.f32.mxu0 0.0
      %1550 = vmatmul.mubr.f32.gmra.mxu0 %v1337
      %v1551 = vpop.f32.mrf.mxu0
      %v1552 = vadd.f32 0.0, %v1551
      %v1553 = vpop.f32.mrf.mxu0
      %1554 = vmatprep.mubr.f32.mxu0 0.0
      %1555 = vmatmul.mubr.f32.gmra.mxu0 %v1340
      %v1556 = vpop.f32.mrf.mxu0
      %v1557 = vadd.f32 0.0, %v1556
      %v1558 = vpop.f32.mrf.mxu0
      %1559 = vdwg.mxu0
      %v1560 = vadd.f32 %v1190, %v1412
      %v1561 = vadd.f32 %v1191, %v1417
      %v1562 = vadd.f32 %v1192, %v1422
      %v1563 = vadd.f32 %v1193, %v1427
      %v1564 = vadd.f32 %v1194, %v1432
      %v1565 = vadd.f32 %v1195, %v1437
      %v1566 = vadd.f32 %v1196, %v1442
      %v1567 = vadd.f32 %v1197, %v1447
      %v1568 = vadd.f32 %v1198, %v1452
      %v1569 = vadd.f32 %v1199, %v1457
      %v1570 = vadd.f32 %v1200, %v1462
      %v1571 = vadd.f32 %v1201, %v1467
      %v1572 = vadd.f32 %v1202, %v1472
      %v1573 = vadd.f32 %v1203, %v1477
      %v1574 = vadd.f32 %v1204, %v1482
      %v1575 = vadd.f32 %v1205, %v1487
      %v1576 = vadd.f32 %v1206, %v1492
      %v1577 = vadd.f32 %v1207, %v1497
      %v1578 = vadd.f32 %v1208, %v1502
      %v1579 = vadd.f32 %v1209, %v1507
      %v1580 = vadd.f32 %v1210, %v1512
      %v1581 = vadd.f32 %v1211, %v1517
      %v1582 = vadd.f32 %v1212, %v1522
      %v1583 = vadd.f32 %v1213, %v1527
      %v1584 = vadd.f32 %v1214, %v1532
      %v1585 = vadd.f32 %v1215, %v1537
      %v1586 = vadd.f32 %v1216, %v1542
      %v1587 = vadd.f32 %v1217, %v1547
      %v1588 = vadd.f32 %v1218, %v1552
      %v1589 = vadd.f32 %v1219, %v1557
      %s1590 = scalar_lea.vmem [#allocation2], 32
      %v1591 = vld [vmem:[%s1590] sm:$0xff]
      %v1592 = vld [vmem:[%s1590 + $0x8] sm:$0xff]
      %v1593 = vld [vmem:[%s1590 + $0x10] sm:$0xff]
      %v1594 = vld [vmem:[%s1590 + $0x20] sm:$0xff]
      %v1595 = vld [vmem:[%s1590 + $0x28] sm:$0xff]
      %v1596 = vld [vmem:[%s1590 + $0x30] sm:$0xff]
      %v1597 = vld [vmem:[%s1590 + $0x40] sm:$0xff]
      %v1598 = vld [vmem:[%s1590 + $0x48] sm:$0xff]
      %v1599 = vld [vmem:[%s1590 + $0x50] sm:$0xff]
      %v1600 = vld [vmem:[%s1590 + $0x60] sm:$0xff]
      %v1601 = vld [vmem:[%s1590 + $0x68] sm:$0xff]
      %v1602 = vld [vmem:[%s1590 + $0x70] sm:$0xff]
      %v1603 = vld [vmem:[%s1590 + $0x80] sm:$0xff]
      %v1604 = vld [vmem:[%s1590 + $0x88] sm:$0xff]
      %v1605 = vld [vmem:[%s1590 + $0x90] sm:$0xff]
      %v1606 = vld [vmem:[%s1590 + $0xa0] sm:$0xff]
      %v1607 = vld [vmem:[%s1590 + $0xa8] sm:$0xff]
      %v1608 = vld [vmem:[%s1590 + $0xb0] sm:$0xff]
      %v1609 = vld [vmem:[%s1590 + $0xc0] sm:$0xff]
      %v1610 = vld [vmem:[%s1590 + $0xc8] sm:$0xff]
      %v1611 = vld [vmem:[%s1590 + $0xd0] sm:$0xff]
      %v1612 = vld [vmem:[%s1590 + $0xe0] sm:$0xff]
      %v1613 = vld [vmem:[%s1590 + $0xe8] sm:$0xff]
      %v1614 = vld [vmem:[%s1590 + $0xf0] sm:$0xff]
      %v1615 = vld [vmem:[%s1590 + $0x100] sm:$0xff]
      %v1616 = vld [vmem:[%s1590 + $0x108] sm:$0xff]
      %v1617 = vld [vmem:[%s1590 + $0x110] sm:$0xff]
      %v1618 = vld [vmem:[%s1590 + $0x120] sm:$0xff]
      %v1619 = vld [vmem:[%s1590 + $0x128] sm:$0xff]
      %v1620 = vld [vmem:[%s1590 + $0x130] sm:$0xff]
      %s1621 = scalar_lea.vmem %s2, 12
      %v1622 = vld [vmem:[%s1621] sm:$0xf]
      %v1624 = vsel %vm406, %v1591, 0
      %v1627 = vsel %vm406, %v1592, 0
      %v1630 = vsel %vm406, %v1593, 0
      %v1633 = vsel %vm406, %v1594, 0
      %v1636 = vsel %vm406, %v1595, 0
      %v1639 = vsel %vm406, %v1596, 0
      %v1642 = vsel %vm406, %v1597, 0
      %v1645 = vsel %vm406, %v1598, 0
      %v1648 = vsel %vm406, %v1599, 0
      %v1651 = vsel %vm406, %v1600, 0
      %v1654 = vsel %vm406, %v1601, 0
      %v1657 = vsel %vm406, %v1602, 0
      %v1660 = vsel %vm406, %v1603, 0
      %v1663 = vsel %vm406, %v1604, 0
      %v1666 = vsel %vm406, %v1605, 0
      %v1669 = vsel %vm406, %v1606, 0
      %v1672 = vsel %vm406, %v1607, 0
      %v1675 = vsel %vm406, %v1608, 0
      %v1678 = vsel %vm406, %v1609, 0
      %v1681 = vsel %vm406, %v1610, 0
      %v1684 = vsel %vm406, %v1611, 0
      %v1687 = vsel %vm406, %v1612, 0
      %v1690 = vsel %vm406, %v1613, 0
      %v1693 = vsel %vm406, %v1614, 0
      %v1696 = vsel %vm406, %v1615, 0
      %v1699 = vsel %vm406, %v1616, 0
      %v1702 = vsel %vm406, %v1617, 0
      %v1705 = vsel %vm406, %v1618, 0
      %v1708 = vsel %vm406, %v1619, 0
      %v1711 = vsel %vm406, %v1620, 0
      %v1714 = vsel %vm601, %v1622, 0
      %1716 = vmatprep.subr.mxu0 0.0
      %1717 = vmatpush1.msra.mxu0 0.0
      %1718 = vmatprep.subr.mxu0 0.0
      %1719 = vmatpush1.msra.mxu0 0.0
      %1720 = vmatprep.subr.mxu0 0.0
      %1721 = vmatpush1.msra.mxu0 0.0
      %1722 = vmatprep.subr.mxu0 0.0
      %1723 = vmatpush1.msra.mxu0 0.0
      %1724 = vmatprep.subr.mxu0 0.0
      %1725 = vmatpush1.msra.mxu0 0.0
      %1726 = vmatprep.subr.mxu0 0.0
      %1727 = vmatpush1.msra.mxu0 0.0
      %1728 = vmatprep.subr.mxu0 0.0
      %1729 = vmatpush1.msra.mxu0 0.0
      %1730 = vmatprep.subr.mxu0 0.0
      %1731 = vmatpush1.msra.mxu0 0.0
      %1732 = vmatprep.subr.mxu0 0.0
      %1733 = vmatpush1.msra.mxu0 0.0
      %1734 = vmatprep.subr.mxu0 0.0
      %1735 = vmatpush1.msra.mxu0 0.0
      %1736 = vmatprep.subr.mxu0 0.0
      %1737 = vmatpush1.msra.mxu0 0.0
      %1738 = vmatprep.subr.mxu0 0.0
      %1739 = vmatpush1.msra.mxu0 0.0
      %1740 = vmatprep.subr.mxu0 0.0
      %1741 = vmatpush1.msra.mxu0 0.0
      %1742 = vmatprep.subr.mxu0 0.0
      %1743 = vmatpush1.msra.mxu0 0.0
      %1744 = vmatprep.subr.mxu0 0.0
      %1745 = vmatpush1.msra.mxu0 0.0
      %1746 = vmatprep.subr.mxu0 0.0
      %1747 = vmatpush1.msra.mxu0 %v1714
      %1748 = vmatprep.subr.mxu0 0.0
      %1749 = vmatpush2.msra.mxu0 0.0
      %1750 = vmatprep.subr.mxu0 0.0
      %1751 = vmatpush2.msra.mxu0 0.0
      %1752 = vmatprep.subr.mxu0 0.0
      %1753 = vmatpush2.msra.mxu0 0.0
      %1754 = vmatprep.subr.mxu0 0.0
      %1755 = vmatpush2.msra.mxu0 0.0
      %1756 = vmatprep.subr.mxu0 0.0
      %1757 = vmatpush2.msra.mxu0 0.0
      %1758 = vmatprep.subr.mxu0 0.0
      %1759 = vmatpush2.msra.mxu0 0.0
      %1760 = vmatprep.subr.mxu0 0.0
      %1761 = vmatpush2.msra.mxu0 0.0
      %1762 = vmatprep.subr.mxu0 0.0
      %1763 = vmatpush2.msra.mxu0 0.0
      %1764 = vmatprep.subr.mxu0 0.0
      %1765 = vmatpush2.msra.mxu0 0.0
      %1766 = vmatprep.subr.mxu0 0.0
      %1767 = vmatpush2.msra.mxu0 0.0
      %1768 = vmatprep.subr.mxu0 0.0
      %1769 = vmatpush2.msra.mxu0 0.0
      %1770 = vmatprep.subr.mxu0 0.0
      %1771 = vmatpush2.msra.mxu0 0.0
      %1772 = vmatprep.subr.mxu0 0.0
      %1773 = vmatpush2.msra.mxu0 0.0
      %1774 = vmatprep.subr.mxu0 0.0
      %1775 = vmatpush2.msra.mxu0 0.0
      %1776 = vmatprep.subr.mxu0 0.0
      %1777 = vmatpush2.msra.mxu0 0.0
      %1778 = vmatprep.subr.mxu0 0.0
      %1779 = vmatpush2.msra.mxu0 0.0
      %1780 = vmatprep.mubr.f32.mxu0 0.0
      %1781 = vmatmul.mubr.f32.gmra.mxu0 %v1624
      %v1782 = vpop.f32.mrf.mxu0
      %v1783 = vadd.f32 0.0, %v1782
      %v1784 = vpop.f32.mrf.mxu0
      %1785 = vmatprep.mubr.f32.mxu0 0.0
      %1786 = vmatmul.mubr.f32.gmra.mxu0 %v1627
      %v1787 = vpop.f32.mrf.mxu0
      %v1788 = vadd.f32 0.0, %v1787
      %v1789 = vpop.f32.mrf.mxu0
      %1790 = vmatprep.mubr.f32.mxu0 0.0
      %1791 = vmatmul.mubr.f32.gmra.mxu0 %v1630
      %v1792 = vpop.f32.mrf.mxu0
      %v1793 = vadd.f32 0.0, %v1792
      %v1794 = vpop.f32.mrf.mxu0
      %1795 = vmatprep.mubr.f32.mxu0 0.0
      %1796 = vmatmul.mubr.f32.gmra.mxu0 %v1633
      %v1797 = vpop.f32.mrf.mxu0
      %v1798 = vadd.f32 0.0, %v1797
      %v1799 = vpop.f32.mrf.mxu0
      %1800 = vmatprep.mubr.f32.mxu0 0.0
      %1801 = vmatmul.mubr.f32.gmra.mxu0 %v1636
      %v1802 = vpop.f32.mrf.mxu0
      %v1803 = vadd.f32 0.0, %v1802
      %v1804 = vpop.f32.mrf.mxu0
      %1805 = vmatprep.mubr.f32.mxu0 0.0
      %1806 = vmatmul.mubr.f32.gmra.mxu0 %v1639
      %v1807 = vpop.f32.mrf.mxu0
      %v1808 = vadd.f32 0.0, %v1807
      %v1809 = vpop.f32.mrf.mxu0
      %1810 = vmatprep.mubr.f32.mxu0 0.0
      %1811 = vmatmul.mubr.f32.gmra.mxu0 %v1642
      %v1812 = vpop.f32.mrf.mxu0
      %v1813 = vadd.f32 0.0, %v1812
      %v1814 = vpop.f32.mrf.mxu0
      %1815 = vmatprep.mubr.f32.mxu0 0.0
      %1816 = vmatmul.mubr.f32.gmra.mxu0 %v1645
      %v1817 = vpop.f32.mrf.mxu0
      %v1818 = vadd.f32 0.0, %v1817
      %v1819 = vpop.f32.mrf.mxu0
      %1820 = vmatprep.mubr.f32.mxu0 0.0
      %1821 = vmatmul.mubr.f32.gmra.mxu0 %v1648
      %v1822 = vpop.f32.mrf.mxu0
      %v1823 = vadd.f32 0.0, %v1822
      %v1824 = vpop.f32.mrf.mxu0
      %1825 = vmatprep.mubr.f32.mxu0 0.0
      %1826 = vmatmul.mubr.f32.gmra.mxu0 %v1651
      %v1827 = vpop.f32.mrf.mxu0
      %v1828 = vadd.f32 0.0, %v1827
      %v1829 = vpop.f32.mrf.mxu0
      %1830 = vmatprep.mubr.f32.mxu0 0.0
      %1831 = vmatmul.mubr.f32.gmra.mxu0 %v1654
      %v1832 = vpop.f32.mrf.mxu0
      %v1833 = vadd.f32 0.0, %v1832
      %v1834 = vpop.f32.mrf.mxu0
      %1835 = vmatprep.mubr.f32.mxu0 0.0
      %1836 = vmatmul.mubr.f32.gmra.mxu0 %v1657
      %v1837 = vpop.f32.mrf.mxu0
      %v1838 = vadd.f32 0.0, %v1837
      %v1839 = vpop.f32.mrf.mxu0
      %1840 = vmatprep.mubr.f32.mxu0 0.0
      %1841 = vmatmul.mubr.f32.gmra.mxu0 %v1660
      %v1842 = vpop.f32.mrf.mxu0
      %v1843 = vadd.f32 0.0, %v1842
      %v1844 = vpop.f32.mrf.mxu0
      %1845 = vmatprep.mubr.f32.mxu0 0.0
      %1846 = vmatmul.mubr.f32.gmra.mxu0 %v1663
      %v1847 = vpop.f32.mrf.mxu0
      %v1848 = vadd.f32 0.0, %v1847
      %v1849 = vpop.f32.mrf.mxu0
      %1850 = vmatprep.mubr.f32.mxu0 0.0
      %1851 = vmatmul.mubr.f32.gmra.mxu0 %v1666
      %v1852 = vpop.f32.mrf.mxu0
      %v1853 = vadd.f32 0.0, %v1852
      %v1854 = vpop.f32.mrf.mxu0
      %1855 = vmatprep.mubr.f32.mxu0 0.0
      %1856 = vmatmul.mubr.f32.gmra.mxu0 %v1669
      %v1857 = vpop.f32.mrf.mxu0
      %v1858 = vadd.f32 0.0, %v1857
      %v1859 = vpop.f32.mrf.mxu0
      %1860 = vmatprep.mubr.f32.mxu0 0.0
      %1861 = vmatmul.mubr.f32.gmra.mxu0 %v1672
      %v1862 = vpop.f32.mrf.mxu0
      %v1863 = vadd.f32 0.0, %v1862
      %v1864 = vpop.f32.mrf.mxu0
      %1865 = vmatprep.mubr.f32.mxu0 0.0
      %1866 = vmatmul.mubr.f32.gmra.mxu0 %v1675
      %v1867 = vpop.f32.mrf.mxu0
      %v1868 = vadd.f32 0.0, %v1867
      %v1869 = vpop.f32.mrf.mxu0
      %1870 = vmatprep.mubr.f32.mxu0 0.0
      %1871 = vmatmul.mubr.f32.gmra.mxu0 %v1678
      %v1872 = vpop.f32.mrf.mxu0
      %v1873 = vadd.f32 0.0, %v1872
      %v1874 = vpop.f32.mrf.mxu0
      %1875 = vmatprep.mubr.f32.mxu0 0.0
      %1876 = vmatmul.mubr.f32.gmra.mxu0 %v1681
      %v1877 = vpop.f32.mrf.mxu0
      %v1878 = vadd.f32 0.0, %v1877
      %v1879 = vpop.f32.mrf.mxu0
      %1880 = vmatprep.mubr.f32.mxu0 0.0
      %1881 = vmatmul.mubr.f32.gmra.mxu0 %v1684
      %v1882 = vpop.f32.mrf.mxu0
      %v1883 = vadd.f32 0.0, %v1882
      %v1884 = vpop.f32.mrf.mxu0
      %1885 = vmatprep.mubr.f32.mxu0 0.0
      %1886 = vmatmul.mubr.f32.gmra.mxu0 %v1687
      %v1887 = vpop.f32.mrf.mxu0
      %v1888 = vadd.f32 0.0, %v1887
      %v1889 = vpop.f32.mrf.mxu0
      %1890 = vmatprep.mubr.f32.mxu0 0.0
      %1891 = vmatmul.mubr.f32.gmra.mxu0 %v1690
      %v1892 = vpop.f32.mrf.mxu0
      %v1893 = vadd.f32 0.0, %v1892
      %v1894 = vpop.f32.mrf.mxu0
      %1895 = vmatprep.mubr.f32.mxu0 0.0
      %1896 = vmatmul.mubr.f32.gmra.mxu0 %v1693
      %v1897 = vpop.f32.mrf.mxu0
      %v1898 = vadd.f32 0.0, %v1897
      %v1899 = vpop.f32.mrf.mxu0
      %1900 = vmatprep.mubr.f32.mxu0 0.0
      %1901 = vmatmul.mubr.f32.gmra.mxu0 %v1696
      %v1902 = vpop.f32.mrf.mxu0
      %v1903 = vadd.f32 0.0, %v1902
      %v1904 = vpop.f32.mrf.mxu0
      %1905 = vmatprep.mubr.f32.mxu0 0.0
      %1906 = vmatmul.mubr.f32.gmra.mxu0 %v1699
      %v1907 = vpop.f32.mrf.mxu0
      %v1908 = vadd.f32 0.0, %v1907
      %v1909 = vpop.f32.mrf.mxu0
      %1910 = vmatprep.mubr.f32.mxu0 0.0
      %1911 = vmatmul.mubr.f32.gmra.mxu0 %v1702
      %v1912 = vpop.f32.mrf.mxu0
      %v1913 = vadd.f32 0.0, %v1912
      %v1914 = vpop.f32.mrf.mxu0
      %1915 = vmatprep.mubr.f32.mxu0 0.0
      %1916 = vmatmul.mubr.f32.gmra.mxu0 %v1705
      %v1917 = vpop.f32.mrf.mxu0
      %v1918 = vadd.f32 0.0, %v1917
      %v1919 = vpop.f32.mrf.mxu0
      %1920 = vmatprep.mubr.f32.mxu0 0.0
      %1921 = vmatmul.mubr.f32.gmra.mxu0 %v1708
      %v1922 = vpop.f32.mrf.mxu0
      %v1923 = vadd.f32 0.0, %v1922
      %v1924 = vpop.f32.mrf.mxu0
      %1925 = vmatprep.mubr.f32.mxu0 0.0
      %1926 = vmatmul.mubr.f32.gmra.mxu0 %v1711
      %v1927 = vpop.f32.mrf.mxu0
      %v1928 = vadd.f32 0.0, %v1927
      %v1929 = vpop.f32.mrf.mxu0
      %1930 = vdwg.mxu0
      %v1931 = vadd.f32 %v1560, %v1783
      %v1932 = vadd.f32 %v1561, %v1788
      %v1933 = vadd.f32 %v1562, %v1793
      %v1934 = vadd.f32 %v1563, %v1798
      %v1935 = vadd.f32 %v1564, %v1803
      %v1936 = vadd.f32 %v1565, %v1808
      %v1937 = vadd.f32 %v1566, %v1813
      %v1938 = vadd.f32 %v1567, %v1818
      %v1939 = vadd.f32 %v1568, %v1823
      %v1940 = vadd.f32 %v1569, %v1828
      %v1941 = vadd.f32 %v1570, %v1833
      %v1942 = vadd.f32 %v1571, %v1838
      %v1943 = vadd.f32 %v1572, %v1843
      %v1944 = vadd.f32 %v1573, %v1848
      %v1945 = vadd.f32 %v1574, %v1853
      %v1946 = vadd.f32 %v1575, %v1858
      %v1947 = vadd.f32 %v1576, %v1863
      %v1948 = vadd.f32 %v1577, %v1868
      %v1949 = vadd.f32 %v1578, %v1873
      %v1950 = vadd.f32 %v1579, %v1878
      %v1951 = vadd.f32 %v1580, %v1883
      %v1952 = vadd.f32 %v1581, %v1888
      %v1953 = vadd.f32 %v1582, %v1893
      %v1954 = vadd.f32 %v1583, %v1898
      %v1955 = vadd.f32 %v1584, %v1903
      %v1956 = vadd.f32 %v1585, %v1908
      %v1957 = vadd.f32 %v1586, %v1913
      %v1958 = vadd.f32 %v1587, %v1918
      %v1959 = vadd.f32 %v1588, %v1923
      %v1960 = vadd.f32 %v1589, %v1928
      %v1961 = vld [vmem:[%s1590 + $0x1] sm:$0xff]
      %v1962 = vld [vmem:[%s1590 + $0x9] sm:$0xff]
      %v1963 = vld [vmem:[%s1590 + $0x11] sm:$0xff]
      %v1964 = vld [vmem:[%s1590 + $0x21] sm:$0xff]
      %v1965 = vld [vmem:[%s1590 + $0x29] sm:$0xff]
      %v1966 = vld [vmem:[%s1590 + $0x31] sm:$0xff]
      %v1967 = vld [vmem:[%s1590 + $0x41] sm:$0xff]
      %v1968 = vld [vmem:[%s1590 + $0x49] sm:$0xff]
      %v1969 = vld [vmem:[%s1590 + $0x51] sm:$0xff]
      %v1970 = vld [vmem:[%s1590 + $0x61] sm:$0xff]
      %v1971 = vld [vmem:[%s1590 + $0x69] sm:$0xff]
      %v1972 = vld [vmem:[%s1590 + $0x71] sm:$0xff]
      %v1973 = vld [vmem:[%s1590 + $0x81] sm:$0xff]
      %v1974 = vld [vmem:[%s1590 + $0x89] sm:$0xff]
      %v1975 = vld [vmem:[%s1590 + $0x91] sm:$0xff]
      %v1976 = vld [vmem:[%s1590 + $0xa1] sm:$0xff]
      %v1977 = vld [vmem:[%s1590 + $0xa9] sm:$0xff]
      %v1978 = vld [vmem:[%s1590 + $0xb1] sm:$0xff]
      %v1979 = vld [vmem:[%s1590 + $0xc1] sm:$0xff]
      %v1980 = vld [vmem:[%s1590 + $0xc9] sm:$0xff]
      %v1981 = vld [vmem:[%s1590 + $0xd1] sm:$0xff]
      %v1982 = vld [vmem:[%s1590 + $0xe1] sm:$0xff]
      %v1983 = vld [vmem:[%s1590 + $0xe9] sm:$0xff]
      %v1984 = vld [vmem:[%s1590 + $0xf1] sm:$0xff]
      %v1985 = vld [vmem:[%s1590 + $0x101] sm:$0xff]
      %v1986 = vld [vmem:[%s1590 + $0x109] sm:$0xff]
      %v1987 = vld [vmem:[%s1590 + $0x111] sm:$0xff]
      %v1988 = vld [vmem:[%s1590 + $0x121] sm:$0xff]
      %v1989 = vld [vmem:[%s1590 + $0x129] sm:$0xff]
      %v1990 = vld [vmem:[%s1590 + $0x131] sm:$0xff]
      %s1991 = scalar_lea.vmem %s2, 16
      %v1992 = vld [vmem:[%s1991] sm:$0xf]
      %v1994 = vsel %vm406, %v1961, 0
      %v1997 = vsel %vm406, %v1962, 0
      %v2000 = vsel %vm406, %v1963, 0
      %v2003 = vsel %vm406, %v1964, 0
      %v2006 = vsel %vm406, %v1965, 0
      %v2009 = vsel %vm406, %v1966, 0
      %v2012 = vsel %vm406, %v1967, 0
      %v2015 = vsel %vm406, %v1968, 0
      %v2018 = vsel %vm406, %v1969, 0
      %v2021 = vsel %vm406, %v1970, 0
      %v2024 = vsel %vm406, %v1971, 0
      %v2027 = vsel %vm406, %v1972, 0
      %v2030 = vsel %vm406, %v1973, 0
      %v2033 = vsel %vm406, %v1974, 0
      %v2036 = vsel %vm406, %v1975, 0
      %v2039 = vsel %vm406, %v1976, 0
      %v2042 = vsel %vm406, %v1977, 0
      %v2045 = vsel %vm406, %v1978, 0
      %v2048 = vsel %vm406, %v1979, 0
      %v2051 = vsel %vm406, %v1980, 0
      %v2054 = vsel %vm406, %v1981, 0
      %v2057 = vsel %vm406, %v1982, 0
      %v2060 = vsel %vm406, %v1983, 0
      %v2063 = vsel %vm406, %v1984, 0
      %v2066 = vsel %vm406, %v1985, 0
      %v2069 = vsel %vm406, %v1986, 0
      %v2072 = vsel %vm406, %v1987, 0
      %v2075 = vsel %vm406, %v1988, 0
      %v2078 = vsel %vm406, %v1989, 0
      %v2081 = vsel %vm406, %v1990, 0
      %v2084 = vsel %vm601, %v1992, 0
      %2086 = vmatprep.subr.mxu0 0.0
      %2087 = vmatpush1.msra.mxu0 0.0
      %2088 = vmatprep.subr.mxu0 0.0
      %2089 = vmatpush1.msra.mxu0 0.0
      %2090 = vmatprep.subr.mxu0 0.0
      %2091 = vmatpush1.msra.mxu0 0.0
      %2092 = vmatprep.subr.mxu0 0.0
      %2093 = vmatpush1.msra.mxu0 0.0
      %2094 = vmatprep.subr.mxu0 0.0
      %2095 = vmatpush1.msra.mxu0 0.0
      %2096 = vmatprep.subr.mxu0 0.0
      %2097 = vmatpush1.msra.mxu0 0.0
      %2098 = vmatprep.subr.mxu0 0.0
      %2099 = vmatpush1.msra.mxu0 0.0
      %2100 = vmatprep.subr.mxu0 0.0
      %2101 = vmatpush1.msra.mxu0 0.0
      %2102 = vmatprep.subr.mxu0 0.0
      %2103 = vmatpush1.msra.mxu0 0.0
      %2104 = vmatprep.subr.mxu0 0.0
      %2105 = vmatpush1.msra.mxu0 0.0
      %2106 = vmatprep.subr.mxu0 0.0
      %2107 = vmatpush1.msra.mxu0 0.0
      %2108 = vmatprep.subr.mxu0 0.0
      %2109 = vmatpush1.msra.mxu0 0.0
      %2110 = vmatprep.subr.mxu0 0.0
      %2111 = vmatpush1.msra.mxu0 0.0
      %2112 = vmatprep.subr.mxu0 0.0
      %2113 = vmatpush1.msra.mxu0 0.0
      %2114 = vmatprep.subr.mxu0 0.0
      %2115 = vmatpush1.msra.mxu0 0.0
      %2116 = vmatprep.subr.mxu0 0.0
      %2117 = vmatpush1.msra.mxu0 %v2084
      %2118 = vmatprep.subr.mxu0 0.0
      %2119 = vmatpush2.msra.mxu0 0.0
      %2120 = vmatprep.subr.mxu0 0.0
      %2121 = vmatpush2.msra.mxu0 0.0
      %2122 = vmatprep.subr.mxu0 0.0
      %2123 = vmatpush2.msra.mxu0 0.0
      %2124 = vmatprep.subr.mxu0 0.0
      %2125 = vmatpush2.msra.mxu0 0.0
      %2126 = vmatprep.subr.mxu0 0.0
      %2127 = vmatpush2.msra.mxu0 0.0
      %2128 = vmatprep.subr.mxu0 0.0
      %2129 = vmatpush2.msra.mxu0 0.0
      %2130 = vmatprep.subr.mxu0 0.0
      %2131 = vmatpush2.msra.mxu0 0.0
      %2132 = vmatprep.subr.mxu0 0.0
      %2133 = vmatpush2.msra.mxu0 0.0
      %2134 = vmatprep.subr.mxu0 0.0
      %2135 = vmatpush2.msra.mxu0 0.0
      %2136 = vmatprep.subr.mxu0 0.0
      %2137 = vmatpush2.msra.mxu0 0.0
      %2138 = vmatprep.subr.mxu0 0.0
      %2139 = vmatpush2.msra.mxu0 0.0
      %2140 = vmatprep.subr.mxu0 0.0
      %2141 = vmatpush2.msra.mxu0 0.0
      %2142 = vmatprep.subr.mxu0 0.0
      %2143 = vmatpush2.msra.mxu0 0.0
      %2144 = vmatprep.subr.mxu0 0.0
      %2145 = vmatpush2.msra.mxu0 0.0
      %2146 = vmatprep.subr.mxu0 0.0
      %2147 = vmatpush2.msra.mxu0 0.0
      %2148 = vmatprep.subr.mxu0 0.0
      %2149 = vmatpush2.msra.mxu0 0.0
      %2150 = vmatprep.mubr.f32.mxu0 0.0
      %2151 = vmatmul.mubr.f32.gmra.mxu0 %v1994
      %v2152 = vpop.f32.mrf.mxu0
      %v2153 = vadd.f32 0.0, %v2152
      %v2154 = vpop.f32.mrf.mxu0
      %2155 = vmatprep.mubr.f32.mxu0 0.0
      %2156 = vmatmul.mubr.f32.gmra.mxu0 %v1997
      %v2157 = vpop.f32.mrf.mxu0
      %v2158 = vadd.f32 0.0, %v2157
      %v2159 = vpop.f32.mrf.mxu0
      %2160 = vmatprep.mubr.f32.mxu0 0.0
      %2161 = vmatmul.mubr.f32.gmra.mxu0 %v2000
      %v2162 = vpop.f32.mrf.mxu0
      %v2163 = vadd.f32 0.0, %v2162
      %v2164 = vpop.f32.mrf.mxu0
      %2165 = vmatprep.mubr.f32.mxu0 0.0
      %2166 = vmatmul.mubr.f32.gmra.mxu0 %v2003
      %v2167 = vpop.f32.mrf.mxu0
      %v2168 = vadd.f32 0.0, %v2167
      %v2169 = vpop.f32.mrf.mxu0
      %2170 = vmatprep.mubr.f32.mxu0 0.0
      %2171 = vmatmul.mubr.f32.gmra.mxu0 %v2006
      %v2172 = vpop.f32.mrf.mxu0
      %v2173 = vadd.f32 0.0, %v2172
      %v2174 = vpop.f32.mrf.mxu0
      %2175 = vmatprep.mubr.f32.mxu0 0.0
      %2176 = vmatmul.mubr.f32.gmra.mxu0 %v2009
      %v2177 = vpop.f32.mrf.mxu0
      %v2178 = vadd.f32 0.0, %v2177
      %v2179 = vpop.f32.mrf.mxu0
      %2180 = vmatprep.mubr.f32.mxu0 0.0
      %2181 = vmatmul.mubr.f32.gmra.mxu0 %v2012
      %v2182 = vpop.f32.mrf.mxu0
      %v2183 = vadd.f32 0.0, %v2182
      %v2184 = vpop.f32.mrf.mxu0
      %2185 = vmatprep.mubr.f32.mxu0 0.0
      %2186 = vmatmul.mubr.f32.gmra.mxu0 %v2015
      %v2187 = vpop.f32.mrf.mxu0
      %v2188 = vadd.f32 0.0, %v2187
      %v2189 = vpop.f32.mrf.mxu0
      %2190 = vmatprep.mubr.f32.mxu0 0.0
      %2191 = vmatmul.mubr.f32.gmra.mxu0 %v2018
      %v2192 = vpop.f32.mrf.mxu0
      %v2193 = vadd.f32 0.0, %v2192
      %v2194 = vpop.f32.mrf.mxu0
      %2195 = vmatprep.mubr.f32.mxu0 0.0
      %2196 = vmatmul.mubr.f32.gmra.mxu0 %v2021
      %v2197 = vpop.f32.mrf.mxu0
      %v2198 = vadd.f32 0.0, %v2197
      %v2199 = vpop.f32.mrf.mxu0
      %2200 = vmatprep.mubr.f32.mxu0 0.0
      %2201 = vmatmul.mubr.f32.gmra.mxu0 %v2024
      %v2202 = vpop.f32.mrf.mxu0
      %v2203 = vadd.f32 0.0, %v2202
      %v2204 = vpop.f32.mrf.mxu0
      %2205 = vmatprep.mubr.f32.mxu0 0.0
      %2206 = vmatmul.mubr.f32.gmra.mxu0 %v2027
      %v2207 = vpop.f32.mrf.mxu0
      %v2208 = vadd.f32 0.0, %v2207
      %v2209 = vpop.f32.mrf.mxu0
      %2210 = vmatprep.mubr.f32.mxu0 0.0
      %2211 = vmatmul.mubr.f32.gmra.mxu0 %v2030
      %v2212 = vpop.f32.mrf.mxu0
      %v2213 = vadd.f32 0.0, %v2212
      %v2214 = vpop.f32.mrf.mxu0
      %2215 = vmatprep.mubr.f32.mxu0 0.0
      %2216 = vmatmul.mubr.f32.gmra.mxu0 %v2033
      %v2217 = vpop.f32.mrf.mxu0
      %v2218 = vadd.f32 0.0, %v2217
      %v2219 = vpop.f32.mrf.mxu0
      %2220 = vmatprep.mubr.f32.mxu0 0.0
      %2221 = vmatmul.mubr.f32.gmra.mxu0 %v2036
      %v2222 = vpop.f32.mrf.mxu0
      %v2223 = vadd.f32 0.0, %v2222
      %v2224 = vpop.f32.mrf.mxu0
      %2225 = vmatprep.mubr.f32.mxu0 0.0
      %2226 = vmatmul.mubr.f32.gmra.mxu0 %v2039
      %v2227 = vpop.f32.mrf.mxu0
      %v2228 = vadd.f32 0.0, %v2227
      %v2229 = vpop.f32.mrf.mxu0
      %2230 = vmatprep.mubr.f32.mxu0 0.0
      %2231 = vmatmul.mubr.f32.gmra.mxu0 %v2042
      %v2232 = vpop.f32.mrf.mxu0
      %v2233 = vadd.f32 0.0, %v2232
      %v2234 = vpop.f32.mrf.mxu0
      %2235 = vmatprep.mubr.f32.mxu0 0.0
      %2236 = vmatmul.mubr.f32.gmra.mxu0 %v2045
      %v2237 = vpop.f32.mrf.mxu0
      %v2238 = vadd.f32 0.0, %v2237
      %v2239 = vpop.f32.mrf.mxu0
      %2240 = vmatprep.mubr.f32.mxu0 0.0
      %2241 = vmatmul.mubr.f32.gmra.mxu0 %v2048
      %v2242 = vpop.f32.mrf.mxu0
      %v2243 = vadd.f32 0.0, %v2242
      %v2244 = vpop.f32.mrf.mxu0
      %2245 = vmatprep.mubr.f32.mxu0 0.0
      %2246 = vmatmul.mubr.f32.gmra.mxu0 %v2051
      %v2247 = vpop.f32.mrf.mxu0
      %v2248 = vadd.f32 0.0, %v2247
      %v2249 = vpop.f32.mrf.mxu0
      %2250 = vmatprep.mubr.f32.mxu0 0.0
      %2251 = vmatmul.mubr.f32.gmra.mxu0 %v2054
      %v2252 = vpop.f32.mrf.mxu0
      %v2253 = vadd.f32 0.0, %v2252
      %v2254 = vpop.f32.mrf.mxu0
      %2255 = vmatprep.mubr.f32.mxu0 0.0
      %2256 = vmatmul.mubr.f32.gmra.mxu0 %v2057
      %v2257 = vpop.f32.mrf.mxu0
      %v2258 = vadd.f32 0.0, %v2257
      %v2259 = vpop.f32.mrf.mxu0
      %2260 = vmatprep.mubr.f32.mxu0 0.0
      %2261 = vmatmul.mubr.f32.gmra.mxu0 %v2060
      %v2262 = vpop.f32.mrf.mxu0
      %v2263 = vadd.f32 0.0, %v2262
      %v2264 = vpop.f32.mrf.mxu0
      %2265 = vmatprep.mubr.f32.mxu0 0.0
      %2266 = vmatmul.mubr.f32.gmra.mxu0 %v2063
      %v2267 = vpop.f32.mrf.mxu0
      %v2268 = vadd.f32 0.0, %v2267
      %v2269 = vpop.f32.mrf.mxu0
      %2270 = vmatprep.mubr.f32.mxu0 0.0
      %2271 = vmatmul.mubr.f32.gmra.mxu0 %v2066
      %v2272 = vpop.f32.mrf.mxu0
      %v2273 = vadd.f32 0.0, %v2272
      %v2274 = vpop.f32.mrf.mxu0
      %2275 = vmatprep.mubr.f32.mxu0 0.0
      %2276 = vmatmul.mubr.f32.gmra.mxu0 %v2069
      %v2277 = vpop.f32.mrf.mxu0
      %v2278 = vadd.f32 0.0, %v2277
      %v2279 = vpop.f32.mrf.mxu0
      %2280 = vmatprep.mubr.f32.mxu0 0.0
      %2281 = vmatmul.mubr.f32.gmra.mxu0 %v2072
      %v2282 = vpop.f32.mrf.mxu0
      %v2283 = vadd.f32 0.0, %v2282
      %v2284 = vpop.f32.mrf.mxu0
      %2285 = vmatprep.mubr.f32.mxu0 0.0
      %2286 = vmatmul.mubr.f32.gmra.mxu0 %v2075
      %v2287 = vpop.f32.mrf.mxu0
      %v2288 = vadd.f32 0.0, %v2287
      %v2289 = vpop.f32.mrf.mxu0
      %2290 = vmatprep.mubr.f32.mxu0 0.0
      %2291 = vmatmul.mubr.f32.gmra.mxu0 %v2078
      %v2292 = vpop.f32.mrf.mxu0
      %v2293 = vadd.f32 0.0, %v2292
      %v2294 = vpop.f32.mrf.mxu0
      %2295 = vmatprep.mubr.f32.mxu0 0.0
      %2296 = vmatmul.mubr.f32.gmra.mxu0 %v2081
      %v2297 = vpop.f32.mrf.mxu0
      %v2298 = vadd.f32 0.0, %v2297
      %v2299 = vpop.f32.mrf.mxu0
      %2300 = vdwg.mxu0
      %v2301 = vadd.f32 %v1931, %v2153
      %v2302 = vadd.f32 %v1932, %v2158
      %v2303 = vadd.f32 %v1933, %v2163
      %v2304 = vadd.f32 %v1934, %v2168
      %v2305 = vadd.f32 %v1935, %v2173
      %v2306 = vadd.f32 %v1936, %v2178
      %v2307 = vadd.f32 %v1937, %v2183
      %v2308 = vadd.f32 %v1938, %v2188
      %v2309 = vadd.f32 %v1939, %v2193
      %v2310 = vadd.f32 %v1940, %v2198
      %v2311 = vadd.f32 %v1941, %v2203
      %v2312 = vadd.f32 %v1942, %v2208
      %v2313 = vadd.f32 %v1943, %v2213
      %v2314 = vadd.f32 %v1944, %v2218
      %v2315 = vadd.f32 %v1945, %v2223
      %v2316 = vadd.f32 %v1946, %v2228
      %v2317 = vadd.f32 %v1947, %v2233
      %v2318 = vadd.f32 %v1948, %v2238
      %v2319 = vadd.f32 %v1949, %v2243
      %v2320 = vadd.f32 %v1950, %v2248
      %v2321 = vadd.f32 %v1951, %v2253
      %v2322 = vadd.f32 %v1952, %v2258
      %v2323 = vadd.f32 %v1953, %v2263
      %v2324 = vadd.f32 %v1954, %v2268
      %v2325 = vadd.f32 %v1955, %v2273
      %v2326 = vadd.f32 %v1956, %v2278
      %v2327 = vadd.f32 %v1957, %v2283
      %v2328 = vadd.f32 %v1958, %v2288
      %v2329 = vadd.f32 %v1959, %v2293
      %v2330 = vadd.f32 %v1960, %v2298
      %v2331 = vld [vmem:[%s1590 + $0x2] sm:$0xff]
      %v2332 = vld [vmem:[%s1590 + $0xa] sm:$0xff]
      %v2333 = vld [vmem:[%s1590 + $0x12] sm:$0xff]
      %v2334 = vld [vmem:[%s1590 + $0x22] sm:$0xff]
      %v2335 = vld [vmem:[%s1590 + $0x2a] sm:$0xff]
      %v2336 = vld [vmem:[%s1590 + $0x32] sm:$0xff]
      %v2337 = vld [vmem:[%s1590 + $0x42] sm:$0xff]
      %v2338 = vld [vmem:[%s1590 + $0x4a] sm:$0xff]
      %v2339 = vld [vmem:[%s1590 + $0x52] sm:$0xff]
      %v2340 = vld [vmem:[%s1590 + $0x62] sm:$0xff]
      %v2341 = vld [vmem:[%s1590 + $0x6a] sm:$0xff]
      %v2342 = vld [vmem:[%s1590 + $0x72] sm:$0xff]
      %v2343 = vld [vmem:[%s1590 + $0x82] sm:$0xff]
      %v2344 = vld [vmem:[%s1590 + $0x8a] sm:$0xff]
      %v2345 = vld [vmem:[%s1590 + $0x92] sm:$0xff]
      %v2346 = vld [vmem:[%s1590 + $0xa2] sm:$0xff]
      %v2347 = vld [vmem:[%s1590 + $0xaa] sm:$0xff]
      %v2348 = vld [vmem:[%s1590 + $0xb2] sm:$0xff]
      %v2349 = vld [vmem:[%s1590 + $0xc2] sm:$0xff]
      %v2350 = vld [vmem:[%s1590 + $0xca] sm:$0xff]
      %v2351 = vld [vmem:[%s1590 + $0xd2] sm:$0xff]
      %v2352 = vld [vmem:[%s1590 + $0xe2] sm:$0xff]
      %v2353 = vld [vmem:[%s1590 + $0xea] sm:$0xff]
      %v2354 = vld [vmem:[%s1590 + $0xf2] sm:$0xff]
      %v2355 = vld [vmem:[%s1590 + $0x102] sm:$0xff]
      %v2356 = vld [vmem:[%s1590 + $0x10a] sm:$0xff]
      %v2357 = vld [vmem:[%s1590 + $0x112] sm:$0xff]
      %v2358 = vld [vmem:[%s1590 + $0x122] sm:$0xff]
      %v2359 = vld [vmem:[%s1590 + $0x12a] sm:$0xff]
      %v2360 = vld [vmem:[%s1590 + $0x132] sm:$0xff]
      %s2361 = scalar_lea.vmem %s2, 20
      %v2362 = vld [vmem:[%s2361] sm:$0xf]
      %v2364 = vsel %vm406, %v2331, 0
      %v2367 = vsel %vm406, %v2332, 0
      %v2370 = vsel %vm406, %v2333, 0
      %v2373 = vsel %vm406, %v2334, 0
      %v2376 = vsel %vm406, %v2335, 0
      %v2379 = vsel %vm406, %v2336, 0
      %v2382 = vsel %vm406, %v2337, 0
      %v2385 = vsel %vm406, %v2338, 0
      %v2388 = vsel %vm406, %v2339, 0
      %v2391 = vsel %vm406, %v2340, 0
      %v2394 = vsel %vm406, %v2341, 0
      %v2397 = vsel %vm406, %v2342, 0
      %v2400 = vsel %vm406, %v2343, 0
      %v2403 = vsel %vm406, %v2344, 0
      %v2406 = vsel %vm406, %v2345, 0
      %v2409 = vsel %vm406, %v2346, 0
      %v2412 = vsel %vm406, %v2347, 0
      %v2415 = vsel %vm406, %v2348, 0
      %v2418 = vsel %vm406, %v2349, 0
      %v2421 = vsel %vm406, %v2350, 0
      %v2424 = vsel %vm406, %v2351, 0
      %v2427 = vsel %vm406, %v2352, 0
      %v2430 = vsel %vm406, %v2353, 0
      %v2433 = vsel %vm406, %v2354, 0
      %v2436 = vsel %vm406, %v2355, 0
      %v2439 = vsel %vm406, %v2356, 0
      %v2442 = vsel %vm406, %v2357, 0
      %v2445 = vsel %vm406, %v2358, 0
      %v2448 = vsel %vm406, %v2359, 0
      %v2451 = vsel %vm406, %v2360, 0
      %v2454 = vsel %vm601, %v2362, 0
      %2456 = vmatprep.subr.mxu0 0.0
      %2457 = vmatpush1.msra.mxu0 0.0
      %2458 = vmatprep.subr.mxu0 0.0
      %2459 = vmatpush1.msra.mxu0 0.0
      %2460 = vmatprep.subr.mxu0 0.0
      %2461 = vmatpush1.msra.mxu0 0.0
      %2462 = vmatprep.subr.mxu0 0.0
      %2463 = vmatpush1.msra.mxu0 0.0
      %2464 = vmatprep.subr.mxu0 0.0
      %2465 = vmatpush1.msra.mxu0 0.0
      %2466 = vmatprep.subr.mxu0 0.0
      %2467 = vmatpush1.msra.mxu0 0.0
      %2468 = vmatprep.subr.mxu0 0.0
      %2469 = vmatpush1.msra.mxu0 0.0
      %2470 = vmatprep.subr.mxu0 0.0
      %2471 = vmatpush1.msra.mxu0 0.0
      %2472 = vmatprep.subr.mxu0 0.0
      %2473 = vmatpush1.msra.mxu0 0.0
      %2474 = vmatprep.subr.mxu0 0.0
      %2475 = vmatpush1.msra.mxu0 0.0
      %2476 = vmatprep.subr.mxu0 0.0
      %2477 = vmatpush1.msra.mxu0 0.0
      %2478 = vmatprep.subr.mxu0 0.0
      %2479 = vmatpush1.msra.mxu0 0.0
      %2480 = vmatprep.subr.mxu0 0.0
      %2481 = vmatpush1.msra.mxu0 0.0
      %2482 = vmatprep.subr.mxu0 0.0
      %2483 = vmatpush1.msra.mxu0 0.0
      %2484 = vmatprep.subr.mxu0 0.0
      %2485 = vmatpush1.msra.mxu0 0.0
      %2486 = vmatprep.subr.mxu0 0.0
      %2487 = vmatpush1.msra.mxu0 %v2454
      %2488 = vmatprep.subr.mxu0 0.0
      %2489 = vmatpush2.msra.mxu0 0.0
      %2490 = vmatprep.subr.mxu0 0.0
      %2491 = vmatpush2.msra.mxu0 0.0
      %2492 = vmatprep.subr.mxu0 0.0
      %2493 = vmatpush2.msra.mxu0 0.0
      %2494 = vmatprep.subr.mxu0 0.0
      %2495 = vmatpush2.msra.mxu0 0.0
      %2496 = vmatprep.subr.mxu0 0.0
      %2497 = vmatpush2.msra.mxu0 0.0
      %2498 = vmatprep.subr.mxu0 0.0
      %2499 = vmatpush2.msra.mxu0 0.0
      %2500 = vmatprep.subr.mxu0 0.0
      %2501 = vmatpush2.msra.mxu0 0.0
      %2502 = vmatprep.subr.mxu0 0.0
      %2503 = vmatpush2.msra.mxu0 0.0
      %2504 = vmatprep.subr.mxu0 0.0
      %2505 = vmatpush2.msra.mxu0 0.0
      %2506 = vmatprep.subr.mxu0 0.0
      %2507 = vmatpush2.msra.mxu0 0.0
      %2508 = vmatprep.subr.mxu0 0.0
      %2509 = vmatpush2.msra.mxu0 0.0
      %2510 = vmatprep.subr.mxu0 0.0
      %2511 = vmatpush2.msra.mxu0 0.0
      %2512 = vmatprep.subr.mxu0 0.0
      %2513 = vmatpush2.msra.mxu0 0.0
      %2514 = vmatprep.subr.mxu0 0.0
      %2515 = vmatpush2.msra.mxu0 0.0
      %2516 = vmatprep.subr.mxu0 0.0
      %2517 = vmatpush2.msra.mxu0 0.0
      %2518 = vmatprep.subr.mxu0 0.0
      %2519 = vmatpush2.msra.mxu0 0.0
      %2520 = vmatprep.mubr.f32.mxu0 0.0
      %2521 = vmatmul.mubr.f32.gmra.mxu0 %v2364
      %v2522 = vpop.f32.mrf.mxu0
      %v2523 = vadd.f32 0.0, %v2522
      %v2524 = vpop.f32.mrf.mxu0
      %2525 = vmatprep.mubr.f32.mxu0 0.0
      %2526 = vmatmul.mubr.f32.gmra.mxu0 %v2367
      %v2527 = vpop.f32.mrf.mxu0
      %v2528 = vadd.f32 0.0, %v2527
      %v2529 = vpop.f32.mrf.mxu0
      %2530 = vmatprep.mubr.f32.mxu0 0.0
      %2531 = vmatmul.mubr.f32.gmra.mxu0 %v2370
      %v2532 = vpop.f32.mrf.mxu0
      %v2533 = vadd.f32 0.0, %v2532
      %v2534 = vpop.f32.mrf.mxu0
      %2535 = vmatprep.mubr.f32.mxu0 0.0
      %2536 = vmatmul.mubr.f32.gmra.mxu0 %v2373
      %v2537 = vpop.f32.mrf.mxu0
      %v2538 = vadd.f32 0.0, %v2537
      %v2539 = vpop.f32.mrf.mxu0
      %2540 = vmatprep.mubr.f32.mxu0 0.0
      %2541 = vmatmul.mubr.f32.gmra.mxu0 %v2376
      %v2542 = vpop.f32.mrf.mxu0
      %v2543 = vadd.f32 0.0, %v2542
      %v2544 = vpop.f32.mrf.mxu0
      %2545 = vmatprep.mubr.f32.mxu0 0.0
      %2546 = vmatmul.mubr.f32.gmra.mxu0 %v2379
      %v2547 = vpop.f32.mrf.mxu0
      %v2548 = vadd.f32 0.0, %v2547
      %v2549 = vpop.f32.mrf.mxu0
      %2550 = vmatprep.mubr.f32.mxu0 0.0
      %2551 = vmatmul.mubr.f32.gmra.mxu0 %v2382
      %v2552 = vpop.f32.mrf.mxu0
      %v2553 = vadd.f32 0.0, %v2552
      %v2554 = vpop.f32.mrf.mxu0
      %2555 = vmatprep.mubr.f32.mxu0 0.0
      %2556 = vmatmul.mubr.f32.gmra.mxu0 %v2385
      %v2557 = vpop.f32.mrf.mxu0
      %v2558 = vadd.f32 0.0, %v2557
      %v2559 = vpop.f32.mrf.mxu0
      %2560 = vmatprep.mubr.f32.mxu0 0.0
      %2561 = vmatmul.mubr.f32.gmra.mxu0 %v2388
      %v2562 = vpop.f32.mrf.mxu0
      %v2563 = vadd.f32 0.0, %v2562
      %v2564 = vpop.f32.mrf.mxu0
      %2565 = vmatprep.mubr.f32.mxu0 0.0
      %2566 = vmatmul.mubr.f32.gmra.mxu0 %v2391
      %v2567 = vpop.f32.mrf.mxu0
      %v2568 = vadd.f32 0.0, %v2567
      %v2569 = vpop.f32.mrf.mxu0
      %2570 = vmatprep.mubr.f32.mxu0 0.0
      %2571 = vmatmul.mubr.f32.gmra.mxu0 %v2394
      %v2572 = vpop.f32.mrf.mxu0
      %v2573 = vadd.f32 0.0, %v2572
      %v2574 = vpop.f32.mrf.mxu0
      %2575 = vmatprep.mubr.f32.mxu0 0.0
      %2576 = vmatmul.mubr.f32.gmra.mxu0 %v2397
      %v2577 = vpop.f32.mrf.mxu0
      %v2578 = vadd.f32 0.0, %v2577
      %v2579 = vpop.f32.mrf.mxu0
      %2580 = vmatprep.mubr.f32.mxu0 0.0
      %2581 = vmatmul.mubr.f32.gmra.mxu0 %v2400
      %v2582 = vpop.f32.mrf.mxu0
      %v2583 = vadd.f32 0.0, %v2582
      %v2584 = vpop.f32.mrf.mxu0
      %2585 = vmatprep.mubr.f32.mxu0 0.0
      %2586 = vmatmul.mubr.f32.gmra.mxu0 %v2403
      %v2587 = vpop.f32.mrf.mxu0
      %v2588 = vadd.f32 0.0, %v2587
      %v2589 = vpop.f32.mrf.mxu0
      %2590 = vmatprep.mubr.f32.mxu0 0.0
      %2591 = vmatmul.mubr.f32.gmra.mxu0 %v2406
      %v2592 = vpop.f32.mrf.mxu0
      %v2593 = vadd.f32 0.0, %v2592
      %v2594 = vpop.f32.mrf.mxu0
      %2595 = vmatprep.mubr.f32.mxu0 0.0
      %2596 = vmatmul.mubr.f32.gmra.mxu0 %v2409
      %v2597 = vpop.f32.mrf.mxu0
      %v2598 = vadd.f32 0.0, %v2597
      %v2599 = vpop.f32.mrf.mxu0
      %2600 = vmatprep.mubr.f32.mxu0 0.0
      %2601 = vmatmul.mubr.f32.gmra.mxu0 %v2412
      %v2602 = vpop.f32.mrf.mxu0
      %v2603 = vadd.f32 0.0, %v2602
      %v2604 = vpop.f32.mrf.mxu0
      %2605 = vmatprep.mubr.f32.mxu0 0.0
      %2606 = vmatmul.mubr.f32.gmra.mxu0 %v2415
      %v2607 = vpop.f32.mrf.mxu0
      %v2608 = vadd.f32 0.0, %v2607
      %v2609 = vpop.f32.mrf.mxu0
      %2610 = vmatprep.mubr.f32.mxu0 0.0
      %2611 = vmatmul.mubr.f32.gmra.mxu0 %v2418
      %v2612 = vpop.f32.mrf.mxu0
      %v2613 = vadd.f32 0.0, %v2612
      %v2614 = vpop.f32.mrf.mxu0
      %2615 = vmatprep.mubr.f32.mxu0 0.0
      %2616 = vmatmul.mubr.f32.gmra.mxu0 %v2421
      %v2617 = vpop.f32.mrf.mxu0
      %v2618 = vadd.f32 0.0, %v2617
      %v2619 = vpop.f32.mrf.mxu0
      %2620 = vmatprep.mubr.f32.mxu0 0.0
      %2621 = vmatmul.mubr.f32.gmra.mxu0 %v2424
      %v2622 = vpop.f32.mrf.mxu0
      %v2623 = vadd.f32 0.0, %v2622
      %v2624 = vpop.f32.mrf.mxu0
      %2625 = vmatprep.mubr.f32.mxu0 0.0
      %2626 = vmatmul.mubr.f32.gmra.mxu0 %v2427
      %v2627 = vpop.f32.mrf.mxu0
      %v2628 = vadd.f32 0.0, %v2627
      %v2629 = vpop.f32.mrf.mxu0
      %2630 = vmatprep.mubr.f32.mxu0 0.0
      %2631 = vmatmul.mubr.f32.gmra.mxu0 %v2430
      %v2632 = vpop.f32.mrf.mxu0
      %v2633 = vadd.f32 0.0, %v2632
      %v2634 = vpop.f32.mrf.mxu0
      %2635 = vmatprep.mubr.f32.mxu0 0.0
      %2636 = vmatmul.mubr.f32.gmra.mxu0 %v2433
      %v2637 = vpop.f32.mrf.mxu0
      %v2638 = vadd.f32 0.0, %v2637
      %v2639 = vpop.f32.mrf.mxu0
      %2640 = vmatprep.mubr.f32.mxu0 0.0
      %2641 = vmatmul.mubr.f32.gmra.mxu0 %v2436
      %v2642 = vpop.f32.mrf.mxu0
      %v2643 = vadd.f32 0.0, %v2642
      %v2644 = vpop.f32.mrf.mxu0
      %2645 = vmatprep.mubr.f32.mxu0 0.0
      %2646 = vmatmul.mubr.f32.gmra.mxu0 %v2439
      %v2647 = vpop.f32.mrf.mxu0
      %v2648 = vadd.f32 0.0, %v2647
      %v2649 = vpop.f32.mrf.mxu0
      %2650 = vmatprep.mubr.f32.mxu0 0.0
      %2651 = vmatmul.mubr.f32.gmra.mxu0 %v2442
      %v2652 = vpop.f32.mrf.mxu0
      %v2653 = vadd.f32 0.0, %v2652
      %v2654 = vpop.f32.mrf.mxu0
      %2655 = vmatprep.mubr.f32.mxu0 0.0
      %2656 = vmatmul.mubr.f32.gmra.mxu0 %v2445
      %v2657 = vpop.f32.mrf.mxu0
      %v2658 = vadd.f32 0.0, %v2657
      %v2659 = vpop.f32.mrf.mxu0
      %2660 = vmatprep.mubr.f32.mxu0 0.0
      %2661 = vmatmul.mubr.f32.gmra.mxu0 %v2448
      %v2662 = vpop.f32.mrf.mxu0
      %v2663 = vadd.f32 0.0, %v2662
      %v2664 = vpop.f32.mrf.mxu0
      %2665 = vmatprep.mubr.f32.mxu0 0.0
      %2666 = vmatmul.mubr.f32.gmra.mxu0 %v2451
      %v2667 = vpop.f32.mrf.mxu0
      %v2668 = vadd.f32 0.0, %v2667
      %v2669 = vpop.f32.mrf.mxu0
      %2670 = vdwg.mxu0
      %v2671 = vadd.f32 %v2301, %v2523
      %v2672 = vadd.f32 %v2302, %v2528
      %v2673 = vadd.f32 %v2303, %v2533
      %v2674 = vadd.f32 %v2304, %v2538
      %v2675 = vadd.f32 %v2305, %v2543
      %v2676 = vadd.f32 %v2306, %v2548
      %v2677 = vadd.f32 %v2307, %v2553
      %v2678 = vadd.f32 %v2308, %v2558
      %v2679 = vadd.f32 %v2309, %v2563
      %v2680 = vadd.f32 %v2310, %v2568
      %v2681 = vadd.f32 %v2311, %v2573
      %v2682 = vadd.f32 %v2312, %v2578
      %v2683 = vadd.f32 %v2313, %v2583
      %v2684 = vadd.f32 %v2314, %v2588
      %v2685 = vadd.f32 %v2315, %v2593
      %v2686 = vadd.f32 %v2316, %v2598
      %v2687 = vadd.f32 %v2317, %v2603
      %v2688 = vadd.f32 %v2318, %v2608
      %v2689 = vadd.f32 %v2319, %v2613
      %v2690 = vadd.f32 %v2320, %v2618
      %v2691 = vadd.f32 %v2321, %v2623
      %v2692 = vadd.f32 %v2322, %v2628
      %v2693 = vadd.f32 %v2323, %v2633
      %v2694 = vadd.f32 %v2324, %v2638
      %v2695 = vadd.f32 %v2325, %v2643
      %v2696 = vadd.f32 %v2326, %v2648
      %v2697 = vadd.f32 %v2327, %v2653
      %v2698 = vadd.f32 %v2328, %v2658
      %v2699 = vadd.f32 %v2329, %v2663
      %v2700 = vadd.f32 %v2330, %v2668
      %s2701 = scalar_lea.vmem [#allocation2], 64
      %v2702 = vld [vmem:[%s2701] sm:$0xff]
      %v2703 = vld [vmem:[%s2701 + $0x8] sm:$0xff]
      %v2704 = vld [vmem:[%s2701 + $0x10] sm:$0xff]
      %v2705 = vld [vmem:[%s2701 + $0x20] sm:$0xff]
      %v2706 = vld [vmem:[%s2701 + $0x28] sm:$0xff]
      %v2707 = vld [vmem:[%s2701 + $0x30] sm:$0xff]
      %v2708 = vld [vmem:[%s2701 + $0x40] sm:$0xff]
      %v2709 = vld [vmem:[%s2701 + $0x48] sm:$0xff]
      %v2710 = vld [vmem:[%s2701 + $0x50] sm:$0xff]
      %v2711 = vld [vmem:[%s2701 + $0x60] sm:$0xff]
      %v2712 = vld [vmem:[%s2701 + $0x68] sm:$0xff]
      %v2713 = vld [vmem:[%s2701 + $0x70] sm:$0xff]
      %v2714 = vld [vmem:[%s2701 + $0x80] sm:$0xff]
      %v2715 = vld [vmem:[%s2701 + $0x88] sm:$0xff]
      %v2716 = vld [vmem:[%s2701 + $0x90] sm:$0xff]
      %v2717 = vld [vmem:[%s2701 + $0xa0] sm:$0xff]
      %v2718 = vld [vmem:[%s2701 + $0xa8] sm:$0xff]
      %v2719 = vld [vmem:[%s2701 + $0xb0] sm:$0xff]
      %v2720 = vld [vmem:[%s2701 + $0xc0] sm:$0xff]
      %v2721 = vld [vmem:[%s2701 + $0xc8] sm:$0xff]
      %v2722 = vld [vmem:[%s2701 + $0xd0] sm:$0xff]
      %v2723 = vld [vmem:[%s2701 + $0xe0] sm:$0xff]
      %v2724 = vld [vmem:[%s2701 + $0xe8] sm:$0xff]
      %v2725 = vld [vmem:[%s2701 + $0xf0] sm:$0xff]
      %v2726 = vld [vmem:[%s2701 + $0x100] sm:$0xff]
      %v2727 = vld [vmem:[%s2701 + $0x108] sm:$0xff]
      %v2728 = vld [vmem:[%s2701 + $0x110] sm:$0xff]
      %v2729 = vld [vmem:[%s2701 + $0x120] sm:$0xff]
      %v2730 = vld [vmem:[%s2701 + $0x128] sm:$0xff]
      %v2731 = vld [vmem:[%s2701 + $0x130] sm:$0xff]
      %s2732 = scalar_lea.vmem %s2, 24
      %v2733 = vld [vmem:[%s2732] sm:$0xf]
      %v2735 = vsel %vm406, %v2702, 0
      %v2738 = vsel %vm406, %v2703, 0
      %v2741 = vsel %vm406, %v2704, 0
      %v2744 = vsel %vm406, %v2705, 0
      %v2747 = vsel %vm406, %v2706, 0
      %v2750 = vsel %vm406, %v2707, 0
      %v2753 = vsel %vm406, %v2708, 0
      %v2756 = vsel %vm406, %v2709, 0
      %v2759 = vsel %vm406, %v2710, 0
      %v2762 = vsel %vm406, %v2711, 0
      %v2765 = vsel %vm406, %v2712, 0
      %v2768 = vsel %vm406, %v2713, 0
      %v2771 = vsel %vm406, %v2714, 0
      %v2774 = vsel %vm406, %v2715, 0
      %v2777 = vsel %vm406, %v2716, 0
      %v2780 = vsel %vm406, %v2717, 0
      %v2783 = vsel %vm406, %v2718, 0
      %v2786 = vsel %vm406, %v2719, 0
      %v2789 = vsel %vm406, %v2720, 0
      %v2792 = vsel %vm406, %v2721, 0
      %v2795 = vsel %vm406, %v2722, 0
      %v2798 = vsel %vm406, %v2723, 0
      %v2801 = vsel %vm406, %v2724, 0
      %v2804 = vsel %vm406, %v2725, 0
      %v2807 = vsel %vm406, %v2726, 0
      %v2810 = vsel %vm406, %v2727, 0
      %v2813 = vsel %vm406, %v2728, 0
      %v2816 = vsel %vm406, %v2729, 0
      %v2819 = vsel %vm406, %v2730, 0
      %v2822 = vsel %vm406, %v2731, 0
      %v2825 = vsel %vm601, %v2733, 0
      %2827 = vmatprep.subr.mxu0 0.0
      %2828 = vmatpush1.msra.mxu0 0.0
      %2829 = vmatprep.subr.mxu0 0.0
      %2830 = vmatpush1.msra.mxu0 0.0
      %2831 = vmatprep.subr.mxu0 0.0
      %2832 = vmatpush1.msra.mxu0 0.0
      %2833 = vmatprep.subr.mxu0 0.0
      %2834 = vmatpush1.msra.mxu0 0.0
      %2835 = vmatprep.subr.mxu0 0.0
      %2836 = vmatpush1.msra.mxu0 0.0
      %2837 = vmatprep.subr.mxu0 0.0
      %2838 = vmatpush1.msra.mxu0 0.0
      %2839 = vmatprep.subr.mxu0 0.0
      %2840 = vmatpush1.msra.mxu0 0.0
      %2841 = vmatprep.subr.mxu0 0.0
      %2842 = vmatpush1.msra.mxu0 0.0
      %2843 = vmatprep.subr.mxu0 0.0
      %2844 = vmatpush1.msra.mxu0 0.0
      %2845 = vmatprep.subr.mxu0 0.0
      %2846 = vmatpush1.msra.mxu0 0.0
      %2847 = vmatprep.subr.mxu0 0.0
      %2848 = vmatpush1.msra.mxu0 0.0
      %2849 = vmatprep.subr.mxu0 0.0
      %2850 = vmatpush1.msra.mxu0 0.0
      %2851 = vmatprep.subr.mxu0 0.0
      %2852 = vmatpush1.msra.mxu0 0.0
      %2853 = vmatprep.subr.mxu0 0.0
      %2854 = vmatpush1.msra.mxu0 0.0
      %2855 = vmatprep.subr.mxu0 0.0
      %2856 = vmatpush1.msra.mxu0 0.0
      %2857 = vmatprep.subr.mxu0 0.0
      %2858 = vmatpush1.msra.mxu0 %v2825
      %2859 = vmatprep.subr.mxu0 0.0
      %2860 = vmatpush2.msra.mxu0 0.0
      %2861 = vmatprep.subr.mxu0 0.0
      %2862 = vmatpush2.msra.mxu0 0.0
      %2863 = vmatprep.subr.mxu0 0.0
      %2864 = vmatpush2.msra.mxu0 0.0
      %2865 = vmatprep.subr.mxu0 0.0
      %2866 = vmatpush2.msra.mxu0 0.0
      %2867 = vmatprep.subr.mxu0 0.0
      %2868 = vmatpush2.msra.mxu0 0.0
      %2869 = vmatprep.subr.mxu0 0.0
      %2870 = vmatpush2.msra.mxu0 0.0
      %2871 = vmatprep.subr.mxu0 0.0
      %2872 = vmatpush2.msra.mxu0 0.0
      %2873 = vmatprep.subr.mxu0 0.0
      %2874 = vmatpush2.msra.mxu0 0.0
      %2875 = vmatprep.subr.mxu0 0.0
      %2876 = vmatpush2.msra.mxu0 0.0
      %2877 = vmatprep.subr.mxu0 0.0
      %2878 = vmatpush2.msra.mxu0 0.0
      %2879 = vmatprep.subr.mxu0 0.0
      %2880 = vmatpush2.msra.mxu0 0.0
      %2881 = vmatprep.subr.mxu0 0.0
      %2882 = vmatpush2.msra.mxu0 0.0
      %2883 = vmatprep.subr.mxu0 0.0
      %2884 = vmatpush2.msra.mxu0 0.0
      %2885 = vmatprep.subr.mxu0 0.0
      %2886 = vmatpush2.msra.mxu0 0.0
      %2887 = vmatprep.subr.mxu0 0.0
      %2888 = vmatpush2.msra.mxu0 0.0
      %2889 = vmatprep.subr.mxu0 0.0
      %2890 = vmatpush2.msra.mxu0 0.0
      %2891 = vmatprep.mubr.f32.mxu0 0.0
      %2892 = vmatmul.mubr.f32.gmra.mxu0 %v2735
      %v2893 = vpop.f32.mrf.mxu0
      %v2894 = vadd.f32 0.0, %v2893
      %v2895 = vpop.f32.mrf.mxu0
      %2896 = vmatprep.mubr.f32.mxu0 0.0
      %2897 = vmatmul.mubr.f32.gmra.mxu0 %v2738
      %v2898 = vpop.f32.mrf.mxu0
      %v2899 = vadd.f32 0.0, %v2898
      %v2900 = vpop.f32.mrf.mxu0
      %2901 = vmatprep.mubr.f32.mxu0 0.0
      %2902 = vmatmul.mubr.f32.gmra.mxu0 %v2741
      %v2903 = vpop.f32.mrf.mxu0
      %v2904 = vadd.f32 0.0, %v2903
      %v2905 = vpop.f32.mrf.mxu0
      %2906 = vmatprep.mubr.f32.mxu0 0.0
      %2907 = vmatmul.mubr.f32.gmra.mxu0 %v2744
      %v2908 = vpop.f32.mrf.mxu0
      %v2909 = vadd.f32 0.0, %v2908
      %v2910 = vpop.f32.mrf.mxu0
      %2911 = vmatprep.mubr.f32.mxu0 0.0
      %2912 = vmatmul.mubr.f32.gmra.mxu0 %v2747
      %v2913 = vpop.f32.mrf.mxu0
      %v2914 = vadd.f32 0.0, %v2913
      %v2915 = vpop.f32.mrf.mxu0
      %2916 = vmatprep.mubr.f32.mxu0 0.0
      %2917 = vmatmul.mubr.f32.gmra.mxu0 %v2750
      %v2918 = vpop.f32.mrf.mxu0
      %v2919 = vadd.f32 0.0, %v2918
      %v2920 = vpop.f32.mrf.mxu0
      %2921 = vmatprep.mubr.f32.mxu0 0.0
      %2922 = vmatmul.mubr.f32.gmra.mxu0 %v2753
      %v2923 = vpop.f32.mrf.mxu0
      %v2924 = vadd.f32 0.0, %v2923
      %v2925 = vpop.f32.mrf.mxu0
      %2926 = vmatprep.mubr.f32.mxu0 0.0
      %2927 = vmatmul.mubr.f32.gmra.mxu0 %v2756
      %v2928 = vpop.f32.mrf.mxu0
      %v2929 = vadd.f32 0.0, %v2928
      %v2930 = vpop.f32.mrf.mxu0
      %2931 = vmatprep.mubr.f32.mxu0 0.0
      %2932 = vmatmul.mubr.f32.gmra.mxu0 %v2759
      %v2933 = vpop.f32.mrf.mxu0
      %v2934 = vadd.f32 0.0, %v2933
      %v2935 = vpop.f32.mrf.mxu0
      %2936 = vmatprep.mubr.f32.mxu0 0.0
      %2937 = vmatmul.mubr.f32.gmra.mxu0 %v2762
      %v2938 = vpop.f32.mrf.mxu0
      %v2939 = vadd.f32 0.0, %v2938
      %v2940 = vpop.f32.mrf.mxu0
      %2941 = vmatprep.mubr.f32.mxu0 0.0
      %2942 = vmatmul.mubr.f32.gmra.mxu0 %v2765
      %v2943 = vpop.f32.mrf.mxu0
      %v2944 = vadd.f32 0.0, %v2943
      %v2945 = vpop.f32.mrf.mxu0
      %2946 = vmatprep.mubr.f32.mxu0 0.0
      %2947 = vmatmul.mubr.f32.gmra.mxu0 %v2768
      %v2948 = vpop.f32.mrf.mxu0
      %v2949 = vadd.f32 0.0, %v2948
      %v2950 = vpop.f32.mrf.mxu0
      %2951 = vmatprep.mubr.f32.mxu0 0.0
      %2952 = vmatmul.mubr.f32.gmra.mxu0 %v2771
      %v2953 = vpop.f32.mrf.mxu0
      %v2954 = vadd.f32 0.0, %v2953
      %v2955 = vpop.f32.mrf.mxu0
      %2956 = vmatprep.mubr.f32.mxu0 0.0
      %2957 = vmatmul.mubr.f32.gmra.mxu0 %v2774
      %v2958 = vpop.f32.mrf.mxu0
      %v2959 = vadd.f32 0.0, %v2958
      %v2960 = vpop.f32.mrf.mxu0
      %2961 = vmatprep.mubr.f32.mxu0 0.0
      %2962 = vmatmul.mubr.f32.gmra.mxu0 %v2777
      %v2963 = vpop.f32.mrf.mxu0
      %v2964 = vadd.f32 0.0, %v2963
      %v2965 = vpop.f32.mrf.mxu0
      %2966 = vmatprep.mubr.f32.mxu0 0.0
      %2967 = vmatmul.mubr.f32.gmra.mxu0 %v2780
      %v2968 = vpop.f32.mrf.mxu0
      %v2969 = vadd.f32 0.0, %v2968
      %v2970 = vpop.f32.mrf.mxu0
      %2971 = vmatprep.mubr.f32.mxu0 0.0
      %2972 = vmatmul.mubr.f32.gmra.mxu0 %v2783
      %v2973 = vpop.f32.mrf.mxu0
      %v2974 = vadd.f32 0.0, %v2973
      %v2975 = vpop.f32.mrf.mxu0
      %2976 = vmatprep.mubr.f32.mxu0 0.0
      %2977 = vmatmul.mubr.f32.gmra.mxu0 %v2786
      %v2978 = vpop.f32.mrf.mxu0
      %v2979 = vadd.f32 0.0, %v2978
      %v2980 = vpop.f32.mrf.mxu0
      %2981 = vmatprep.mubr.f32.mxu0 0.0
      %2982 = vmatmul.mubr.f32.gmra.mxu0 %v2789
      %v2983 = vpop.f32.mrf.mxu0
      %v2984 = vadd.f32 0.0, %v2983
      %v2985 = vpop.f32.mrf.mxu0
      %2986 = vmatprep.mubr.f32.mxu0 0.0
      %2987 = vmatmul.mubr.f32.gmra.mxu0 %v2792
      %v2988 = vpop.f32.mrf.mxu0
      %v2989 = vadd.f32 0.0, %v2988
      %v2990 = vpop.f32.mrf.mxu0
      %2991 = vmatprep.mubr.f32.mxu0 0.0
      %2992 = vmatmul.mubr.f32.gmra.mxu0 %v2795
      %v2993 = vpop.f32.mrf.mxu0
      %v2994 = vadd.f32 0.0, %v2993
      %v2995 = vpop.f32.mrf.mxu0
      %2996 = vmatprep.mubr.f32.mxu0 0.0
      %2997 = vmatmul.mubr.f32.gmra.mxu0 %v2798
      %v2998 = vpop.f32.mrf.mxu0
      %v2999 = vadd.f32 0.0, %v2998
      %v3000 = vpop.f32.mrf.mxu0
      %3001 = vmatprep.mubr.f32.mxu0 0.0
      %3002 = vmatmul.mubr.f32.gmra.mxu0 %v2801
      %v3003 = vpop.f32.mrf.mxu0
      %v3004 = vadd.f32 0.0, %v3003
      %v3005 = vpop.f32.mrf.mxu0
      %3006 = vmatprep.mubr.f32.mxu0 0.0
      %3007 = vmatmul.mubr.f32.gmra.mxu0 %v2804
      %v3008 = vpop.f32.mrf.mxu0
      %v3009 = vadd.f32 0.0, %v3008
      %v3010 = vpop.f32.mrf.mxu0
      %3011 = vmatprep.mubr.f32.mxu0 0.0
      %3012 = vmatmul.mubr.f32.gmra.mxu0 %v2807
      %v3013 = vpop.f32.mrf.mxu0
      %v3014 = vadd.f32 0.0, %v3013
      %v3015 = vpop.f32.mrf.mxu0
      %3016 = vmatprep.mubr.f32.mxu0 0.0
      %3017 = vmatmul.mubr.f32.gmra.mxu0 %v2810
      %v3018 = vpop.f32.mrf.mxu0
      %v3019 = vadd.f32 0.0, %v3018
      %v3020 = vpop.f32.mrf.mxu0
      %3021 = vmatprep.mubr.f32.mxu0 0.0
      %3022 = vmatmul.mubr.f32.gmra.mxu0 %v2813
      %v3023 = vpop.f32.mrf.mxu0
      %v3024 = vadd.f32 0.0, %v3023
      %v3025 = vpop.f32.mrf.mxu0
      %3026 = vmatprep.mubr.f32.mxu0 0.0
      %3027 = vmatmul.mubr.f32.gmra.mxu0 %v2816
      %v3028 = vpop.f32.mrf.mxu0
      %v3029 = vadd.f32 0.0, %v3028
      %v3030 = vpop.f32.mrf.mxu0
      %3031 = vmatprep.mubr.f32.mxu0 0.0
      %3032 = vmatmul.mubr.f32.gmra.mxu0 %v2819
      %v3033 = vpop.f32.mrf.mxu0
      %v3034 = vadd.f32 0.0, %v3033
      %v3035 = vpop.f32.mrf.mxu0
      %3036 = vmatprep.mubr.f32.mxu0 0.0
      %3037 = vmatmul.mubr.f32.gmra.mxu0 %v2822
      %v3038 = vpop.f32.mrf.mxu0
      %v3039 = vadd.f32 0.0, %v3038
      %v3040 = vpop.f32.mrf.mxu0
      %3041 = vdwg.mxu0
      %v3042 = vadd.f32 %v2671, %v2894
      %v3043 = vadd.f32 %v2672, %v2899
      %v3044 = vadd.f32 %v2673, %v2904
      %v3045 = vadd.f32 %v2674, %v2909
      %v3046 = vadd.f32 %v2675, %v2914
      %v3047 = vadd.f32 %v2676, %v2919
      %v3048 = vadd.f32 %v2677, %v2924
      %v3049 = vadd.f32 %v2678, %v2929
      %v3050 = vadd.f32 %v2679, %v2934
      %v3051 = vadd.f32 %v2680, %v2939
      %v3052 = vadd.f32 %v2681, %v2944
      %v3053 = vadd.f32 %v2682, %v2949
      %v3054 = vadd.f32 %v2683, %v2954
      %v3055 = vadd.f32 %v2684, %v2959
      %v3056 = vadd.f32 %v2685, %v2964
      %v3057 = vadd.f32 %v2686, %v2969
      %v3058 = vadd.f32 %v2687, %v2974
      %v3059 = vadd.f32 %v2688, %v2979
      %v3060 = vadd.f32 %v2689, %v2984
      %v3061 = vadd.f32 %v2690, %v2989
      %v3062 = vadd.f32 %v2691, %v2994
      %v3063 = vadd.f32 %v2692, %v2999
      %v3064 = vadd.f32 %v2693, %v3004
      %v3065 = vadd.f32 %v2694, %v3009
      %v3066 = vadd.f32 %v2695, %v3014
      %v3067 = vadd.f32 %v2696, %v3019
      %v3068 = vadd.f32 %v2697, %v3024
      %v3069 = vadd.f32 %v2698, %v3029
      %v3070 = vadd.f32 %v2699, %v3034
      %v3071 = vadd.f32 %v2700, %v3039
      %v3072 = vld [vmem:[%s2701 + $0x1] sm:$0xff]
      %v3073 = vld [vmem:[%s2701 + $0x9] sm:$0xff]
      %v3074 = vld [vmem:[%s2701 + $0x11] sm:$0xff]
      %v3075 = vld [vmem:[%s2701 + $0x21] sm:$0xff]
      %v3076 = vld [vmem:[%s2701 + $0x29] sm:$0xff]
      %v3077 = vld [vmem:[%s2701 + $0x31] sm:$0xff]
      %v3078 = vld [vmem:[%s2701 + $0x41] sm:$0xff]
      %v3079 = vld [vmem:[%s2701 + $0x49] sm:$0xff]
      %v3080 = vld [vmem:[%s2701 + $0x51] sm:$0xff]
      %v3081 = vld [vmem:[%s2701 + $0x61] sm:$0xff]
      %v3082 = vld [vmem:[%s2701 + $0x69] sm:$0xff]
      %v3083 = vld [vmem:[%s2701 + $0x71] sm:$0xff]
      %v3084 = vld [vmem:[%s2701 + $0x81] sm:$0xff]
      %v3085 = vld [vmem:[%s2701 + $0x89] sm:$0xff]
      %v3086 = vld [vmem:[%s2701 + $0x91] sm:$0xff]
      %v3087 = vld [vmem:[%s2701 + $0xa1] sm:$0xff]
      %v3088 = vld [vmem:[%s2701 + $0xa9] sm:$0xff]
      %v3089 = vld [vmem:[%s2701 + $0xb1] sm:$0xff]
      %v3090 = vld [vmem:[%s2701 + $0xc1] sm:$0xff]
      %v3091 = vld [vmem:[%s2701 + $0xc9] sm:$0xff]
      %v3092 = vld [vmem:[%s2701 + $0xd1] sm:$0xff]
      %v3093 = vld [vmem:[%s2701 + $0xe1] sm:$0xff]
      %v3094 = vld [vmem:[%s2701 + $0xe9] sm:$0xff]
      %v3095 = vld [vmem:[%s2701 + $0xf1] sm:$0xff]
      %v3096 = vld [vmem:[%s2701 + $0x101] sm:$0xff]
      %v3097 = vld [vmem:[%s2701 + $0x109] sm:$0xff]
      %v3098 = vld [vmem:[%s2701 + $0x111] sm:$0xff]
      %v3099 = vld [vmem:[%s2701 + $0x121] sm:$0xff]
      %v3100 = vld [vmem:[%s2701 + $0x129] sm:$0xff]
      %v3101 = vld [vmem:[%s2701 + $0x131] sm:$0xff]
      %s3102 = scalar_lea.vmem %s2, 28
      %v3103 = vld [vmem:[%s3102] sm:$0xf]
      %v3105 = vsel %vm406, %v3072, 0
      %v3108 = vsel %vm406, %v3073, 0
      %v3111 = vsel %vm406, %v3074, 0
      %v3114 = vsel %vm406, %v3075, 0
      %v3117 = vsel %vm406, %v3076, 0
      %v3120 = vsel %vm406, %v3077, 0
      %v3123 = vsel %vm406, %v3078, 0
      %v3126 = vsel %vm406, %v3079, 0
      %v3129 = vsel %vm406, %v3080, 0
      %v3132 = vsel %vm406, %v3081, 0
      %v3135 = vsel %vm406, %v3082, 0
      %v3138 = vsel %vm406, %v3083, 0
      %v3141 = vsel %vm406, %v3084, 0
      %v3144 = vsel %vm406, %v3085, 0
      %v3147 = vsel %vm406, %v3086, 0
      %v3150 = vsel %vm406, %v3087, 0
      %v3153 = vsel %vm406, %v3088, 0
      %v3156 = vsel %vm406, %v3089, 0
      %v3159 = vsel %vm406, %v3090, 0
      %v3162 = vsel %vm406, %v3091, 0
      %v3165 = vsel %vm406, %v3092, 0
      %v3168 = vsel %vm406, %v3093, 0
      %v3171 = vsel %vm406, %v3094, 0
      %v3174 = vsel %vm406, %v3095, 0
      %v3177 = vsel %vm406, %v3096, 0
      %v3180 = vsel %vm406, %v3097, 0
      %v3183 = vsel %vm406, %v3098, 0
      %v3186 = vsel %vm406, %v3099, 0
      %v3189 = vsel %vm406, %v3100, 0
      %v3192 = vsel %vm406, %v3101, 0
      %v3195 = vsel %vm601, %v3103, 0
      %3197 = vmatprep.subr.mxu0 0.0
      %3198 = vmatpush1.msra.mxu0 0.0
      %3199 = vmatprep.subr.mxu0 0.0
      %3200 = vmatpush1.msra.mxu0 0.0
      %3201 = vmatprep.subr.mxu0 0.0
      %3202 = vmatpush1.msra.mxu0 0.0
      %3203 = vmatprep.subr.mxu0 0.0
      %3204 = vmatpush1.msra.mxu0 0.0
      %3205 = vmatprep.subr.mxu0 0.0
      %3206 = vmatpush1.msra.mxu0 0.0
      %3207 = vmatprep.subr.mxu0 0.0
      %3208 = vmatpush1.msra.mxu0 0.0
      %3209 = vmatprep.subr.mxu0 0.0
      %3210 = vmatpush1.msra.mxu0 0.0
      %3211 = vmatprep.subr.mxu0 0.0
      %3212 = vmatpush1.msra.mxu0 0.0
      %3213 = vmatprep.subr.mxu0 0.0
      %3214 = vmatpush1.msra.mxu0 0.0
      %3215 = vmatprep.subr.mxu0 0.0
      %3216 = vmatpush1.msra.mxu0 0.0
      %3217 = vmatprep.subr.mxu0 0.0
      %3218 = vmatpush1.msra.mxu0 0.0
      %3219 = vmatprep.subr.mxu0 0.0
      %3220 = vmatpush1.msra.mxu0 0.0
      %3221 = vmatprep.subr.mxu0 0.0
      %3222 = vmatpush1.msra.mxu0 0.0
      %3223 = vmatprep.subr.mxu0 0.0
      %3224 = vmatpush1.msra.mxu0 0.0
      %3225 = vmatprep.subr.mxu0 0.0
      %3226 = vmatpush1.msra.mxu0 0.0
      %3227 = vmatprep.subr.mxu0 0.0
      %3228 = vmatpush1.msra.mxu0 %v3195
      %3229 = vmatprep.subr.mxu0 0.0
      %3230 = vmatpush2.msra.mxu0 0.0
      %3231 = vmatprep.subr.mxu0 0.0
      %3232 = vmatpush2.msra.mxu0 0.0
      %3233 = vmatprep.subr.mxu0 0.0
      %3234 = vmatpush2.msra.mxu0 0.0
      %3235 = vmatprep.subr.mxu0 0.0
      %3236 = vmatpush2.msra.mxu0 0.0
      %3237 = vmatprep.subr.mxu0 0.0
      %3238 = vmatpush2.msra.mxu0 0.0
      %3239 = vmatprep.subr.mxu0 0.0
      %3240 = vmatpush2.msra.mxu0 0.0
      %3241 = vmatprep.subr.mxu0 0.0
      %3242 = vmatpush2.msra.mxu0 0.0
      %3243 = vmatprep.subr.mxu0 0.0
      %3244 = vmatpush2.msra.mxu0 0.0
      %3245 = vmatprep.subr.mxu0 0.0
      %3246 = vmatpush2.msra.mxu0 0.0
      %3247 = vmatprep.subr.mxu0 0.0
      %3248 = vmatpush2.msra.mxu0 0.0
      %3249 = vmatprep.subr.mxu0 0.0
      %3250 = vmatpush2.msra.mxu0 0.0
      %3251 = vmatprep.subr.mxu0 0.0
      %3252 = vmatpush2.msra.mxu0 0.0
      %3253 = vmatprep.subr.mxu0 0.0
      %3254 = vmatpush2.msra.mxu0 0.0
      %3255 = vmatprep.subr.mxu0 0.0
      %3256 = vmatpush2.msra.mxu0 0.0
      %3257 = vmatprep.subr.mxu0 0.0
      %3258 = vmatpush2.msra.mxu0 0.0
      %3259 = vmatprep.subr.mxu0 0.0
      %3260 = vmatpush2.msra.mxu0 0.0
      %3261 = vmatprep.mubr.f32.mxu0 0.0
      %3262 = vmatmul.mubr.f32.gmra.mxu0 %v3105
      %v3263 = vpop.f32.mrf.mxu0
      %v3264 = vadd.f32 0.0, %v3263
      %v3265 = vpop.f32.mrf.mxu0
      %3266 = vmatprep.mubr.f32.mxu0 0.0
      %3267 = vmatmul.mubr.f32.gmra.mxu0 %v3108
      %v3268 = vpop.f32.mrf.mxu0
      %v3269 = vadd.f32 0.0, %v3268
      %v3270 = vpop.f32.mrf.mxu0
      %3271 = vmatprep.mubr.f32.mxu0 0.0
      %3272 = vmatmul.mubr.f32.gmra.mxu0 %v3111
      %v3273 = vpop.f32.mrf.mxu0
      %v3274 = vadd.f32 0.0, %v3273
      %v3275 = vpop.f32.mrf.mxu0
      %3276 = vmatprep.mubr.f32.mxu0 0.0
      %3277 = vmatmul.mubr.f32.gmra.mxu0 %v3114
      %v3278 = vpop.f32.mrf.mxu0
      %v3279 = vadd.f32 0.0, %v3278
      %v3280 = vpop.f32.mrf.mxu0
      %3281 = vmatprep.mubr.f32.mxu0 0.0
      %3282 = vmatmul.mubr.f32.gmra.mxu0 %v3117
      %v3283 = vpop.f32.mrf.mxu0
      %v3284 = vadd.f32 0.0, %v3283
      %v3285 = vpop.f32.mrf.mxu0
      %3286 = vmatprep.mubr.f32.mxu0 0.0
      %3287 = vmatmul.mubr.f32.gmra.mxu0 %v3120
      %v3288 = vpop.f32.mrf.mxu0
      %v3289 = vadd.f32 0.0, %v3288
      %v3290 = vpop.f32.mrf.mxu0
      %3291 = vmatprep.mubr.f32.mxu0 0.0
      %3292 = vmatmul.mubr.f32.gmra.mxu0 %v3123
      %v3293 = vpop.f32.mrf.mxu0
      %v3294 = vadd.f32 0.0, %v3293
      %v3295 = vpop.f32.mrf.mxu0
      %3296 = vmatprep.mubr.f32.mxu0 0.0
      %3297 = vmatmul.mubr.f32.gmra.mxu0 %v3126
      %v3298 = vpop.f32.mrf.mxu0
      %v3299 = vadd.f32 0.0, %v3298
      %v3300 = vpop.f32.mrf.mxu0
      %3301 = vmatprep.mubr.f32.mxu0 0.0
      %3302 = vmatmul.mubr.f32.gmra.mxu0 %v3129
      %v3303 = vpop.f32.mrf.mxu0
      %v3304 = vadd.f32 0.0, %v3303
      %v3305 = vpop.f32.mrf.mxu0
      %3306 = vmatprep.mubr.f32.mxu0 0.0
      %3307 = vmatmul.mubr.f32.gmra.mxu0 %v3132
      %v3308 = vpop.f32.mrf.mxu0
      %v3309 = vadd.f32 0.0, %v3308
      %v3310 = vpop.f32.mrf.mxu0
      %3311 = vmatprep.mubr.f32.mxu0 0.0
      %3312 = vmatmul.mubr.f32.gmra.mxu0 %v3135
      %v3313 = vpop.f32.mrf.mxu0
      %v3314 = vadd.f32 0.0, %v3313
      %v3315 = vpop.f32.mrf.mxu0
      %3316 = vmatprep.mubr.f32.mxu0 0.0
      %3317 = vmatmul.mubr.f32.gmra.mxu0 %v3138
      %v3318 = vpop.f32.mrf.mxu0
      %v3319 = vadd.f32 0.0, %v3318
      %v3320 = vpop.f32.mrf.mxu0
      %3321 = vmatprep.mubr.f32.mxu0 0.0
      %3322 = vmatmul.mubr.f32.gmra.mxu0 %v3141
      %v3323 = vpop.f32.mrf.mxu0
      %v3324 = vadd.f32 0.0, %v3323
      %v3325 = vpop.f32.mrf.mxu0
      %3326 = vmatprep.mubr.f32.mxu0 0.0
      %3327 = vmatmul.mubr.f32.gmra.mxu0 %v3144
      %v3328 = vpop.f32.mrf.mxu0
      %v3329 = vadd.f32 0.0, %v3328
      %v3330 = vpop.f32.mrf.mxu0
      %3331 = vmatprep.mubr.f32.mxu0 0.0
      %3332 = vmatmul.mubr.f32.gmra.mxu0 %v3147
      %v3333 = vpop.f32.mrf.mxu0
      %v3334 = vadd.f32 0.0, %v3333
      %v3335 = vpop.f32.mrf.mxu0
      %3336 = vmatprep.mubr.f32.mxu0 0.0
      %3337 = vmatmul.mubr.f32.gmra.mxu0 %v3150
      %v3338 = vpop.f32.mrf.mxu0
      %v3339 = vadd.f32 0.0, %v3338
      %v3340 = vpop.f32.mrf.mxu0
      %3341 = vmatprep.mubr.f32.mxu0 0.0
      %3342 = vmatmul.mubr.f32.gmra.mxu0 %v3153
      %v3343 = vpop.f32.mrf.mxu0
      %v3344 = vadd.f32 0.0, %v3343
      %v3345 = vpop.f32.mrf.mxu0
      %3346 = vmatprep.mubr.f32.mxu0 0.0
      %3347 = vmatmul.mubr.f32.gmra.mxu0 %v3156
      %v3348 = vpop.f32.mrf.mxu0
      %v3349 = vadd.f32 0.0, %v3348
      %v3350 = vpop.f32.mrf.mxu0
      %3351 = vmatprep.mubr.f32.mxu0 0.0
      %3352 = vmatmul.mubr.f32.gmra.mxu0 %v3159
      %v3353 = vpop.f32.mrf.mxu0
      %v3354 = vadd.f32 0.0, %v3353
      %v3355 = vpop.f32.mrf.mxu0
      %3356 = vmatprep.mubr.f32.mxu0 0.0
      %3357 = vmatmul.mubr.f32.gmra.mxu0 %v3162
      %v3358 = vpop.f32.mrf.mxu0
      %v3359 = vadd.f32 0.0, %v3358
      %v3360 = vpop.f32.mrf.mxu0
      %3361 = vmatprep.mubr.f32.mxu0 0.0
      %3362 = vmatmul.mubr.f32.gmra.mxu0 %v3165
      %v3363 = vpop.f32.mrf.mxu0
      %v3364 = vadd.f32 0.0, %v3363
      %v3365 = vpop.f32.mrf.mxu0
      %3366 = vmatprep.mubr.f32.mxu0 0.0
      %3367 = vmatmul.mubr.f32.gmra.mxu0 %v3168
      %v3368 = vpop.f32.mrf.mxu0
      %v3369 = vadd.f32 0.0, %v3368
      %v3370 = vpop.f32.mrf.mxu0
      %3371 = vmatprep.mubr.f32.mxu0 0.0
      %3372 = vmatmul.mubr.f32.gmra.mxu0 %v3171
      %v3373 = vpop.f32.mrf.mxu0
      %v3374 = vadd.f32 0.0, %v3373
      %v3375 = vpop.f32.mrf.mxu0
      %3376 = vmatprep.mubr.f32.mxu0 0.0
      %3377 = vmatmul.mubr.f32.gmra.mxu0 %v3174
      %v3378 = vpop.f32.mrf.mxu0
      %v3379 = vadd.f32 0.0, %v3378
      %v3380 = vpop.f32.mrf.mxu0
      %3381 = vmatprep.mubr.f32.mxu0 0.0
      %3382 = vmatmul.mubr.f32.gmra.mxu0 %v3177
      %v3383 = vpop.f32.mrf.mxu0
      %v3384 = vadd.f32 0.0, %v3383
      %v3385 = vpop.f32.mrf.mxu0
      %3386 = vmatprep.mubr.f32.mxu0 0.0
      %3387 = vmatmul.mubr.f32.gmra.mxu0 %v3180
      %v3388 = vpop.f32.mrf.mxu0
      %v3389 = vadd.f32 0.0, %v3388
      %v3390 = vpop.f32.mrf.mxu0
      %3391 = vmatprep.mubr.f32.mxu0 0.0
      %3392 = vmatmul.mubr.f32.gmra.mxu0 %v3183
      %v3393 = vpop.f32.mrf.mxu0
      %v3394 = vadd.f32 0.0, %v3393
      %v3395 = vpop.f32.mrf.mxu0
      %3396 = vmatprep.mubr.f32.mxu0 0.0
      %3397 = vmatmul.mubr.f32.gmra.mxu0 %v3186
      %v3398 = vpop.f32.mrf.mxu0
      %v3399 = vadd.f32 0.0, %v3398
      %v3400 = vpop.f32.mrf.mxu0
      %3401 = vmatprep.mubr.f32.mxu0 0.0
      %3402 = vmatmul.mubr.f32.gmra.mxu0 %v3189
      %v3403 = vpop.f32.mrf.mxu0
      %v3404 = vadd.f32 0.0, %v3403
      %v3405 = vpop.f32.mrf.mxu0
      %3406 = vmatprep.mubr.f32.mxu0 0.0
      %3407 = vmatmul.mubr.f32.gmra.mxu0 %v3192
      %v3408 = vpop.f32.mrf.mxu0
      %v3409 = vadd.f32 0.0, %v3408
      %v3410 = vpop.f32.mrf.mxu0
      %3411 = vdwg.mxu0
      %v3412 = vadd.f32 %v3042, %v3264
      %v3413 = vadd.f32 %v3043, %v3269
      %v3414 = vadd.f32 %v3044, %v3274
      %v3415 = vadd.f32 %v3045, %v3279
      %v3416 = vadd.f32 %v3046, %v3284
      %v3417 = vadd.f32 %v3047, %v3289
      %v3418 = vadd.f32 %v3048, %v3294
      %v3419 = vadd.f32 %v3049, %v3299
      %v3420 = vadd.f32 %v3050, %v3304
      %v3421 = vadd.f32 %v3051, %v3309
      %v3422 = vadd.f32 %v3052, %v3314
      %v3423 = vadd.f32 %v3053, %v3319
      %v3424 = vadd.f32 %v3054, %v3324
      %v3425 = vadd.f32 %v3055, %v3329
      %v3426 = vadd.f32 %v3056, %v3334
      %v3427 = vadd.f32 %v3057, %v3339
      %v3428 = vadd.f32 %v3058, %v3344
      %v3429 = vadd.f32 %v3059, %v3349
      %v3430 = vadd.f32 %v3060, %v3354
      %v3431 = vadd.f32 %v3061, %v3359
      %v3432 = vadd.f32 %v3062, %v3364
      %v3433 = vadd.f32 %v3063, %v3369
      %v3434 = vadd.f32 %v3064, %v3374
      %v3435 = vadd.f32 %v3065, %v3379
      %v3436 = vadd.f32 %v3066, %v3384
      %v3437 = vadd.f32 %v3067, %v3389
      %v3438 = vadd.f32 %v3068, %v3394
      %v3439 = vadd.f32 %v3069, %v3399
      %v3440 = vadd.f32 %v3070, %v3404
      %v3441 = vadd.f32 %v3071, %v3409
      %v3442 = vld [vmem:[%s2701 + $0x2] sm:$0xff]
      %v3443 = vld [vmem:[%s2701 + $0xa] sm:$0xff]
      %v3444 = vld [vmem:[%s2701 + $0x12] sm:$0xff]
      %v3445 = vld [vmem:[%s2701 + $0x22] sm:$0xff]
      %v3446 = vld [vmem:[%s2701 + $0x2a] sm:$0xff]
      %v3447 = vld [vmem:[%s2701 + $0x32] sm:$0xff]
      %v3448 = vld [vmem:[%s2701 + $0x42] sm:$0xff]
      %v3449 = vld [vmem:[%s2701 + $0x4a] sm:$0xff]
      %v3450 = vld [vmem:[%s2701 + $0x52] sm:$0xff]
      %v3451 = vld [vmem:[%s2701 + $0x62] sm:$0xff]
      %v3452 = vld [vmem:[%s2701 + $0x6a] sm:$0xff]
      %v3453 = vld [vmem:[%s2701 + $0x72] sm:$0xff]
      %v3454 = vld [vmem:[%s2701 + $0x82] sm:$0xff]
      %v3455 = vld [vmem:[%s2701 + $0x8a] sm:$0xff]
      %v3456 = vld [vmem:[%s2701 + $0x92] sm:$0xff]
      %v3457 = vld [vmem:[%s2701 + $0xa2] sm:$0xff]
      %v3458 = vld [vmem:[%s2701 + $0xaa] sm:$0xff]
      %v3459 = vld [vmem:[%s2701 + $0xb2] sm:$0xff]
      %v3460 = vld [vmem:[%s2701 + $0xc2] sm:$0xff]
      %v3461 = vld [vmem:[%s2701 + $0xca] sm:$0xff]
      %v3462 = vld [vmem:[%s2701 + $0xd2] sm:$0xff]
      %v3463 = vld [vmem:[%s2701 + $0xe2] sm:$0xff]
      %v3464 = vld [vmem:[%s2701 + $0xea] sm:$0xff]
      %v3465 = vld [vmem:[%s2701 + $0xf2] sm:$0xff]
      %v3466 = vld [vmem:[%s2701 + $0x102] sm:$0xff]
      %v3467 = vld [vmem:[%s2701 + $0x10a] sm:$0xff]
      %v3468 = vld [vmem:[%s2701 + $0x112] sm:$0xff]
      %v3469 = vld [vmem:[%s2701 + $0x122] sm:$0xff]
      %v3470 = vld [vmem:[%s2701 + $0x12a] sm:$0xff]
      %v3471 = vld [vmem:[%s2701 + $0x132] sm:$0xff]
      %s3472 = scalar_lea.vmem %s2, 32
      %v3473 = vld [vmem:[%s3472] sm:$0xf]
      %v3475 = vsel %vm406, %v3442, 0
      %v3478 = vsel %vm406, %v3443, 0
      %v3481 = vsel %vm406, %v3444, 0
      %v3484 = vsel %vm406, %v3445, 0
      %v3487 = vsel %vm406, %v3446, 0
      %v3490 = vsel %vm406, %v3447, 0
      %v3493 = vsel %vm406, %v3448, 0
      %v3496 = vsel %vm406, %v3449, 0
      %v3499 = vsel %vm406, %v3450, 0
      %v3502 = vsel %vm406, %v3451, 0
      %v3505 = vsel %vm406, %v3452, 0
      %v3508 = vsel %vm406, %v3453, 0
      %v3511 = vsel %vm406, %v3454, 0
      %v3514 = vsel %vm406, %v3455, 0
      %v3517 = vsel %vm406, %v3456, 0
      %v3520 = vsel %vm406, %v3457, 0
      %v3523 = vsel %vm406, %v3458, 0
      %v3526 = vsel %vm406, %v3459, 0
      %v3529 = vsel %vm406, %v3460, 0
      %v3532 = vsel %vm406, %v3461, 0
      %v3535 = vsel %vm406, %v3462, 0
      %v3538 = vsel %vm406, %v3463, 0
      %v3541 = vsel %vm406, %v3464, 0
      %v3544 = vsel %vm406, %v3465, 0
      %v3547 = vsel %vm406, %v3466, 0
      %v3550 = vsel %vm406, %v3467, 0
      %v3553 = vsel %vm406, %v3468, 0
      %v3556 = vsel %vm406, %v3469, 0
      %v3559 = vsel %vm406, %v3470, 0
      %v3562 = vsel %vm406, %v3471, 0
      %v3565 = vsel %vm601, %v3473, 0
      %3567 = vmatprep.subr.mxu0 0.0
      %3568 = vmatpush1.msra.mxu0 0.0
      %3569 = vmatprep.subr.mxu0 0.0
      %3570 = vmatpush1.msra.mxu0 0.0
      %3571 = vmatprep.subr.mxu0 0.0
      %3572 = vmatpush1.msra.mxu0 0.0
      %3573 = vmatprep.subr.mxu0 0.0
      %3574 = vmatpush1.msra.mxu0 0.0
      %3575 = vmatprep.subr.mxu0 0.0
      %3576 = vmatpush1.msra.mxu0 0.0
      %3577 = vmatprep.subr.mxu0 0.0
      %3578 = vmatpush1.msra.mxu0 0.0
      %3579 = vmatprep.subr.mxu0 0.0
      %3580 = vmatpush1.msra.mxu0 0.0
      %3581 = vmatprep.subr.mxu0 0.0
      %3582 = vmatpush1.msra.mxu0 0.0
      %3583 = vmatprep.subr.mxu0 0.0
      %3584 = vmatpush1.msra.mxu0 0.0
      %3585 = vmatprep.subr.mxu0 0.0
      %3586 = vmatpush1.msra.mxu0 0.0
      %3587 = vmatprep.subr.mxu0 0.0
      %3588 = vmatpush1.msra.mxu0 0.0
      %3589 = vmatprep.subr.mxu0 0.0
      %3590 = vmatpush1.msra.mxu0 0.0
      %3591 = vmatprep.subr.mxu0 0.0
      %3592 = vmatpush1.msra.mxu0 0.0
      %3593 = vmatprep.subr.mxu0 0.0
      %3594 = vmatpush1.msra.mxu0 0.0
      %3595 = vmatprep.subr.mxu0 0.0
      %3596 = vmatpush1.msra.mxu0 0.0
      %3597 = vmatprep.subr.mxu0 0.0
      %3598 = vmatpush1.msra.mxu0 %v3565
      %3599 = vmatprep.subr.mxu0 0.0
      %3600 = vmatpush2.msra.mxu0 0.0
      %3601 = vmatprep.subr.mxu0 0.0
      %3602 = vmatpush2.msra.mxu0 0.0
      %3603 = vmatprep.subr.mxu0 0.0
      %3604 = vmatpush2.msra.mxu0 0.0
      %3605 = vmatprep.subr.mxu0 0.0
      %3606 = vmatpush2.msra.mxu0 0.0
      %3607 = vmatprep.subr.mxu0 0.0
      %3608 = vmatpush2.msra.mxu0 0.0
      %3609 = vmatprep.subr.mxu0 0.0
      %3610 = vmatpush2.msra.mxu0 0.0
      %3611 = vmatprep.subr.mxu0 0.0
      %3612 = vmatpush2.msra.mxu0 0.0
      %3613 = vmatprep.subr.mxu0 0.0
      %3614 = vmatpush2.msra.mxu0 0.0
      %3615 = vmatprep.subr.mxu0 0.0
      %3616 = vmatpush2.msra.mxu0 0.0
      %3617 = vmatprep.subr.mxu0 0.0
      %3618 = vmatpush2.msra.mxu0 0.0
      %3619 = vmatprep.subr.mxu0 0.0
      %3620 = vmatpush2.msra.mxu0 0.0
      %3621 = vmatprep.subr.mxu0 0.0
      %3622 = vmatpush2.msra.mxu0 0.0
      %3623 = vmatprep.subr.mxu0 0.0
      %3624 = vmatpush2.msra.mxu0 0.0
      %3625 = vmatprep.subr.mxu0 0.0
      %3626 = vmatpush2.msra.mxu0 0.0
      %3627 = vmatprep.subr.mxu0 0.0
      %3628 = vmatpush2.msra.mxu0 0.0
      %3629 = vmatprep.subr.mxu0 0.0
      %3630 = vmatpush2.msra.mxu0 0.0
      %3631 = vmatprep.mubr.f32.mxu0 0.0
      %3632 = vmatmul.mubr.f32.gmra.mxu0 %v3475
      %v3633 = vpop.f32.mrf.mxu0
      %v3634 = vadd.f32 0.0, %v3633
      %v3635 = vpop.f32.mrf.mxu0
      %3636 = vmatprep.mubr.f32.mxu0 0.0
      %3637 = vmatmul.mubr.f32.gmra.mxu0 %v3478
      %v3638 = vpop.f32.mrf.mxu0
      %v3639 = vadd.f32 0.0, %v3638
      %v3640 = vpop.f32.mrf.mxu0
      %3641 = vmatprep.mubr.f32.mxu0 0.0
      %3642 = vmatmul.mubr.f32.gmra.mxu0 %v3481
      %v3643 = vpop.f32.mrf.mxu0
      %v3644 = vadd.f32 0.0, %v3643
      %v3645 = vpop.f32.mrf.mxu0
      %3646 = vmatprep.mubr.f32.mxu0 0.0
      %3647 = vmatmul.mubr.f32.gmra.mxu0 %v3484
      %v3648 = vpop.f32.mrf.mxu0
      %v3649 = vadd.f32 0.0, %v3648
      %v3650 = vpop.f32.mrf.mxu0
      %3651 = vmatprep.mubr.f32.mxu0 0.0
      %3652 = vmatmul.mubr.f32.gmra.mxu0 %v3487
      %v3653 = vpop.f32.mrf.mxu0
      %v3654 = vadd.f32 0.0, %v3653
      %v3655 = vpop.f32.mrf.mxu0
      %3656 = vmatprep.mubr.f32.mxu0 0.0
      %3657 = vmatmul.mubr.f32.gmra.mxu0 %v3490
      %v3658 = vpop.f32.mrf.mxu0
      %v3659 = vadd.f32 0.0, %v3658
      %v3660 = vpop.f32.mrf.mxu0
      %3661 = vmatprep.mubr.f32.mxu0 0.0
      %3662 = vmatmul.mubr.f32.gmra.mxu0 %v3493
      %v3663 = vpop.f32.mrf.mxu0
      %v3664 = vadd.f32 0.0, %v3663
      %v3665 = vpop.f32.mrf.mxu0
      %3666 = vmatprep.mubr.f32.mxu0 0.0
      %3667 = vmatmul.mubr.f32.gmra.mxu0 %v3496
      %v3668 = vpop.f32.mrf.mxu0
      %v3669 = vadd.f32 0.0, %v3668
      %v3670 = vpop.f32.mrf.mxu0
      %3671 = vmatprep.mubr.f32.mxu0 0.0
      %3672 = vmatmul.mubr.f32.gmra.mxu0 %v3499
      %v3673 = vpop.f32.mrf.mxu0
      %v3674 = vadd.f32 0.0, %v3673
      %v3675 = vpop.f32.mrf.mxu0
      %3676 = vmatprep.mubr.f32.mxu0 0.0
      %3677 = vmatmul.mubr.f32.gmra.mxu0 %v3502
      %v3678 = vpop.f32.mrf.mxu0
      %v3679 = vadd.f32 0.0, %v3678
      %v3680 = vpop.f32.mrf.mxu0
      %3681 = vmatprep.mubr.f32.mxu0 0.0
      %3682 = vmatmul.mubr.f32.gmra.mxu0 %v3505
      %v3683 = vpop.f32.mrf.mxu0
      %v3684 = vadd.f32 0.0, %v3683
      %v3685 = vpop.f32.mrf.mxu0
      %3686 = vmatprep.mubr.f32.mxu0 0.0
      %3687 = vmatmul.mubr.f32.gmra.mxu0 %v3508
      %v3688 = vpop.f32.mrf.mxu0
      %v3689 = vadd.f32 0.0, %v3688
      %v3690 = vpop.f32.mrf.mxu0
      %3691 = vmatprep.mubr.f32.mxu0 0.0
      %3692 = vmatmul.mubr.f32.gmra.mxu0 %v3511
      %v3693 = vpop.f32.mrf.mxu0
      %v3694 = vadd.f32 0.0, %v3693
      %v3695 = vpop.f32.mrf.mxu0
      %3696 = vmatprep.mubr.f32.mxu0 0.0
      %3697 = vmatmul.mubr.f32.gmra.mxu0 %v3514
      %v3698 = vpop.f32.mrf.mxu0
      %v3699 = vadd.f32 0.0, %v3698
      %v3700 = vpop.f32.mrf.mxu0
      %3701 = vmatprep.mubr.f32.mxu0 0.0
      %3702 = vmatmul.mubr.f32.gmra.mxu0 %v3517
      %v3703 = vpop.f32.mrf.mxu0
      %v3704 = vadd.f32 0.0, %v3703
      %v3705 = vpop.f32.mrf.mxu0
      %3706 = vmatprep.mubr.f32.mxu0 0.0
      %3707 = vmatmul.mubr.f32.gmra.mxu0 %v3520
      %v3708 = vpop.f32.mrf.mxu0
      %v3709 = vadd.f32 0.0, %v3708
      %v3710 = vpop.f32.mrf.mxu0
      %3711 = vmatprep.mubr.f32.mxu0 0.0
      %3712 = vmatmul.mubr.f32.gmra.mxu0 %v3523
      %v3713 = vpop.f32.mrf.mxu0
      %v3714 = vadd.f32 0.0, %v3713
      %v3715 = vpop.f32.mrf.mxu0
      %3716 = vmatprep.mubr.f32.mxu0 0.0
      %3717 = vmatmul.mubr.f32.gmra.mxu0 %v3526
      %v3718 = vpop.f32.mrf.mxu0
      %v3719 = vadd.f32 0.0, %v3718
      %v3720 = vpop.f32.mrf.mxu0
      %3721 = vmatprep.mubr.f32.mxu0 0.0
      %3722 = vmatmul.mubr.f32.gmra.mxu0 %v3529
      %v3723 = vpop.f32.mrf.mxu0
      %v3724 = vadd.f32 0.0, %v3723
      %v3725 = vpop.f32.mrf.mxu0
      %3726 = vmatprep.mubr.f32.mxu0 0.0
      %3727 = vmatmul.mubr.f32.gmra.mxu0 %v3532
      %v3728 = vpop.f32.mrf.mxu0
      %v3729 = vadd.f32 0.0, %v3728
      %v3730 = vpop.f32.mrf.mxu0
      %3731 = vmatprep.mubr.f32.mxu0 0.0
      %3732 = vmatmul.mubr.f32.gmra.mxu0 %v3535
      %v3733 = vpop.f32.mrf.mxu0
      %v3734 = vadd.f32 0.0, %v3733
      %v3735 = vpop.f32.mrf.mxu0
      %3736 = vmatprep.mubr.f32.mxu0 0.0
      %3737 = vmatmul.mubr.f32.gmra.mxu0 %v3538
      %v3738 = vpop.f32.mrf.mxu0
      %v3739 = vadd.f32 0.0, %v3738
      %v3740 = vpop.f32.mrf.mxu0
      %3741 = vmatprep.mubr.f32.mxu0 0.0
      %3742 = vmatmul.mubr.f32.gmra.mxu0 %v3541
      %v3743 = vpop.f32.mrf.mxu0
      %v3744 = vadd.f32 0.0, %v3743
      %v3745 = vpop.f32.mrf.mxu0
      %3746 = vmatprep.mubr.f32.mxu0 0.0
      %3747 = vmatmul.mubr.f32.gmra.mxu0 %v3544
      %v3748 = vpop.f32.mrf.mxu0
      %v3749 = vadd.f32 0.0, %v3748
      %v3750 = vpop.f32.mrf.mxu0
      %3751 = vmatprep.mubr.f32.mxu0 0.0
      %3752 = vmatmul.mubr.f32.gmra.mxu0 %v3547
      %v3753 = vpop.f32.mrf.mxu0
      %v3754 = vadd.f32 0.0, %v3753
      %v3755 = vpop.f32.mrf.mxu0
      %3756 = vmatprep.mubr.f32.mxu0 0.0
      %3757 = vmatmul.mubr.f32.gmra.mxu0 %v3550
      %v3758 = vpop.f32.mrf.mxu0
      %v3759 = vadd.f32 0.0, %v3758
      %v3760 = vpop.f32.mrf.mxu0
      %3761 = vmatprep.mubr.f32.mxu0 0.0
      %3762 = vmatmul.mubr.f32.gmra.mxu0 %v3553
      %v3763 = vpop.f32.mrf.mxu0
      %v3764 = vadd.f32 0.0, %v3763
      %v3765 = vpop.f32.mrf.mxu0
      %3766 = vmatprep.mubr.f32.mxu0 0.0
      %3767 = vmatmul.mubr.f32.gmra.mxu0 %v3556
      %v3768 = vpop.f32.mrf.mxu0
      %v3769 = vadd.f32 0.0, %v3768
      %v3770 = vpop.f32.mrf.mxu0
      %3771 = vmatprep.mubr.f32.mxu0 0.0
      %3772 = vmatmul.mubr.f32.gmra.mxu0 %v3559
      %v3773 = vpop.f32.mrf.mxu0
      %v3774 = vadd.f32 0.0, %v3773
      %v3775 = vpop.f32.mrf.mxu0
      %3776 = vmatprep.mubr.f32.mxu0 0.0
      %3777 = vmatmul.mubr.f32.gmra.mxu0 %v3562
      %v3778 = vpop.f32.mrf.mxu0
      %v3779 = vadd.f32 0.0, %v3778
      %v3780 = vpop.f32.mrf.mxu0
      %3781 = vdwg.mxu0
      %v3782 = vadd.f32 %v3412, %v3634
      %v3783 = vadd.f32 %v3413, %v3639
      %v3784 = vadd.f32 %v3414, %v3644
      %v3785 = vadd.f32 %v3415, %v3649
      %v3786 = vadd.f32 %v3416, %v3654
      %v3787 = vadd.f32 %v3417, %v3659
      %v3788 = vadd.f32 %v3418, %v3664
      %v3789 = vadd.f32 %v3419, %v3669
      %v3790 = vadd.f32 %v3420, %v3674
      %v3791 = vadd.f32 %v3421, %v3679
      %v3792 = vadd.f32 %v3422, %v3684
      %v3793 = vadd.f32 %v3423, %v3689
      %v3794 = vadd.f32 %v3424, %v3694
      %v3795 = vadd.f32 %v3425, %v3699
      %v3796 = vadd.f32 %v3426, %v3704
      %v3797 = vadd.f32 %v3427, %v3709
      %v3798 = vadd.f32 %v3428, %v3714
      %v3799 = vadd.f32 %v3429, %v3719
      %v3800 = vadd.f32 %v3430, %v3724
      %v3801 = vadd.f32 %v3431, %v3729
      %v3802 = vadd.f32 %v3432, %v3734
      %v3803 = vadd.f32 %v3433, %v3739
      %v3804 = vadd.f32 %v3434, %v3744
      %v3805 = vadd.f32 %v3435, %v3749
      %v3806 = vadd.f32 %v3436, %v3754
      %v3807 = vadd.f32 %v3437, %v3759
      %v3808 = vadd.f32 %v3438, %v3764
      %v3809 = vadd.f32 %v3439, %v3769
      %v3810 = vadd.f32 %v3440, %v3774
      %v3811 = vadd.f32 %v3441, %v3779
      %v3812 = vmax.f32 %v3782, 0.0
      %v3813 = vmax.f32 %v3783, 0.0
      %v3814 = vmax.f32 %v3784, 0.0
      %v3815 = vmax.f32 %v3785, 0.0
      %v3816 = vmax.f32 %v3786, 0.0
      %v3817 = vmax.f32 %v3787, 0.0
      %v3818 = vmax.f32 %v3788, 0.0
      %v3819 = vmax.f32 %v3789, 0.0
      %v3820 = vmax.f32 %v3790, 0.0
      %v3821 = vmax.f32 %v3791, 0.0
      %v3822 = vmax.f32 %v3792, 0.0
      %v3823 = vmax.f32 %v3793, 0.0
      %v3824 = vmax.f32 %v3794, 0.0
      %v3825 = vmax.f32 %v3795, 0.0
      %v3826 = vmax.f32 %v3796, 0.0
      %v3827 = vmax.f32 %v3797, 0.0
      %v3828 = vmax.f32 %v3798, 0.0
      %v3829 = vmax.f32 %v3799, 0.0
      %v3830 = vmax.f32 %v3800, 0.0
      %v3831 = vmax.f32 %v3801, 0.0
      %v3832 = vmax.f32 %v3802, 0.0
      %v3833 = vmax.f32 %v3803, 0.0
      %v3834 = vmax.f32 %v3804, 0.0
      %v3835 = vmax.f32 %v3805, 0.0
      %v3836 = vmax.f32 %v3806, 0.0
      %v3837 = vmax.f32 %v3807, 0.0
      %v3838 = vmax.f32 %v3808, 0.0
      %v3839 = vmax.f32 %v3809, 0.0
      %v3840 = vmax.f32 %v3810, 0.0
      %v3841 = vmax.f32 %v3811, 0.0
      %s3842 = smul.u32 %s22, 8
      %s3843 = ssub.s32 %s3842, 1
      %v3844 = vstv %s3843
      %v3845 = vadd.s32 %v3844, 1
      %v3846 = vadd.s32 %v3844, 2
      %v3847 = vadd.s32 %v3844, 3
      %v3848 = vadd.s32 %v3844, 4
      %v3849 = vadd.s32 %v3844, 5
      %v3850 = vadd.s32 %v3844, 6
      %v3851 = vadd.s32 %v3844, 7
      %v3852 = vadd.s32 %v3844, 8
      %v3853 = vadd.s32 %v3844, 9
      %v3854 = vlaneseq
      %v3855 = vshrl.u32 %v3854, 7
      %v3856 = vadd.s32 %v3855, 8
      %v3857 = vadd.s32 %v3855, 16
      %vm3858 = vcmp.ge.s32.totalorder %v3844, 0
      %vm3859 = vcmp.ge.s32.totalorder %v3845, 0
      %vm3860 = vcmp.ge.s32.totalorder %v3846, 0
      %vm3861 = vcmp.ge.s32.totalorder %v3847, 0
      %vm3862 = vcmp.ge.s32.totalorder %v3848, 0
      %vm3863 = vcmp.ge.s32.totalorder %v3849, 0
      %vm3864 = vcmp.ge.s32.totalorder %v3850, 0
      %vm3865 = vcmp.ge.s32.totalorder %v3851, 0
      %vm3866 = vcmp.ge.s32.totalorder %v3852, 0
      %vm3867 = vcmp.ge.s32.totalorder %v3853, 0
      %vm3868 = vcmp.lt.s32.totalorder %v3844, 16
      %vm3869 = vcmp.lt.s32.totalorder %v3845, 16
      %vm3870 = vcmp.lt.s32.totalorder %v3846, 16
      %vm3871 = vcmp.lt.s32.totalorder %v3847, 16
      %vm3872 = vcmp.lt.s32.totalorder %v3848, 16
      %vm3873 = vcmp.lt.s32.totalorder %v3849, 16
      %vm3874 = vcmp.lt.s32.totalorder %v3850, 16
      %vm3875 = vcmp.lt.s32.totalorder %v3851, 16
      %vm3876 = vcmp.lt.s32.totalorder %v3852, 16
      %vm3877 = vcmp.lt.s32.totalorder %v3853, 16
      %vm3878 = vmand %vm3858, %vm3868
      %vm3879 = vmand %vm3859, %vm3869
      %vm3880 = vmand %vm3860, %vm3870
      %vm3881 = vmand %vm3861, %vm3871
      %vm3882 = vmand %vm3862, %vm3872
      %vm3883 = vmand %vm3863, %vm3873
      %vm3884 = vmand %vm3864, %vm3874
      %vm3885 = vmand %vm3865, %vm3875
      %vm3886 = vmand %vm3866, %vm3876
      %vm3887 = vmand %vm3867, %vm3877
      %vm3888 = vcmp.ge.s32.totalorder %v3855, 1
      %vm3889 = vcmp.ge.s32.totalorder %v3856, 1
      %vm3890 = vcmp.ge.s32.totalorder %v3857, 1
      %vm3891 = vmand %vm3878, %vm3888
      %vm3892 = vmand %vm3878, %vm3889
      %vm3893 = vmand %vm3878, %vm3890
      %vm3894 = vmand %vm3879, %vm3888
      %vm3895 = vmand %vm3879, %vm3889
      %vm3896 = vmand %vm3879, %vm3890
      %vm3897 = vmand %vm3880, %vm3888
      %vm3898 = vmand %vm3880, %vm3889
      %vm3899 = vmand %vm3880, %vm3890
      %vm3900 = vmand %vm3881, %vm3888
      %vm3901 = vmand %vm3881, %vm3889
      %vm3902 = vmand %vm3881, %vm3890
      %vm3903 = vmand %vm3882, %vm3888
      %vm3904 = vmand %vm3882, %vm3889
      %vm3905 = vmand %vm3882, %vm3890
      %vm3906 = vmand %vm3883, %vm3888
      %vm3907 = vmand %vm3883, %vm3889
      %vm3908 = vmand %vm3883, %vm3890
      %vm3909 = vmand %vm3884, %vm3888
      %vm3910 = vmand %vm3884, %vm3889
      %vm3911 = vmand %vm3884, %vm3890
      %vm3912 = vmand %vm3885, %vm3888
      %vm3913 = vmand %vm3885, %vm3889
      %vm3914 = vmand %vm3885, %vm3890
      %vm3915 = vmand %vm3886, %vm3888
      %vm3916 = vmand %vm3886, %vm3889
      %vm3917 = vmand %vm3886, %vm3890
      %vm3918 = vmand %vm3887, %vm3888
      %vm3919 = vmand %vm3887, %vm3889
      %vm3920 = vmand %vm3887, %vm3890
      %vm3921 = vcmp.le.s32.totalorder %v3855, 16
      %vm3922 = vcmp.le.s32.totalorder %v3856, 16
      %vm3923 = vcmp.le.s32.totalorder %v3857, 16
      %vm3924 = vmand %vm3891, %vm3921
      %vm3925 = vmand %vm3892, %vm3922
      %vm3926 = vmand %vm3893, %vm3923
      %vm3927 = vmand %vm3894, %vm3921
      %vm3928 = vmand %vm3895, %vm3922
      %vm3929 = vmand %vm3896, %vm3923
      %vm3930 = vmand %vm3897, %vm3921
      %vm3931 = vmand %vm3898, %vm3922
      %vm3932 = vmand %vm3899, %vm3923
      %vm3933 = vmand %vm3900, %vm3921
      %vm3934 = vmand %vm3901, %vm3922
      %vm3935 = vmand %vm3902, %vm3923
      %vm3936 = vmand %vm3903, %vm3921
      %vm3937 = vmand %vm3904, %vm3922
      %vm3938 = vmand %vm3905, %vm3923
      %vm3939 = vmand %vm3906, %vm3921
      %vm3940 = vmand %vm3907, %vm3922
      %vm3941 = vmand %vm3908, %vm3923
      %vm3942 = vmand %vm3909, %vm3921
      %vm3943 = vmand %vm3910, %vm3922
      %vm3944 = vmand %vm3911, %vm3923
      %vm3945 = vmand %vm3912, %vm3921
      %vm3946 = vmand %vm3913, %vm3922
      %vm3947 = vmand %vm3914, %vm3923
      %vm3948 = vmand %vm3915, %vm3921
      %vm3949 = vmand %vm3916, %vm3922
      %vm3950 = vmand %vm3917, %vm3923
      %vm3951 = vmand %vm3918, %vm3921
      %vm3952 = vmand %vm3919, %vm3922
      %vm3953 = vmand %vm3920, %vm3923
      %v3954 = vsel %vm3924, %v3812, 0.0
      %v3955 = vsel %vm3925, %v3813, 0.0
      %v3956 = vsel %vm3926, %v3814, 0.0
      %v3957 = vsel %vm3927, %v3815, 0.0
      %v3958 = vsel %vm3928, %v3816, 0.0
      %v3959 = vsel %vm3929, %v3817, 0.0
      %v3960 = vsel %vm3930, %v3818, 0.0
      %v3961 = vsel %vm3931, %v3819, 0.0
      %v3962 = vsel %vm3932, %v3820, 0.0
      %v3963 = vsel %vm3933, %v3821, 0.0
      %v3964 = vsel %vm3934, %v3822, 0.0
      %v3965 = vsel %vm3935, %v3823, 0.0
      %v3966 = vsel %vm3936, %v3824, 0.0
      %v3967 = vsel %vm3937, %v3825, 0.0
      %v3968 = vsel %vm3938, %v3826, 0.0
      %v3969 = vsel %vm3939, %v3827, 0.0
      %v3970 = vsel %vm3940, %v3828, 0.0
      %v3971 = vsel %vm3941, %v3829, 0.0
      %v3972 = vsel %vm3942, %v3830, 0.0
      %v3973 = vsel %vm3943, %v3831, 0.0
      %v3974 = vsel %vm3944, %v3832, 0.0
      %v3975 = vsel %vm3945, %v3833, 0.0
      %v3976 = vsel %vm3946, %v3834, 0.0
      %v3977 = vsel %vm3947, %v3835, 0.0
      %v3978 = vsel %vm3948, %v3836, 0.0
      %v3979 = vsel %vm3949, %v3837, 0.0
      %v3980 = vsel %vm3950, %v3838, 0.0
      %v3981 = vsel %vm3951, %v3839, 0.0
      %v3982 = vsel %vm3952, %v3840, 0.0
      %v3983 = vsel %vm3953, %v3841, 0.0
      %3984 = vst.msk [vmem:[#allocation3] sm:$0xff] %vm406, %v3954
      %3985 = vst.msk [vmem:[#allocation3 + $0x8] sm:$0xff] %vm406, %v3955
      %3986 = vst.msk [vmem:[#allocation3 + $0x10] sm:$0xff] %vm406, %v3956
      %3987 = vst.msk [vmem:[#allocation3 + $0x18] sm:$0xff] %vm406, %v3957
      %3988 = vst.msk [vmem:[#allocation3 + $0x20] sm:$0xff] %vm406, %v3958
      %3989 = vst.msk [vmem:[#allocation3 + $0x28] sm:$0xff] %vm406, %v3959
      %3990 = vst.msk [vmem:[#allocation3 + $0x30] sm:$0xff] %vm406, %v3960
      %3991 = vst.msk [vmem:[#allocation3 + $0x38] sm:$0xff] %vm406, %v3961
      %3992 = vst.msk [vmem:[#allocation3 + $0x40] sm:$0xff] %vm406, %v3962
      %3993 = vst.msk [vmem:[#allocation3 + $0x48] sm:$0xff] %vm406, %v3963
      %3994 = vst.msk [vmem:[#allocation3 + $0x50] sm:$0xff] %vm406, %v3964
      %3995 = vst.msk [vmem:[#allocation3 + $0x58] sm:$0xff] %vm406, %v3965
      %3996 = vst.msk [vmem:[#allocation3 + $0x60] sm:$0xff] %vm406, %v3966
      %3997 = vst.msk [vmem:[#allocation3 + $0x68] sm:$0xff] %vm406, %v3967
      %3998 = vst.msk [vmem:[#allocation3 + $0x70] sm:$0xff] %vm406, %v3968
      %3999 = vst.msk [vmem:[#allocation3 + $0x78] sm:$0xff] %vm406, %v3969
      %4000 = vst.msk [vmem:[#allocation3 + $0x80] sm:$0xff] %vm406, %v3970
      %4001 = vst.msk [vmem:[#allocation3 + $0x88] sm:$0xff] %vm406, %v3971
      %4002 = vst.msk [vmem:[#allocation3 + $0x90] sm:$0xff] %vm406, %v3972
      %4003 = vst.msk [vmem:[#allocation3 + $0x98] sm:$0xff] %vm406, %v3973
      %4004 = vst.msk [vmem:[#allocation3 + $0xa0] sm:$0xff] %vm406, %v3974
      %4005 = vst.msk [vmem:[#allocation3 + $0xa8] sm:$0xff] %vm406, %v3975
      %4006 = vst.msk [vmem:[#allocation3 + $0xb0] sm:$0xff] %vm406, %v3976
      %4007 = vst.msk [vmem:[#allocation3 + $0xb8] sm:$0xff] %vm406, %v3977
      %4008 = vst.msk [vmem:[#allocation3 + $0xc0] sm:$0xff] %vm406, %v3978
      %4009 = vst.msk [vmem:[#allocation3 + $0xc8] sm:$0xff] %vm406, %v3979
      %4010 = vst.msk [vmem:[#allocation3 + $0xd0] sm:$0xff] %vm406, %v3980
      %4011 = vst.msk [vmem:[#allocation3 + $0xd8] sm:$0xff] %vm406, %v3981
      %4012 = vst.msk [vmem:[#allocation3 + $0xe0] sm:$0xff] %vm406, %v3982
      %4013 = vst.msk [vmem:[#allocation3 + $0xe8] sm:$0xff] %vm406, %v3983
      %v4014 = vld [vmem:[%s5] sm:$0x1]
      %v4016 = vlaneseq
      %v4017 = vshrl.u32 %v4016, 7
      %v4018 = vsub.s32 0, %v4017
      %v4019 = vrot.slane %v4014, %v4018
      %v4021 = vld [vmem:[#allocation3] sm:$0xff]
      %v4022 = vld [vmem:[#allocation3 + $0x8] sm:$0xff]
      %v4023 = vld [vmem:[#allocation3 + $0x18] sm:$0xff]
      %v4024 = vld [vmem:[#allocation3 + $0x20] sm:$0xff]
      %v4025 = vld [vmem:[#allocation3 + $0x30] sm:$0xff]
      %v4026 = vld [vmem:[#allocation3 + $0x38] sm:$0xff]
      %v4027 = vld [vmem:[#allocation3 + $0x48] sm:$0xff]
      %v4028 = vld [vmem:[#allocation3 + $0x50] sm:$0xff]
      %v4029 = vld [vmem:[#allocation3 + $0x60] sm:$0xff]
      %v4030 = vld [vmem:[#allocation3 + $0x68] sm:$0xff]
      %v4031 = vld [vmem:[#allocation3 + $0x78] sm:$0xff]
      %v4032 = vld [vmem:[#allocation3 + $0x80] sm:$0xff]
      %v4033 = vld [vmem:[#allocation3 + $0x90] sm:$0xff]
      %v4034 = vld [vmem:[#allocation3 + $0x98] sm:$0xff]
      %v4035 = vld [vmem:[#allocation3 + $0xa8] sm:$0xff]
      %v4036 = vld [vmem:[#allocation3 + $0xb0] sm:$0xff]
      %v4037 = vld [vmem:[%s4] sm:$0xf]
      %v4039 = vsel %vm406, %v4021, 0
      %v4042 = vsel %vm406, %v4022, 0
      %v4045 = vsel %vm406, %v4023, 0
      %v4048 = vsel %vm406, %v4024, 0
      %v4051 = vsel %vm406, %v4025, 0
      %v4054 = vsel %vm406, %v4026, 0
      %v4057 = vsel %vm406, %v4027, 0
      %v4060 = vsel %vm406, %v4028, 0
      %v4063 = vsel %vm406, %v4029, 0
      %v4066 = vsel %vm406, %v4030, 0
      %v4069 = vsel %vm406, %v4031, 0
      %v4072 = vsel %vm406, %v4032, 0
      %v4075 = vsel %vm406, %v4033, 0
      %v4078 = vsel %vm406, %v4034, 0
      %v4081 = vsel %vm406, %v4035, 0
      %v4084 = vsel %vm406, %v4036, 0
      %v4087 = vsel %vm601, %v4037, 0
      %4089 = vmatprep.subr.mxu0 0.0
      %4090 = vmatpush1.msra.mxu0 0.0
      %4091 = vmatprep.subr.mxu0 0.0
      %4092 = vmatpush1.msra.mxu0 0.0
      %4093 = vmatprep.subr.mxu0 0.0
      %4094 = vmatpush1.msra.mxu0 0.0
      %4095 = vmatprep.subr.mxu0 0.0
      %4096 = vmatpush1.msra.mxu0 0.0
      %4097 = vmatprep.subr.mxu0 0.0
      %4098 = vmatpush1.msra.mxu0 0.0
      %4099 = vmatprep.subr.mxu0 0.0
      %4100 = vmatpush1.msra.mxu0 0.0
      %4101 = vmatprep.subr.mxu0 0.0
      %4102 = vmatpush1.msra.mxu0 0.0
      %4103 = vmatprep.subr.mxu0 0.0
      %4104 = vmatpush1.msra.mxu0 0.0
      %4105 = vmatprep.subr.mxu0 0.0
      %4106 = vmatpush1.msra.mxu0 0.0
      %4107 = vmatprep.subr.mxu0 0.0
      %4108 = vmatpush1.msra.mxu0 0.0
      %4109 = vmatprep.subr.mxu0 0.0
      %4110 = vmatpush1.msra.mxu0 0.0
      %4111 = vmatprep.subr.mxu0 0.0
      %4112 = vmatpush1.msra.mxu0 0.0
      %4113 = vmatprep.subr.mxu0 0.0
      %4114 = vmatpush1.msra.mxu0 0.0
      %4115 = vmatprep.subr.mxu0 0.0
      %4116 = vmatpush1.msra.mxu0 0.0
      %4117 = vmatprep.subr.mxu0 0.0
      %4118 = vmatpush1.msra.mxu0 0.0
      %4119 = vmatprep.subr.mxu0 0.0
      %4120 = vmatpush1.msra.mxu0 %v4087
      %4121 = vmatprep.subr.mxu0 0.0
      %4122 = vmatpush2.msra.mxu0 0.0
      %4123 = vmatprep.subr.mxu0 0.0
      %4124 = vmatpush2.msra.mxu0 0.0
      %4125 = vmatprep.subr.mxu0 0.0
      %4126 = vmatpush2.msra.mxu0 0.0
      %4127 = vmatprep.subr.mxu0 0.0
      %4128 = vmatpush2.msra.mxu0 0.0
      %4129 = vmatprep.subr.mxu0 0.0
      %4130 = vmatpush2.msra.mxu0 0.0
      %4131 = vmatprep.subr.mxu0 0.0
      %4132 = vmatpush2.msra.mxu0 0.0
      %4133 = vmatprep.subr.mxu0 0.0
      %4134 = vmatpush2.msra.mxu0 0.0
      %4135 = vmatprep.subr.mxu0 0.0
      %4136 = vmatpush2.msra.mxu0 0.0
      %4137 = vmatprep.subr.mxu0 0.0
      %4138 = vmatpush2.msra.mxu0 0.0
      %4139 = vmatprep.subr.mxu0 0.0
      %4140 = vmatpush2.msra.mxu0 0.0
      %4141 = vmatprep.subr.mxu0 0.0
      %4142 = vmatpush2.msra.mxu0 0.0
      %4143 = vmatprep.subr.mxu0 0.0
      %4144 = vmatpush2.msra.mxu0 0.0
      %4145 = vmatprep.subr.mxu0 0.0
      %4146 = vmatpush2.msra.mxu0 0.0
      %4147 = vmatprep.subr.mxu0 0.0
      %4148 = vmatpush2.msra.mxu0 0.0
      %4149 = vmatprep.subr.mxu0 0.0
      %4150 = vmatpush2.msra.mxu0 0.0
      %4151 = vmatprep.subr.mxu0 0.0
      %4152 = vmatpush2.msra.mxu0 0.0
      %4153 = vmatprep.mubr.f32.mxu0 0.0
      %4154 = vmatmul.mubr.f32.gmra.mxu0 %v4039
      %v4155 = vpop.f32.mrf.mxu0
      %v4156 = vadd.f32 0.0, %v4155
      %v4157 = vpop.f32.mrf.mxu0
      %4158 = vmatprep.mubr.f32.mxu0 0.0
      %4159 = vmatmul.mubr.f32.gmra.mxu0 %v4042
      %v4160 = vpop.f32.mrf.mxu0
      %v4161 = vadd.f32 0.0, %v4160
      %v4162 = vpop.f32.mrf.mxu0
      %4163 = vmatprep.mubr.f32.mxu0 0.0
      %4164 = vmatmul.mubr.f32.gmra.mxu0 %v4045
      %v4165 = vpop.f32.mrf.mxu0
      %v4166 = vadd.f32 0.0, %v4165
      %v4167 = vpop.f32.mrf.mxu0
      %4168 = vmatprep.mubr.f32.mxu0 0.0
      %4169 = vmatmul.mubr.f32.gmra.mxu0 %v4048
      %v4170 = vpop.f32.mrf.mxu0
      %v4171 = vadd.f32 0.0, %v4170
      %v4172 = vpop.f32.mrf.mxu0
      %4173 = vmatprep.mubr.f32.mxu0 0.0
      %4174 = vmatmul.mubr.f32.gmra.mxu0 %v4051
      %v4175 = vpop.f32.mrf.mxu0
      %v4176 = vadd.f32 0.0, %v4175
      %v4177 = vpop.f32.mrf.mxu0
      %4178 = vmatprep.mubr.f32.mxu0 0.0
      %4179 = vmatmul.mubr.f32.gmra.mxu0 %v4054
      %v4180 = vpop.f32.mrf.mxu0
      %v4181 = vadd.f32 0.0, %v4180
      %v4182 = vpop.f32.mrf.mxu0
      %4183 = vmatprep.mubr.f32.mxu0 0.0
      %4184 = vmatmul.mubr.f32.gmra.mxu0 %v4057
      %v4185 = vpop.f32.mrf.mxu0
      %v4186 = vadd.f32 0.0, %v4185
      %v4187 = vpop.f32.mrf.mxu0
      %4188 = vmatprep.mubr.f32.mxu0 0.0
      %4189 = vmatmul.mubr.f32.gmra.mxu0 %v4060
      %v4190 = vpop.f32.mrf.mxu0
      %v4191 = vadd.f32 0.0, %v4190
      %v4192 = vpop.f32.mrf.mxu0
      %4193 = vmatprep.mubr.f32.mxu0 0.0
      %4194 = vmatmul.mubr.f32.gmra.mxu0 %v4063
      %v4195 = vpop.f32.mrf.mxu0
      %v4196 = vadd.f32 0.0, %v4195
      %v4197 = vpop.f32.mrf.mxu0
      %4198 = vmatprep.mubr.f32.mxu0 0.0
      %4199 = vmatmul.mubr.f32.gmra.mxu0 %v4066
      %v4200 = vpop.f32.mrf.mxu0
      %v4201 = vadd.f32 0.0, %v4200
      %v4202 = vpop.f32.mrf.mxu0
      %4203 = vmatprep.mubr.f32.mxu0 0.0
      %4204 = vmatmul.mubr.f32.gmra.mxu0 %v4069
      %v4205 = vpop.f32.mrf.mxu0
      %v4206 = vadd.f32 0.0, %v4205
      %v4207 = vpop.f32.mrf.mxu0
      %4208 = vmatprep.mubr.f32.mxu0 0.0
      %4209 = vmatmul.mubr.f32.gmra.mxu0 %v4072
      %v4210 = vpop.f32.mrf.mxu0
      %v4211 = vadd.f32 0.0, %v4210
      %v4212 = vpop.f32.mrf.mxu0
      %4213 = vmatprep.mubr.f32.mxu0 0.0
      %4214 = vmatmul.mubr.f32.gmra.mxu0 %v4075
      %v4215 = vpop.f32.mrf.mxu0
      %v4216 = vadd.f32 0.0, %v4215
      %v4217 = vpop.f32.mrf.mxu0
      %4218 = vmatprep.mubr.f32.mxu0 0.0
      %4219 = vmatmul.mubr.f32.gmra.mxu0 %v4078
      %v4220 = vpop.f32.mrf.mxu0
      %v4221 = vadd.f32 0.0, %v4220
      %v4222 = vpop.f32.mrf.mxu0
      %4223 = vmatprep.mubr.f32.mxu0 0.0
      %4224 = vmatmul.mubr.f32.gmra.mxu0 %v4081
      %v4225 = vpop.f32.mrf.mxu0
      %v4226 = vadd.f32 0.0, %v4225
      %v4227 = vpop.f32.mrf.mxu0
      %4228 = vmatprep.mubr.f32.mxu0 0.0
      %4229 = vmatmul.mubr.f32.gmra.mxu0 %v4084
      %v4230 = vpop.f32.mrf.mxu0
      %v4231 = vadd.f32 0.0, %v4230
      %v4232 = vpop.f32.mrf.mxu0
      %4233 = vdwg.mxu0
      %v4234 = vadd.f32 %v4019, %v4156
      %v4235 = vadd.f32 %v4019, %v4161
      %v4236 = vadd.f32 %v4019, %v4166
      %v4237 = vadd.f32 %v4019, %v4171
      %v4238 = vadd.f32 %v4019, %v4176
      %v4239 = vadd.f32 %v4019, %v4181
      %v4240 = vadd.f32 %v4019, %v4186
      %v4241 = vadd.f32 %v4019, %v4191
      %v4242 = vadd.f32 %v4019, %v4196
      %v4243 = vadd.f32 %v4019, %v4201
      %v4244 = vadd.f32 %v4019, %v4206
      %v4245 = vadd.f32 %v4019, %v4211
      %v4246 = vadd.f32 %v4019, %v4216
      %v4247 = vadd.f32 %v4019, %v4221
      %v4248 = vadd.f32 %v4019, %v4226
      %v4249 = vadd.f32 %v4019, %v4231
      %v4250 = vld [vmem:[#allocation3 + $0x1] sm:$0xff]
      %v4251 = vld [vmem:[#allocation3 + $0x9] sm:$0xff]
      %v4252 = vld [vmem:[#allocation3 + $0x19] sm:$0xff]
      %v4253 = vld [vmem:[#allocation3 + $0x21] sm:$0xff]
      %v4254 = vld [vmem:[#allocation3 + $0x31] sm:$0xff]
      %v4255 = vld [vmem:[#allocation3 + $0x39] sm:$0xff]
      %v4256 = vld [vmem:[#allocation3 + $0x49] sm:$0xff]
      %v4257 = vld [vmem:[#allocation3 + $0x51] sm:$0xff]
      %v4258 = vld [vmem:[#allocation3 + $0x61] sm:$0xff]
      %v4259 = vld [vmem:[#allocation3 + $0x69] sm:$0xff]
      %v4260 = vld [vmem:[#allocation3 + $0x79] sm:$0xff]
      %v4261 = vld [vmem:[#allocation3 + $0x81] sm:$0xff]
      %v4262 = vld [vmem:[#allocation3 + $0x91] sm:$0xff]
      %v4263 = vld [vmem:[#allocation3 + $0x99] sm:$0xff]
      %v4264 = vld [vmem:[#allocation3 + $0xa9] sm:$0xff]
      %v4265 = vld [vmem:[#allocation3 + $0xb1] sm:$0xff]
      %s4266 = scalar_lea.vmem %s4, 4
      %v4267 = vld [vmem:[%s4266] sm:$0xf]
      %v4269 = vsel %vm406, %v4250, 0
      %v4272 = vsel %vm406, %v4251, 0
      %v4275 = vsel %vm406, %v4252, 0
      %v4278 = vsel %vm406, %v4253, 0
      %v4281 = vsel %vm406, %v4254, 0
      %v4284 = vsel %vm406, %v4255, 0
      %v4287 = vsel %vm406, %v4256, 0
      %v4290 = vsel %vm406, %v4257, 0
      %v4293 = vsel %vm406, %v4258, 0
      %v4296 = vsel %vm406, %v4259, 0
      %v4299 = vsel %vm406, %v4260, 0
      %v4302 = vsel %vm406, %v4261, 0
      %v4305 = vsel %vm406, %v4262, 0
      %v4308 = vsel %vm406, %v4263, 0
      %v4311 = vsel %vm406, %v4264, 0
      %v4314 = vsel %vm406, %v4265, 0
      %v4317 = vsel %vm601, %v4267, 0
      %4319 = vmatprep.subr.mxu0 0.0
      %4320 = vmatpush1.msra.mxu0 0.0
      %4321 = vmatprep.subr.mxu0 0.0
      %4322 = vmatpush1.msra.mxu0 0.0
      %4323 = vmatprep.subr.mxu0 0.0
      %4324 = vmatpush1.msra.mxu0 0.0
      %4325 = vmatprep.subr.mxu0 0.0
      %4326 = vmatpush1.msra.mxu0 0.0
      %4327 = vmatprep.subr.mxu0 0.0
      %4328 = vmatpush1.msra.mxu0 0.0
      %4329 = vmatprep.subr.mxu0 0.0
      %4330 = vmatpush1.msra.mxu0 0.0
      %4331 = vmatprep.subr.mxu0 0.0
      %4332 = vmatpush1.msra.mxu0 0.0
      %4333 = vmatprep.subr.mxu0 0.0
      %4334 = vmatpush1.msra.mxu0 0.0
      %4335 = vmatprep.subr.mxu0 0.0
      %4336 = vmatpush1.msra.mxu0 0.0
      %4337 = vmatprep.subr.mxu0 0.0
      %4338 = vmatpush1.msra.mxu0 0.0
      %4339 = vmatprep.subr.mxu0 0.0
      %4340 = vmatpush1.msra.mxu0 0.0
      %4341 = vmatprep.subr.mxu0 0.0
      %4342 = vmatpush1.msra.mxu0 0.0
      %4343 = vmatprep.subr.mxu0 0.0
      %4344 = vmatpush1.msra.mxu0 0.0
      %4345 = vmatprep.subr.mxu0 0.0
      %4346 = vmatpush1.msra.mxu0 0.0
      %4347 = vmatprep.subr.mxu0 0.0
      %4348 = vmatpush1.msra.mxu0 0.0
      %4349 = vmatprep.subr.mxu0 0.0
      %4350 = vmatpush1.msra.mxu0 %v4317
      %4351 = vmatprep.subr.mxu0 0.0
      %4352 = vmatpush2.msra.mxu0 0.0
      %4353 = vmatprep.subr.mxu0 0.0
      %4354 = vmatpush2.msra.mxu0 0.0
      %4355 = vmatprep.subr.mxu0 0.0
      %4356 = vmatpush2.msra.mxu0 0.0
      %4357 = vmatprep.subr.mxu0 0.0
      %4358 = vmatpush2.msra.mxu0 0.0
      %4359 = vmatprep.subr.mxu0 0.0
      %4360 = vmatpush2.msra.mxu0 0.0
      %4361 = vmatprep.subr.mxu0 0.0
      %4362 = vmatpush2.msra.mxu0 0.0
      %4363 = vmatprep.subr.mxu0 0.0
      %4364 = vmatpush2.msra.mxu0 0.0
      %4365 = vmatprep.subr.mxu0 0.0
      %4366 = vmatpush2.msra.mxu0 0.0
      %4367 = vmatprep.subr.mxu0 0.0
      %4368 = vmatpush2.msra.mxu0 0.0
      %4369 = vmatprep.subr.mxu0 0.0
      %4370 = vmatpush2.msra.mxu0 0.0
      %4371 = vmatprep.subr.mxu0 0.0
      %4372 = vmatpush2.msra.mxu0 0.0
      %4373 = vmatprep.subr.mxu0 0.0
      %4374 = vmatpush2.msra.mxu0 0.0
      %4375 = vmatprep.subr.mxu0 0.0
      %4376 = vmatpush2.msra.mxu0 0.0
      %4377 = vmatprep.subr.mxu0 0.0
      %4378 = vmatpush2.msra.mxu0 0.0
      %4379 = vmatprep.subr.mxu0 0.0
      %4380 = vmatpush2.msra.mxu0 0.0
      %4381 = vmatprep.subr.mxu0 0.0
      %4382 = vmatpush2.msra.mxu0 0.0
      %4383 = vmatprep.mubr.f32.mxu0 0.0
      %4384 = vmatmul.mubr.f32.gmra.mxu0 %v4269
      %v4385 = vpop.f32.mrf.mxu0
      %v4386 = vadd.f32 0.0, %v4385
      %v4387 = vpop.f32.mrf.mxu0
      %4388 = vmatprep.mubr.f32.mxu0 0.0
      %4389 = vmatmul.mubr.f32.gmra.mxu0 %v4272
      %v4390 = vpop.f32.mrf.mxu0
      %v4391 = vadd.f32 0.0, %v4390
      %v4392 = vpop.f32.mrf.mxu0
      %4393 = vmatprep.mubr.f32.mxu0 0.0
      %4394 = vmatmul.mubr.f32.gmra.mxu0 %v4275
      %v4395 = vpop.f32.mrf.mxu0
      %v4396 = vadd.f32 0.0, %v4395
      %v4397 = vpop.f32.mrf.mxu0
      %4398 = vmatprep.mubr.f32.mxu0 0.0
      %4399 = vmatmul.mubr.f32.gmra.mxu0 %v4278
      %v4400 = vpop.f32.mrf.mxu0
      %v4401 = vadd.f32 0.0, %v4400
      %v4402 = vpop.f32.mrf.mxu0
      %4403 = vmatprep.mubr.f32.mxu0 0.0
      %4404 = vmatmul.mubr.f32.gmra.mxu0 %v4281
      %v4405 = vpop.f32.mrf.mxu0
      %v4406 = vadd.f32 0.0, %v4405
      %v4407 = vpop.f32.mrf.mxu0
      %4408 = vmatprep.mubr.f32.mxu0 0.0
      %4409 = vmatmul.mubr.f32.gmra.mxu0 %v4284
      %v4410 = vpop.f32.mrf.mxu0
      %v4411 = vadd.f32 0.0, %v4410
      %v4412 = vpop.f32.mrf.mxu0
      %4413 = vmatprep.mubr.f32.mxu0 0.0
      %4414 = vmatmul.mubr.f32.gmra.mxu0 %v4287
      %v4415 = vpop.f32.mrf.mxu0
      %v4416 = vadd.f32 0.0, %v4415
      %v4417 = vpop.f32.mrf.mxu0
      %4418 = vmatprep.mubr.f32.mxu0 0.0
      %4419 = vmatmul.mubr.f32.gmra.mxu0 %v4290
      %v4420 = vpop.f32.mrf.mxu0
      %v4421 = vadd.f32 0.0, %v4420
      %v4422 = vpop.f32.mrf.mxu0
      %4423 = vmatprep.mubr.f32.mxu0 0.0
      %4424 = vmatmul.mubr.f32.gmra.mxu0 %v4293
      %v4425 = vpop.f32.mrf.mxu0
      %v4426 = vadd.f32 0.0, %v4425
      %v4427 = vpop.f32.mrf.mxu0
      %4428 = vmatprep.mubr.f32.mxu0 0.0
      %4429 = vmatmul.mubr.f32.gmra.mxu0 %v4296
      %v4430 = vpop.f32.mrf.mxu0
      %v4431 = vadd.f32 0.0, %v4430
      %v4432 = vpop.f32.mrf.mxu0
      %4433 = vmatprep.mubr.f32.mxu0 0.0
      %4434 = vmatmul.mubr.f32.gmra.mxu0 %v4299
      %v4435 = vpop.f32.mrf.mxu0
      %v4436 = vadd.f32 0.0, %v4435
      %v4437 = vpop.f32.mrf.mxu0
      %4438 = vmatprep.mubr.f32.mxu0 0.0
      %4439 = vmatmul.mubr.f32.gmra.mxu0 %v4302
      %v4440 = vpop.f32.mrf.mxu0
      %v4441 = vadd.f32 0.0, %v4440
      %v4442 = vpop.f32.mrf.mxu0
      %4443 = vmatprep.mubr.f32.mxu0 0.0
      %4444 = vmatmul.mubr.f32.gmra.mxu0 %v4305
      %v4445 = vpop.f32.mrf.mxu0
      %v4446 = vadd.f32 0.0, %v4445
      %v4447 = vpop.f32.mrf.mxu0
      %4448 = vmatprep.mubr.f32.mxu0 0.0
      %4449 = vmatmul.mubr.f32.gmra.mxu0 %v4308
      %v4450 = vpop.f32.mrf.mxu0
      %v4451 = vadd.f32 0.0, %v4450
      %v4452 = vpop.f32.mrf.mxu0
      %4453 = vmatprep.mubr.f32.mxu0 0.0
      %4454 = vmatmul.mubr.f32.gmra.mxu0 %v4311
      %v4455 = vpop.f32.mrf.mxu0
      %v4456 = vadd.f32 0.0, %v4455
      %v4457 = vpop.f32.mrf.mxu0
      %4458 = vmatprep.mubr.f32.mxu0 0.0
      %4459 = vmatmul.mubr.f32.gmra.mxu0 %v4314
      %v4460 = vpop.f32.mrf.mxu0
      %v4461 = vadd.f32 0.0, %v4460
      %v4462 = vpop.f32.mrf.mxu0
      %4463 = vdwg.mxu0
      %v4464 = vadd.f32 %v4234, %v4386
      %v4465 = vadd.f32 %v4235, %v4391
      %v4466 = vadd.f32 %v4236, %v4396
      %v4467 = vadd.f32 %v4237, %v4401
      %v4468 = vadd.f32 %v4238, %v4406
      %v4469 = vadd.f32 %v4239, %v4411
      %v4470 = vadd.f32 %v4240, %v4416
      %v4471 = vadd.f32 %v4241, %v4421
      %v4472 = vadd.f32 %v4242, %v4426
      %v4473 = vadd.f32 %v4243, %v4431
      %v4474 = vadd.f32 %v4244, %v4436
      %v4475 = vadd.f32 %v4245, %v4441
      %v4476 = vadd.f32 %v4246, %v4446
      %v4477 = vadd.f32 %v4247, %v4451
      %v4478 = vadd.f32 %v4248, %v4456
      %v4479 = vadd.f32 %v4249, %v4461
      %v4480 = vld [vmem:[#allocation3 + $0x2] sm:$0xff]
      %v4481 = vld [vmem:[#allocation3 + $0xa] sm:$0xff]
      %v4482 = vld [vmem:[#allocation3 + $0x1a] sm:$0xff]
      %v4483 = vld [vmem:[#allocation3 + $0x22] sm:$0xff]
      %v4484 = vld [vmem:[#allocation3 + $0x32] sm:$0xff]
      %v4485 = vld [vmem:[#allocation3 + $0x3a] sm:$0xff]
      %v4486 = vld [vmem:[#allocation3 + $0x4a] sm:$0xff]
      %v4487 = vld [vmem:[#allocation3 + $0x52] sm:$0xff]
      %v4488 = vld [vmem:[#allocation3 + $0x62] sm:$0xff]
      %v4489 = vld [vmem:[#allocation3 + $0x6a] sm:$0xff]
      %v4490 = vld [vmem:[#allocation3 + $0x7a] sm:$0xff]
      %v4491 = vld [vmem:[#allocation3 + $0x82] sm:$0xff]
      %v4492 = vld [vmem:[#allocation3 + $0x92] sm:$0xff]
      %v4493 = vld [vmem:[#allocation3 + $0x9a] sm:$0xff]
      %v4494 = vld [vmem:[#allocation3 + $0xaa] sm:$0xff]
      %v4495 = vld [vmem:[#allocation3 + $0xb2] sm:$0xff]
      %s4496 = scalar_lea.vmem %s4, 8
      %v4497 = vld [vmem:[%s4496] sm:$0xf]
      %v4499 = vsel %vm406, %v4480, 0
      %v4502 = vsel %vm406, %v4481, 0
      %v4505 = vsel %vm406, %v4482, 0
      %v4508 = vsel %vm406, %v4483, 0
      %v4511 = vsel %vm406, %v4484, 0
      %v4514 = vsel %vm406, %v4485, 0
      %v4517 = vsel %vm406, %v4486, 0
      %v4520 = vsel %vm406, %v4487, 0
      %v4523 = vsel %vm406, %v4488, 0
      %v4526 = vsel %vm406, %v4489, 0
      %v4529 = vsel %vm406, %v4490, 0
      %v4532 = vsel %vm406, %v4491, 0
      %v4535 = vsel %vm406, %v4492, 0
      %v4538 = vsel %vm406, %v4493, 0
      %v4541 = vsel %vm406, %v4494, 0
      %v4544 = vsel %vm406, %v4495, 0
      %v4547 = vsel %vm601, %v4497, 0
      %4549 = vmatprep.subr.mxu0 0.0
      %4550 = vmatpush1.msra.mxu0 0.0
      %4551 = vmatprep.subr.mxu0 0.0
      %4552 = vmatpush1.msra.mxu0 0.0
      %4553 = vmatprep.subr.mxu0 0.0
      %4554 = vmatpush1.msra.mxu0 0.0
      %4555 = vmatprep.subr.mxu0 0.0
      %4556 = vmatpush1.msra.mxu0 0.0
      %4557 = vmatprep.subr.mxu0 0.0
      %4558 = vmatpush1.msra.mxu0 0.0
      %4559 = vmatprep.subr.mxu0 0.0
      %4560 = vmatpush1.msra.mxu0 0.0
      %4561 = vmatprep.subr.mxu0 0.0
      %4562 = vmatpush1.msra.mxu0 0.0
      %4563 = vmatprep.subr.mxu0 0.0
      %4564 = vmatpush1.msra.mxu0 0.0
      %4565 = vmatprep.subr.mxu0 0.0
      %4566 = vmatpush1.msra.mxu0 0.0
      %4567 = vmatprep.subr.mxu0 0.0
      %4568 = vmatpush1.msra.mxu0 0.0
      %4569 = vmatprep.subr.mxu0 0.0
      %4570 = vmatpush1.msra.mxu0 0.0
      %4571 = vmatprep.subr.mxu0 0.0
      %4572 = vmatpush1.msra.mxu0 0.0
      %4573 = vmatprep.subr.mxu0 0.0
      %4574 = vmatpush1.msra.mxu0 0.0
      %4575 = vmatprep.subr.mxu0 0.0
      %4576 = vmatpush1.msra.mxu0 0.0
      %4577 = vmatprep.subr.mxu0 0.0
      %4578 = vmatpush1.msra.mxu0 0.0
      %4579 = vmatprep.subr.mxu0 0.0
      %4580 = vmatpush1.msra.mxu0 %v4547
      %4581 = vmatprep.subr.mxu0 0.0
      %4582 = vmatpush2.msra.mxu0 0.0
      %4583 = vmatprep.subr.mxu0 0.0
      %4584 = vmatpush2.msra.mxu0 0.0
      %4585 = vmatprep.subr.mxu0 0.0
      %4586 = vmatpush2.msra.mxu0 0.0
      %4587 = vmatprep.subr.mxu0 0.0
      %4588 = vmatpush2.msra.mxu0 0.0
      %4589 = vmatprep.subr.mxu0 0.0
      %4590 = vmatpush2.msra.mxu0 0.0
      %4591 = vmatprep.subr.mxu0 0.0
      %4592 = vmatpush2.msra.mxu0 0.0
      %4593 = vmatprep.subr.mxu0 0.0
      %4594 = vmatpush2.msra.mxu0 0.0
      %4595 = vmatprep.subr.mxu0 0.0
      %4596 = vmatpush2.msra.mxu0 0.0
      %4597 = vmatprep.subr.mxu0 0.0
      %4598 = vmatpush2.msra.mxu0 0.0
      %4599 = vmatprep.subr.mxu0 0.0
      %4600 = vmatpush2.msra.mxu0 0.0
      %4601 = vmatprep.subr.mxu0 0.0
      %4602 = vmatpush2.msra.mxu0 0.0
      %4603 = vmatprep.subr.mxu0 0.0
      %4604 = vmatpush2.msra.mxu0 0.0
      %4605 = vmatprep.subr.mxu0 0.0
      %4606 = vmatpush2.msra.mxu0 0.0
      %4607 = vmatprep.subr.mxu0 0.0
      %4608 = vmatpush2.msra.mxu0 0.0
      %4609 = vmatprep.subr.mxu0 0.0
      %4610 = vmatpush2.msra.mxu0 0.0
      %4611 = vmatprep.subr.mxu0 0.0
      %4612 = vmatpush2.msra.mxu0 0.0
      %4613 = vmatprep.mubr.f32.mxu0 0.0
      %4614 = vmatmul.mubr.f32.gmra.mxu0 %v4499
      %v4615 = vpop.f32.mrf.mxu0
      %v4616 = vadd.f32 0.0, %v4615
      %v4617 = vpop.f32.mrf.mxu0
      %4618 = vmatprep.mubr.f32.mxu0 0.0
      %4619 = vmatmul.mubr.f32.gmra.mxu0 %v4502
      %v4620 = vpop.f32.mrf.mxu0
      %v4621 = vadd.f32 0.0, %v4620
      %v4622 = vpop.f32.mrf.mxu0
      %4623 = vmatprep.mubr.f32.mxu0 0.0
      %4624 = vmatmul.mubr.f32.gmra.mxu0 %v4505
      %v4625 = vpop.f32.mrf.mxu0
      %v4626 = vadd.f32 0.0, %v4625
      %v4627 = vpop.f32.mrf.mxu0
      %4628 = vmatprep.mubr.f32.mxu0 0.0
      %4629 = vmatmul.mubr.f32.gmra.mxu0 %v4508
      %v4630 = vpop.f32.mrf.mxu0
      %v4631 = vadd.f32 0.0, %v4630
      %v4632 = vpop.f32.mrf.mxu0
      %4633 = vmatprep.mubr.f32.mxu0 0.0
      %4634 = vmatmul.mubr.f32.gmra.mxu0 %v4511
      %v4635 = vpop.f32.mrf.mxu0
      %v4636 = vadd.f32 0.0, %v4635
      %v4637 = vpop.f32.mrf.mxu0
      %4638 = vmatprep.mubr.f32.mxu0 0.0
      %4639 = vmatmul.mubr.f32.gmra.mxu0 %v4514
      %v4640 = vpop.f32.mrf.mxu0
      %v4641 = vadd.f32 0.0, %v4640
      %v4642 = vpop.f32.mrf.mxu0
      %4643 = vmatprep.mubr.f32.mxu0 0.0
      %4644 = vmatmul.mubr.f32.gmra.mxu0 %v4517
      %v4645 = vpop.f32.mrf.mxu0
      %v4646 = vadd.f32 0.0, %v4645
      %v4647 = vpop.f32.mrf.mxu0
      %4648 = vmatprep.mubr.f32.mxu0 0.0
      %4649 = vmatmul.mubr.f32.gmra.mxu0 %v4520
      %v4650 = vpop.f32.mrf.mxu0
      %v4651 = vadd.f32 0.0, %v4650
      %v4652 = vpop.f32.mrf.mxu0
      %4653 = vmatprep.mubr.f32.mxu0 0.0
      %4654 = vmatmul.mubr.f32.gmra.mxu0 %v4523
      %v4655 = vpop.f32.mrf.mxu0
      %v4656 = vadd.f32 0.0, %v4655
      %v4657 = vpop.f32.mrf.mxu0
      %4658 = vmatprep.mubr.f32.mxu0 0.0
      %4659 = vmatmul.mubr.f32.gmra.mxu0 %v4526
      %v4660 = vpop.f32.mrf.mxu0
      %v4661 = vadd.f32 0.0, %v4660
      %v4662 = vpop.f32.mrf.mxu0
      %4663 = vmatprep.mubr.f32.mxu0 0.0
      %4664 = vmatmul.mubr.f32.gmra.mxu0 %v4529
      %v4665 = vpop.f32.mrf.mxu0
      %v4666 = vadd.f32 0.0, %v4665
      %v4667 = vpop.f32.mrf.mxu0
      %4668 = vmatprep.mubr.f32.mxu0 0.0
      %4669 = vmatmul.mubr.f32.gmra.mxu0 %v4532
      %v4670 = vpop.f32.mrf.mxu0
      %v4671 = vadd.f32 0.0, %v4670
      %v4672 = vpop.f32.mrf.mxu0
      %4673 = vmatprep.mubr.f32.mxu0 0.0
      %4674 = vmatmul.mubr.f32.gmra.mxu0 %v4535
      %v4675 = vpop.f32.mrf.mxu0
      %v4676 = vadd.f32 0.0, %v4675
      %v4677 = vpop.f32.mrf.mxu0
      %4678 = vmatprep.mubr.f32.mxu0 0.0
      %4679 = vmatmul.mubr.f32.gmra.mxu0 %v4538
      %v4680 = vpop.f32.mrf.mxu0
      %v4681 = vadd.f32 0.0, %v4680
      %v4682 = vpop.f32.mrf.mxu0
      %4683 = vmatprep.mubr.f32.mxu0 0.0
      %4684 = vmatmul.mubr.f32.gmra.mxu0 %v4541
      %v4685 = vpop.f32.mrf.mxu0
      %v4686 = vadd.f32 0.0, %v4685
      %v4687 = vpop.f32.mrf.mxu0
      %4688 = vmatprep.mubr.f32.mxu0 0.0
      %4689 = vmatmul.mubr.f32.gmra.mxu0 %v4544
      %v4690 = vpop.f32.mrf.mxu0
      %v4691 = vadd.f32 0.0, %v4690
      %v4692 = vpop.f32.mrf.mxu0
      %4693 = vdwg.mxu0
      %v4694 = vadd.f32 %v4464, %v4616
      %v4695 = vadd.f32 %v4465, %v4621
      %v4696 = vadd.f32 %v4466, %v4626
      %v4697 = vadd.f32 %v4467, %v4631
      %v4698 = vadd.f32 %v4468, %v4636
      %v4699 = vadd.f32 %v4469, %v4641
      %v4700 = vadd.f32 %v4470, %v4646
      %v4701 = vadd.f32 %v4471, %v4651
      %v4702 = vadd.f32 %v4472, %v4656
      %v4703 = vadd.f32 %v4473, %v4661
      %v4704 = vadd.f32 %v4474, %v4666
      %v4705 = vadd.f32 %v4475, %v4671
      %v4706 = vadd.f32 %v4476, %v4676
      %v4707 = vadd.f32 %v4477, %v4681
      %v4708 = vadd.f32 %v4478, %v4686
      %v4709 = vadd.f32 %v4479, %v4691
      %s4710 = scalar_lea.vmem [#allocation3], 24
      %v4711 = vld [vmem:[%s4710] sm:$0xff]
      %v4712 = vld [vmem:[%s4710 + $0x8] sm:$0xff]
      %v4713 = vld [vmem:[%s4710 + $0x18] sm:$0xff]
      %v4714 = vld [vmem:[%s4710 + $0x20] sm:$0xff]
      %v4715 = vld [vmem:[%s4710 + $0x30] sm:$0xff]
      %v4716 = vld [vmem:[%s4710 + $0x38] sm:$0xff]
      %v4717 = vld [vmem:[%s4710 + $0x48] sm:$0xff]
      %v4718 = vld [vmem:[%s4710 + $0x50] sm:$0xff]
      %v4719 = vld [vmem:[%s4710 + $0x60] sm:$0xff]
      %v4720 = vld [vmem:[%s4710 + $0x68] sm:$0xff]
      %v4721 = vld [vmem:[%s4710 + $0x78] sm:$0xff]
      %v4722 = vld [vmem:[%s4710 + $0x80] sm:$0xff]
      %v4723 = vld [vmem:[%s4710 + $0x90] sm:$0xff]
      %v4724 = vld [vmem:[%s4710 + $0x98] sm:$0xff]
      %v4725 = vld [vmem:[%s4710 + $0xa8] sm:$0xff]
      %v4726 = vld [vmem:[%s4710 + $0xb0] sm:$0xff]
      %s4727 = scalar_lea.vmem %s4, 12
      %v4728 = vld [vmem:[%s4727] sm:$0xf]
      %v4730 = vsel %vm406, %v4711, 0
      %v4733 = vsel %vm406, %v4712, 0
      %v4736 = vsel %vm406, %v4713, 0
      %v4739 = vsel %vm406, %v4714, 0
      %v4742 = vsel %vm406, %v4715, 0
      %v4745 = vsel %vm406, %v4716, 0
      %v4748 = vsel %vm406, %v4717, 0
      %v4751 = vsel %vm406, %v4718, 0
      %v4754 = vsel %vm406, %v4719, 0
      %v4757 = vsel %vm406, %v4720, 0
      %v4760 = vsel %vm406, %v4721, 0
      %v4763 = vsel %vm406, %v4722, 0
      %v4766 = vsel %vm406, %v4723, 0
      %v4769 = vsel %vm406, %v4724, 0
      %v4772 = vsel %vm406, %v4725, 0
      %v4775 = vsel %vm406, %v4726, 0
      %v4778 = vsel %vm601, %v4728, 0
      %4780 = vmatprep.subr.mxu0 0.0
      %4781 = vmatpush1.msra.mxu0 0.0
      %4782 = vmatprep.subr.mxu0 0.0
      %4783 = vmatpush1.msra.mxu0 0.0
      %4784 = vmatprep.subr.mxu0 0.0
      %4785 = vmatpush1.msra.mxu0 0.0
      %4786 = vmatprep.subr.mxu0 0.0
      %4787 = vmatpush1.msra.mxu0 0.0
      %4788 = vmatprep.subr.mxu0 0.0
      %4789 = vmatpush1.msra.mxu0 0.0
      %4790 = vmatprep.subr.mxu0 0.0
      %4791 = vmatpush1.msra.mxu0 0.0
      %4792 = vmatprep.subr.mxu0 0.0
      %4793 = vmatpush1.msra.mxu0 0.0
      %4794 = vmatprep.subr.mxu0 0.0
      %4795 = vmatpush1.msra.mxu0 0.0
      %4796 = vmatprep.subr.mxu0 0.0
      %4797 = vmatpush1.msra.mxu0 0.0
      %4798 = vmatprep.subr.mxu0 0.0
      %4799 = vmatpush1.msra.mxu0 0.0
      %4800 = vmatprep.subr.mxu0 0.0
      %4801 = vmatpush1.msra.mxu0 0.0
      %4802 = vmatprep.subr.mxu0 0.0
      %4803 = vmatpush1.msra.mxu0 0.0
      %4804 = vmatprep.subr.mxu0 0.0
      %4805 = vmatpush1.msra.mxu0 0.0
      %4806 = vmatprep.subr.mxu0 0.0
      %4807 = vmatpush1.msra.mxu0 0.0
      %4808 = vmatprep.subr.mxu0 0.0
      %4809 = vmatpush1.msra.mxu0 0.0
      %4810 = vmatprep.subr.mxu0 0.0
      %4811 = vmatpush1.msra.mxu0 %v4778
      %4812 = vmatprep.subr.mxu0 0.0
      %4813 = vmatpush2.msra.mxu0 0.0
      %4814 = vmatprep.subr.mxu0 0.0
      %4815 = vmatpush2.msra.mxu0 0.0
      %4816 = vmatprep.subr.mxu0 0.0
      %4817 = vmatpush2.msra.mxu0 0.0
      %4818 = vmatprep.subr.mxu0 0.0
      %4819 = vmatpush2.msra.mxu0 0.0
      %4820 = vmatprep.subr.mxu0 0.0
      %4821 = vmatpush2.msra.mxu0 0.0
      %4822 = vmatprep.subr.mxu0 0.0
      %4823 = vmatpush2.msra.mxu0 0.0
      %4824 = vmatprep.subr.mxu0 0.0
      %4825 = vmatpush2.msra.mxu0 0.0
      %4826 = vmatprep.subr.mxu0 0.0
      %4827 = vmatpush2.msra.mxu0 0.0
      %4828 = vmatprep.subr.mxu0 0.0
      %4829 = vmatpush2.msra.mxu0 0.0
      %4830 = vmatprep.subr.mxu0 0.0
      %4831 = vmatpush2.msra.mxu0 0.0
      %4832 = vmatprep.subr.mxu0 0.0
      %4833 = vmatpush2.msra.mxu0 0.0
      %4834 = vmatprep.subr.mxu0 0.0
      %4835 = vmatpush2.msra.mxu0 0.0
      %4836 = vmatprep.subr.mxu0 0.0
      %4837 = vmatpush2.msra.mxu0 0.0
      %4838 = vmatprep.subr.mxu0 0.0
      %4839 = vmatpush2.msra.mxu0 0.0
      %4840 = vmatprep.subr.mxu0 0.0
      %4841 = vmatpush2.msra.mxu0 0.0
      %4842 = vmatprep.subr.mxu0 0.0
      %4843 = vmatpush2.msra.mxu0 0.0
      %4844 = vmatprep.mubr.f32.mxu0 0.0
      %4845 = vmatmul.mubr.f32.gmra.mxu0 %v4730
      %v4846 = vpop.f32.mrf.mxu0
      %v4847 = vadd.f32 0.0, %v4846
      %v4848 = vpop.f32.mrf.mxu0
      %4849 = vmatprep.mubr.f32.mxu0 0.0
      %4850 = vmatmul.mubr.f32.gmra.mxu0 %v4733
      %v4851 = vpop.f32.mrf.mxu0
      %v4852 = vadd.f32 0.0, %v4851
      %v4853 = vpop.f32.mrf.mxu0
      %4854 = vmatprep.mubr.f32.mxu0 0.0
      %4855 = vmatmul.mubr.f32.gmra.mxu0 %v4736
      %v4856 = vpop.f32.mrf.mxu0
      %v4857 = vadd.f32 0.0, %v4856
      %v4858 = vpop.f32.mrf.mxu0
      %4859 = vmatprep.mubr.f32.mxu0 0.0
      %4860 = vmatmul.mubr.f32.gmra.mxu0 %v4739
      %v4861 = vpop.f32.mrf.mxu0
      %v4862 = vadd.f32 0.0, %v4861
      %v4863 = vpop.f32.mrf.mxu0
      %4864 = vmatprep.mubr.f32.mxu0 0.0
      %4865 = vmatmul.mubr.f32.gmra.mxu0 %v4742
      %v4866 = vpop.f32.mrf.mxu0
      %v4867 = vadd.f32 0.0, %v4866
      %v4868 = vpop.f32.mrf.mxu0
      %4869 = vmatprep.mubr.f32.mxu0 0.0
      %4870 = vmatmul.mubr.f32.gmra.mxu0 %v4745
      %v4871 = vpop.f32.mrf.mxu0
      %v4872 = vadd.f32 0.0, %v4871
      %v4873 = vpop.f32.mrf.mxu0
      %4874 = vmatprep.mubr.f32.mxu0 0.0
      %4875 = vmatmul.mubr.f32.gmra.mxu0 %v4748
      %v4876 = vpop.f32.mrf.mxu0
      %v4877 = vadd.f32 0.0, %v4876
      %v4878 = vpop.f32.mrf.mxu0
      %4879 = vmatprep.mubr.f32.mxu0 0.0
      %4880 = vmatmul.mubr.f32.gmra.mxu0 %v4751
      %v4881 = vpop.f32.mrf.mxu0
      %v4882 = vadd.f32 0.0, %v4881
      %v4883 = vpop.f32.mrf.mxu0
      %4884 = vmatprep.mubr.f32.mxu0 0.0
      %4885 = vmatmul.mubr.f32.gmra.mxu0 %v4754
      %v4886 = vpop.f32.mrf.mxu0
      %v4887 = vadd.f32 0.0, %v4886
      %v4888 = vpop.f32.mrf.mxu0
      %4889 = vmatprep.mubr.f32.mxu0 0.0
      %4890 = vmatmul.mubr.f32.gmra.mxu0 %v4757
      %v4891 = vpop.f32.mrf.mxu0
      %v4892 = vadd.f32 0.0, %v4891
      %v4893 = vpop.f32.mrf.mxu0
      %4894 = vmatprep.mubr.f32.mxu0 0.0
      %4895 = vmatmul.mubr.f32.gmra.mxu0 %v4760
      %v4896 = vpop.f32.mrf.mxu0
      %v4897 = vadd.f32 0.0, %v4896
      %v4898 = vpop.f32.mrf.mxu0
      %4899 = vmatprep.mubr.f32.mxu0 0.0
      %4900 = vmatmul.mubr.f32.gmra.mxu0 %v4763
      %v4901 = vpop.f32.mrf.mxu0
      %v4902 = vadd.f32 0.0, %v4901
      %v4903 = vpop.f32.mrf.mxu0
      %4904 = vmatprep.mubr.f32.mxu0 0.0
      %4905 = vmatmul.mubr.f32.gmra.mxu0 %v4766
      %v4906 = vpop.f32.mrf.mxu0
      %v4907 = vadd.f32 0.0, %v4906
      %v4908 = vpop.f32.mrf.mxu0
      %4909 = vmatprep.mubr.f32.mxu0 0.0
      %4910 = vmatmul.mubr.f32.gmra.mxu0 %v4769
      %v4911 = vpop.f32.mrf.mxu0
      %v4912 = vadd.f32 0.0, %v4911
      %v4913 = vpop.f32.mrf.mxu0
      %4914 = vmatprep.mubr.f32.mxu0 0.0
      %4915 = vmatmul.mubr.f32.gmra.mxu0 %v4772
      %v4916 = vpop.f32.mrf.mxu0
      %v4917 = vadd.f32 0.0, %v4916
      %v4918 = vpop.f32.mrf.mxu0
      %4919 = vmatprep.mubr.f32.mxu0 0.0
      %4920 = vmatmul.mubr.f32.gmra.mxu0 %v4775
      %v4921 = vpop.f32.mrf.mxu0
      %v4922 = vadd.f32 0.0, %v4921
      %v4923 = vpop.f32.mrf.mxu0
      %4924 = vdwg.mxu0
      %v4925 = vadd.f32 %v4694, %v4847
      %v4926 = vadd.f32 %v4695, %v4852
      %v4927 = vadd.f32 %v4696, %v4857
      %v4928 = vadd.f32 %v4697, %v4862
      %v4929 = vadd.f32 %v4698, %v4867
      %v4930 = vadd.f32 %v4699, %v4872
      %v4931 = vadd.f32 %v4700, %v4877
      %v4932 = vadd.f32 %v4701, %v4882
      %v4933 = vadd.f32 %v4702, %v4887
      %v4934 = vadd.f32 %v4703, %v4892
      %v4935 = vadd.f32 %v4704, %v4897
      %v4936 = vadd.f32 %v4705, %v4902
      %v4937 = vadd.f32 %v4706, %v4907
      %v4938 = vadd.f32 %v4707, %v4912
      %v4939 = vadd.f32 %v4708, %v4917
      %v4940 = vadd.f32 %v4709, %v4922
      %v4941 = vld [vmem:[%s4710 + $0x1] sm:$0xff]
      %v4942 = vld [vmem:[%s4710 + $0x9] sm:$0xff]
      %v4943 = vld [vmem:[%s4710 + $0x19] sm:$0xff]
      %v4944 = vld [vmem:[%s4710 + $0x21] sm:$0xff]
      %v4945 = vld [vmem:[%s4710 + $0x31] sm:$0xff]
      %v4946 = vld [vmem:[%s4710 + $0x39] sm:$0xff]
      %v4947 = vld [vmem:[%s4710 + $0x49] sm:$0xff]
      %v4948 = vld [vmem:[%s4710 + $0x51] sm:$0xff]
      %v4949 = vld [vmem:[%s4710 + $0x61] sm:$0xff]
      %v4950 = vld [vmem:[%s4710 + $0x69] sm:$0xff]
      %v4951 = vld [vmem:[%s4710 + $0x79] sm:$0xff]
      %v4952 = vld [vmem:[%s4710 + $0x81] sm:$0xff]
      %v4953 = vld [vmem:[%s4710 + $0x91] sm:$0xff]
      %v4954 = vld [vmem:[%s4710 + $0x99] sm:$0xff]
      %v4955 = vld [vmem:[%s4710 + $0xa9] sm:$0xff]
      %v4956 = vld [vmem:[%s4710 + $0xb1] sm:$0xff]
      %s4957 = scalar_lea.vmem %s4, 16
      %v4958 = vld [vmem:[%s4957] sm:$0xf]
      %v4960 = vsel %vm406, %v4941, 0
      %v4963 = vsel %vm406, %v4942, 0
      %v4966 = vsel %vm406, %v4943, 0
      %v4969 = vsel %vm406, %v4944, 0
      %v4972 = vsel %vm406, %v4945, 0
      %v4975 = vsel %vm406, %v4946, 0
      %v4978 = vsel %vm406, %v4947, 0
      %v4981 = vsel %vm406, %v4948, 0
      %v4984 = vsel %vm406, %v4949, 0
      %v4987 = vsel %vm406, %v4950, 0
      %v4990 = vsel %vm406, %v4951, 0
      %v4993 = vsel %vm406, %v4952, 0
      %v4996 = vsel %vm406, %v4953, 0
      %v4999 = vsel %vm406, %v4954, 0
      %v5002 = vsel %vm406, %v4955, 0
      %v5005 = vsel %vm406, %v4956, 0
      %v5008 = vsel %vm601, %v4958, 0
      %5010 = vmatprep.subr.mxu0 0.0
      %5011 = vmatpush1.msra.mxu0 0.0
      %5012 = vmatprep.subr.mxu0 0.0
      %5013 = vmatpush1.msra.mxu0 0.0
      %5014 = vmatprep.subr.mxu0 0.0
      %5015 = vmatpush1.msra.mxu0 0.0
      %5016 = vmatprep.subr.mxu0 0.0
      %5017 = vmatpush1.msra.mxu0 0.0
      %5018 = vmatprep.subr.mxu0 0.0
      %5019 = vmatpush1.msra.mxu0 0.0
      %5020 = vmatprep.subr.mxu0 0.0
      %5021 = vmatpush1.msra.mxu0 0.0
      %5022 = vmatprep.subr.mxu0 0.0
      %5023 = vmatpush1.msra.mxu0 0.0
      %5024 = vmatprep.subr.mxu0 0.0
      %5025 = vmatpush1.msra.mxu0 0.0
      %5026 = vmatprep.subr.mxu0 0.0
      %5027 = vmatpush1.msra.mxu0 0.0
      %5028 = vmatprep.subr.mxu0 0.0
      %5029 = vmatpush1.msra.mxu0 0.0
      %5030 = vmatprep.subr.mxu0 0.0
      %5031 = vmatpush1.msra.mxu0 0.0
      %5032 = vmatprep.subr.mxu0 0.0
      %5033 = vmatpush1.msra.mxu0 0.0
      %5034 = vmatprep.subr.mxu0 0.0
      %5035 = vmatpush1.msra.mxu0 0.0
      %5036 = vmatprep.subr.mxu0 0.0
      %5037 = vmatpush1.msra.mxu0 0.0
      %5038 = vmatprep.subr.mxu0 0.0
      %5039 = vmatpush1.msra.mxu0 0.0
      %5040 = vmatprep.subr.mxu0 0.0
      %5041 = vmatpush1.msra.mxu0 %v5008
      %5042 = vmatprep.subr.mxu0 0.0
      %5043 = vmatpush2.msra.mxu0 0.0
      %5044 = vmatprep.subr.mxu0 0.0
      %5045 = vmatpush2.msra.mxu0 0.0
      %5046 = vmatprep.subr.mxu0 0.0
      %5047 = vmatpush2.msra.mxu0 0.0
      %5048 = vmatprep.subr.mxu0 0.0
      %5049 = vmatpush2.msra.mxu0 0.0
      %5050 = vmatprep.subr.mxu0 0.0
      %5051 = vmatpush2.msra.mxu0 0.0
      %5052 = vmatprep.subr.mxu0 0.0
      %5053 = vmatpush2.msra.mxu0 0.0
      %5054 = vmatprep.subr.mxu0 0.0
      %5055 = vmatpush2.msra.mxu0 0.0
      %5056 = vmatprep.subr.mxu0 0.0
      %5057 = vmatpush2.msra.mxu0 0.0
      %5058 = vmatprep.subr.mxu0 0.0
      %5059 = vmatpush2.msra.mxu0 0.0
      %5060 = vmatprep.subr.mxu0 0.0
      %5061 = vmatpush2.msra.mxu0 0.0
      %5062 = vmatprep.subr.mxu0 0.0
      %5063 = vmatpush2.msra.mxu0 0.0
      %5064 = vmatprep.subr.mxu0 0.0
      %5065 = vmatpush2.msra.mxu0 0.0
      %5066 = vmatprep.subr.mxu0 0.0
      %5067 = vmatpush2.msra.mxu0 0.0
      %5068 = vmatprep.subr.mxu0 0.0
      %5069 = vmatpush2.msra.mxu0 0.0
      %5070 = vmatprep.subr.mxu0 0.0
      %5071 = vmatpush2.msra.mxu0 0.0
      %5072 = vmatprep.subr.mxu0 0.0
      %5073 = vmatpush2.msra.mxu0 0.0
      %5074 = vmatprep.mubr.f32.mxu0 0.0
      %5075 = vmatmul.mubr.f32.gmra.mxu0 %v4960
      %v5076 = vpop.f32.mrf.mxu0
      %v5077 = vadd.f32 0.0, %v5076
      %v5078 = vpop.f32.mrf.mxu0
      %5079 = vmatprep.mubr.f32.mxu0 0.0
      %5080 = vmatmul.mubr.f32.gmra.mxu0 %v4963
      %v5081 = vpop.f32.mrf.mxu0
      %v5082 = vadd.f32 0.0, %v5081
      %v5083 = vpop.f32.mrf.mxu0
      %5084 = vmatprep.mubr.f32.mxu0 0.0
      %5085 = vmatmul.mubr.f32.gmra.mxu0 %v4966
      %v5086 = vpop.f32.mrf.mxu0
      %v5087 = vadd.f32 0.0, %v5086
      %v5088 = vpop.f32.mrf.mxu0
      %5089 = vmatprep.mubr.f32.mxu0 0.0
      %5090 = vmatmul.mubr.f32.gmra.mxu0 %v4969
      %v5091 = vpop.f32.mrf.mxu0
      %v5092 = vadd.f32 0.0, %v5091
      %v5093 = vpop.f32.mrf.mxu0
      %5094 = vmatprep.mubr.f32.mxu0 0.0
      %5095 = vmatmul.mubr.f32.gmra.mxu0 %v4972
      %v5096 = vpop.f32.mrf.mxu0
      %v5097 = vadd.f32 0.0, %v5096
      %v5098 = vpop.f32.mrf.mxu0
      %5099 = vmatprep.mubr.f32.mxu0 0.0
      %5100 = vmatmul.mubr.f32.gmra.mxu0 %v4975
      %v5101 = vpop.f32.mrf.mxu0
      %v5102 = vadd.f32 0.0, %v5101
      %v5103 = vpop.f32.mrf.mxu0
      %5104 = vmatprep.mubr.f32.mxu0 0.0
      %5105 = vmatmul.mubr.f32.gmra.mxu0 %v4978
      %v5106 = vpop.f32.mrf.mxu0
      %v5107 = vadd.f32 0.0, %v5106
      %v5108 = vpop.f32.mrf.mxu0
      %5109 = vmatprep.mubr.f32.mxu0 0.0
      %5110 = vmatmul.mubr.f32.gmra.mxu0 %v4981
      %v5111 = vpop.f32.mrf.mxu0
      %v5112 = vadd.f32 0.0, %v5111
      %v5113 = vpop.f32.mrf.mxu0
      %5114 = vmatprep.mubr.f32.mxu0 0.0
      %5115 = vmatmul.mubr.f32.gmra.mxu0 %v4984
      %v5116 = vpop.f32.mrf.mxu0
      %v5117 = vadd.f32 0.0, %v5116
      %v5118 = vpop.f32.mrf.mxu0
      %5119 = vmatprep.mubr.f32.mxu0 0.0
      %5120 = vmatmul.mubr.f32.gmra.mxu0 %v4987
      %v5121 = vpop.f32.mrf.mxu0
      %v5122 = vadd.f32 0.0, %v5121
      %v5123 = vpop.f32.mrf.mxu0
      %5124 = vmatprep.mubr.f32.mxu0 0.0
      %5125 = vmatmul.mubr.f32.gmra.mxu0 %v4990
      %v5126 = vpop.f32.mrf.mxu0
      %v5127 = vadd.f32 0.0, %v5126
      %v5128 = vpop.f32.mrf.mxu0
      %5129 = vmatprep.mubr.f32.mxu0 0.0
      %5130 = vmatmul.mubr.f32.gmra.mxu0 %v4993
      %v5131 = vpop.f32.mrf.mxu0
      %v5132 = vadd.f32 0.0, %v5131
      %v5133 = vpop.f32.mrf.mxu0
      %5134 = vmatprep.mubr.f32.mxu0 0.0
      %5135 = vmatmul.mubr.f32.gmra.mxu0 %v4996
      %v5136 = vpop.f32.mrf.mxu0
      %v5137 = vadd.f32 0.0, %v5136
      %v5138 = vpop.f32.mrf.mxu0
      %5139 = vmatprep.mubr.f32.mxu0 0.0
      %5140 = vmatmul.mubr.f32.gmra.mxu0 %v4999
      %v5141 = vpop.f32.mrf.mxu0
      %v5142 = vadd.f32 0.0, %v5141
      %v5143 = vpop.f32.mrf.mxu0
      %5144 = vmatprep.mubr.f32.mxu0 0.0
      %5145 = vmatmul.mubr.f32.gmra.mxu0 %v5002
      %v5146 = vpop.f32.mrf.mxu0
      %v5147 = vadd.f32 0.0, %v5146
      %v5148 = vpop.f32.mrf.mxu0
      %5149 = vmatprep.mubr.f32.mxu0 0.0
      %5150 = vmatmul.mubr.f32.gmra.mxu0 %v5005
      %v5151 = vpop.f32.mrf.mxu0
      %v5152 = vadd.f32 0.0, %v5151
      %v5153 = vpop.f32.mrf.mxu0
      %5154 = vdwg.mxu0
      %v5155 = vadd.f32 %v4925, %v5077
      %v5156 = vadd.f32 %v4926, %v5082
      %v5157 = vadd.f32 %v4927, %v5087
      %v5158 = vadd.f32 %v4928, %v5092
      %v5159 = vadd.f32 %v4929, %v5097
      %v5160 = vadd.f32 %v4930, %v5102
      %v5161 = vadd.f32 %v4931, %v5107
      %v5162 = vadd.f32 %v4932, %v5112
      %v5163 = vadd.f32 %v4933, %v5117
      %v5164 = vadd.f32 %v4934, %v5122
      %v5165 = vadd.f32 %v4935, %v5127
      %v5166 = vadd.f32 %v4936, %v5132
      %v5167 = vadd.f32 %v4937, %v5137
      %v5168 = vadd.f32 %v4938, %v5142
      %v5169 = vadd.f32 %v4939, %v5147
      %v5170 = vadd.f32 %v4940, %v5152
      %v5171 = vld [vmem:[%s4710 + $0x2] sm:$0xff]
      %v5172 = vld [vmem:[%s4710 + $0xa] sm:$0xff]
      %v5173 = vld [vmem:[%s4710 + $0x1a] sm:$0xff]
      %v5174 = vld [vmem:[%s4710 + $0x22] sm:$0xff]
      %v5175 = vld [vmem:[%s4710 + $0x32] sm:$0xff]
      %v5176 = vld [vmem:[%s4710 + $0x3a] sm:$0xff]
      %v5177 = vld [vmem:[%s4710 + $0x4a] sm:$0xff]
      %v5178 = vld [vmem:[%s4710 + $0x52] sm:$0xff]
      %v5179 = vld [vmem:[%s4710 + $0x62] sm:$0xff]
      %v5180 = vld [vmem:[%s4710 + $0x6a] sm:$0xff]
      %v5181 = vld [vmem:[%s4710 + $0x7a] sm:$0xff]
      %v5182 = vld [vmem:[%s4710 + $0x82] sm:$0xff]
      %v5183 = vld [vmem:[%s4710 + $0x92] sm:$0xff]
      %v5184 = vld [vmem:[%s4710 + $0x9a] sm:$0xff]
      %v5185 = vld [vmem:[%s4710 + $0xaa] sm:$0xff]
      %v5186 = vld [vmem:[%s4710 + $0xb2] sm:$0xff]
      %s5187 = scalar_lea.vmem %s4, 20
      %v5188 = vld [vmem:[%s5187] sm:$0xf]
      %v5190 = vsel %vm406, %v5171, 0
      %v5193 = vsel %vm406, %v5172, 0
      %v5196 = vsel %vm406, %v5173, 0
      %v5199 = vsel %vm406, %v5174, 0
      %v5202 = vsel %vm406, %v5175, 0
      %v5205 = vsel %vm406, %v5176, 0
      %v5208 = vsel %vm406, %v5177, 0
      %v5211 = vsel %vm406, %v5178, 0
      %v5214 = vsel %vm406, %v5179, 0
      %v5217 = vsel %vm406, %v5180, 0
      %v5220 = vsel %vm406, %v5181, 0
      %v5223 = vsel %vm406, %v5182, 0
      %v5226 = vsel %vm406, %v5183, 0
      %v5229 = vsel %vm406, %v5184, 0
      %v5232 = vsel %vm406, %v5185, 0
      %v5235 = vsel %vm406, %v5186, 0
      %v5238 = vsel %vm601, %v5188, 0
      %5240 = vmatprep.subr.mxu0 0.0
      %5241 = vmatpush1.msra.mxu0 0.0
      %5242 = vmatprep.subr.mxu0 0.0
      %5243 = vmatpush1.msra.mxu0 0.0
      %5244 = vmatprep.subr.mxu0 0.0
      %5245 = vmatpush1.msra.mxu0 0.0
      %5246 = vmatprep.subr.mxu0 0.0
      %5247 = vmatpush1.msra.mxu0 0.0
      %5248 = vmatprep.subr.mxu0 0.0
      %5249 = vmatpush1.msra.mxu0 0.0
      %5250 = vmatprep.subr.mxu0 0.0
      %5251 = vmatpush1.msra.mxu0 0.0
      %5252 = vmatprep.subr.mxu0 0.0
      %5253 = vmatpush1.msra.mxu0 0.0
      %5254 = vmatprep.subr.mxu0 0.0
      %5255 = vmatpush1.msra.mxu0 0.0
      %5256 = vmatprep.subr.mxu0 0.0
      %5257 = vmatpush1.msra.mxu0 0.0
      %5258 = vmatprep.subr.mxu0 0.0
      %5259 = vmatpush1.msra.mxu0 0.0
      %5260 = vmatprep.subr.mxu0 0.0
      %5261 = vmatpush1.msra.mxu0 0.0
      %5262 = vmatprep.subr.mxu0 0.0
      %5263 = vmatpush1.msra.mxu0 0.0
      %5264 = vmatprep.subr.mxu0 0.0
      %5265 = vmatpush1.msra.mxu0 0.0
      %5266 = vmatprep.subr.mxu0 0.0
      %5267 = vmatpush1.msra.mxu0 0.0
      %5268 = vmatprep.subr.mxu0 0.0
      %5269 = vmatpush1.msra.mxu0 0.0
      %5270 = vmatprep.subr.mxu0 0.0
      %5271 = vmatpush1.msra.mxu0 %v5238
      %5272 = vmatprep.subr.mxu0 0.0
      %5273 = vmatpush2.msra.mxu0 0.0
      %5274 = vmatprep.subr.mxu0 0.0
      %5275 = vmatpush2.msra.mxu0 0.0
      %5276 = vmatprep.subr.mxu0 0.0
      %5277 = vmatpush2.msra.mxu0 0.0
      %5278 = vmatprep.subr.mxu0 0.0
      %5279 = vmatpush2.msra.mxu0 0.0
      %5280 = vmatprep.subr.mxu0 0.0
      %5281 = vmatpush2.msra.mxu0 0.0
      %5282 = vmatprep.subr.mxu0 0.0
      %5283 = vmatpush2.msra.mxu0 0.0
      %5284 = vmatprep.subr.mxu0 0.0
      %5285 = vmatpush2.msra.mxu0 0.0
      %5286 = vmatprep.subr.mxu0 0.0
      %5287 = vmatpush2.msra.mxu0 0.0
      %5288 = vmatprep.subr.mxu0 0.0
      %5289 = vmatpush2.msra.mxu0 0.0
      %5290 = vmatprep.subr.mxu0 0.0
      %5291 = vmatpush2.msra.mxu0 0.0
      %5292 = vmatprep.subr.mxu0 0.0
      %5293 = vmatpush2.msra.mxu0 0.0
      %5294 = vmatprep.subr.mxu0 0.0
      %5295 = vmatpush2.msra.mxu0 0.0
      %5296 = vmatprep.subr.mxu0 0.0
      %5297 = vmatpush2.msra.mxu0 0.0
      %5298 = vmatprep.subr.mxu0 0.0
      %5299 = vmatpush2.msra.mxu0 0.0
      %5300 = vmatprep.subr.mxu0 0.0
      %5301 = vmatpush2.msra.mxu0 0.0
      %5302 = vmatprep.subr.mxu0 0.0
      %5303 = vmatpush2.msra.mxu0 0.0
      %5304 = vmatprep.mubr.f32.mxu0 0.0
      %5305 = vmatmul.mubr.f32.gmra.mxu0 %v5190
      %v5306 = vpop.f32.mrf.mxu0
      %v5307 = vadd.f32 0.0, %v5306
      %v5308 = vpop.f32.mrf.mxu0
      %5309 = vmatprep.mubr.f32.mxu0 0.0
      %5310 = vmatmul.mubr.f32.gmra.mxu0 %v5193
      %v5311 = vpop.f32.mrf.mxu0
      %v5312 = vadd.f32 0.0, %v5311
      %v5313 = vpop.f32.mrf.mxu0
      %5314 = vmatprep.mubr.f32.mxu0 0.0
      %5315 = vmatmul.mubr.f32.gmra.mxu0 %v5196
      %v5316 = vpop.f32.mrf.mxu0
      %v5317 = vadd.f32 0.0, %v5316
      %v5318 = vpop.f32.mrf.mxu0
      %5319 = vmatprep.mubr.f32.mxu0 0.0
      %5320 = vmatmul.mubr.f32.gmra.mxu0 %v5199
      %v5321 = vpop.f32.mrf.mxu0
      %v5322 = vadd.f32 0.0, %v5321
      %v5323 = vpop.f32.mrf.mxu0
      %5324 = vmatprep.mubr.f32.mxu0 0.0
      %5325 = vmatmul.mubr.f32.gmra.mxu0 %v5202
      %v5326 = vpop.f32.mrf.mxu0
      %v5327 = vadd.f32 0.0, %v5326
      %v5328 = vpop.f32.mrf.mxu0
      %5329 = vmatprep.mubr.f32.mxu0 0.0
      %5330 = vmatmul.mubr.f32.gmra.mxu0 %v5205
      %v5331 = vpop.f32.mrf.mxu0
      %v5332 = vadd.f32 0.0, %v5331
      %v5333 = vpop.f32.mrf.mxu0
      %5334 = vmatprep.mubr.f32.mxu0 0.0
      %5335 = vmatmul.mubr.f32.gmra.mxu0 %v5208
      %v5336 = vpop.f32.mrf.mxu0
      %v5337 = vadd.f32 0.0, %v5336
      %v5338 = vpop.f32.mrf.mxu0
      %5339 = vmatprep.mubr.f32.mxu0 0.0
      %5340 = vmatmul.mubr.f32.gmra.mxu0 %v5211
      %v5341 = vpop.f32.mrf.mxu0
      %v5342 = vadd.f32 0.0, %v5341
      %v5343 = vpop.f32.mrf.mxu0
      %5344 = vmatprep.mubr.f32.mxu0 0.0
      %5345 = vmatmul.mubr.f32.gmra.mxu0 %v5214
      %v5346 = vpop.f32.mrf.mxu0
      %v5347 = vadd.f32 0.0, %v5346
      %v5348 = vpop.f32.mrf.mxu0
      %5349 = vmatprep.mubr.f32.mxu0 0.0
      %5350 = vmatmul.mubr.f32.gmra.mxu0 %v5217
      %v5351 = vpop.f32.mrf.mxu0
      %v5352 = vadd.f32 0.0, %v5351
      %v5353 = vpop.f32.mrf.mxu0
      %5354 = vmatprep.mubr.f32.mxu0 0.0
      %5355 = vmatmul.mubr.f32.gmra.mxu0 %v5220
      %v5356 = vpop.f32.mrf.mxu0
      %v5357 = vadd.f32 0.0, %v5356
      %v5358 = vpop.f32.mrf.mxu0
      %5359 = vmatprep.mubr.f32.mxu0 0.0
      %5360 = vmatmul.mubr.f32.gmra.mxu0 %v5223
      %v5361 = vpop.f32.mrf.mxu0
      %v5362 = vadd.f32 0.0, %v5361
      %v5363 = vpop.f32.mrf.mxu0
      %5364 = vmatprep.mubr.f32.mxu0 0.0
      %5365 = vmatmul.mubr.f32.gmra.mxu0 %v5226
      %v5366 = vpop.f32.mrf.mxu0
      %v5367 = vadd.f32 0.0, %v5366
      %v5368 = vpop.f32.mrf.mxu0
      %5369 = vmatprep.mubr.f32.mxu0 0.0
      %5370 = vmatmul.mubr.f32.gmra.mxu0 %v5229
      %v5371 = vpop.f32.mrf.mxu0
      %v5372 = vadd.f32 0.0, %v5371
      %v5373 = vpop.f32.mrf.mxu0
      %5374 = vmatprep.mubr.f32.mxu0 0.0
      %5375 = vmatmul.mubr.f32.gmra.mxu0 %v5232
      %v5376 = vpop.f32.mrf.mxu0
      %v5377 = vadd.f32 0.0, %v5376
      %v5378 = vpop.f32.mrf.mxu0
      %5379 = vmatprep.mubr.f32.mxu0 0.0
      %5380 = vmatmul.mubr.f32.gmra.mxu0 %v5235
      %v5381 = vpop.f32.mrf.mxu0
      %v5382 = vadd.f32 0.0, %v5381
      %v5383 = vpop.f32.mrf.mxu0
      %5384 = vdwg.mxu0
      %v5385 = vadd.f32 %v5155, %v5307
      %v5386 = vadd.f32 %v5156, %v5312
      %v5387 = vadd.f32 %v5157, %v5317
      %v5388 = vadd.f32 %v5158, %v5322
      %v5389 = vadd.f32 %v5159, %v5327
      %v5390 = vadd.f32 %v5160, %v5332
      %v5391 = vadd.f32 %v5161, %v5337
      %v5392 = vadd.f32 %v5162, %v5342
      %v5393 = vadd.f32 %v5163, %v5347
      %v5394 = vadd.f32 %v5164, %v5352
      %v5395 = vadd.f32 %v5165, %v5357
      %v5396 = vadd.f32 %v5166, %v5362
      %v5397 = vadd.f32 %v5167, %v5367
      %v5398 = vadd.f32 %v5168, %v5372
      %v5399 = vadd.f32 %v5169, %v5377
      %v5400 = vadd.f32 %v5170, %v5382
      %s5401 = scalar_lea.vmem [#allocation3], 48
      %v5402 = vld [vmem:[%s5401] sm:$0xff]
      %v5403 = vld [vmem:[%s5401 + $0x8] sm:$0xff]
      %v5404 = vld [vmem:[%s5401 + $0x18] sm:$0xff]
      %v5405 = vld [vmem:[%s5401 + $0x20] sm:$0xff]
      %v5406 = vld [vmem:[%s5401 + $0x30] sm:$0xff]
      %v5407 = vld [vmem:[%s5401 + $0x38] sm:$0xff]
      %v5408 = vld [vmem:[%s5401 + $0x48] sm:$0xff]
      %v5409 = vld [vmem:[%s5401 + $0x50] sm:$0xff]
      %v5410 = vld [vmem:[%s5401 + $0x60] sm:$0xff]
      %v5411 = vld [vmem:[%s5401 + $0x68] sm:$0xff]
      %v5412 = vld [vmem:[%s5401 + $0x78] sm:$0xff]
      %v5413 = vld [vmem:[%s5401 + $0x80] sm:$0xff]
      %v5414 = vld [vmem:[%s5401 + $0x90] sm:$0xff]
      %v5415 = vld [vmem:[%s5401 + $0x98] sm:$0xff]
      %v5416 = vld [vmem:[%s5401 + $0xa8] sm:$0xff]
      %v5417 = vld [vmem:[%s5401 + $0xb0] sm:$0xff]
      %s5418 = scalar_lea.vmem %s4, 24
      %v5419 = vld [vmem:[%s5418] sm:$0xf]
      %v5421 = vsel %vm406, %v5402, 0
      %v5424 = vsel %vm406, %v5403, 0
      %v5427 = vsel %vm406, %v5404, 0
      %v5430 = vsel %vm406, %v5405, 0
      %v5433 = vsel %vm406, %v5406, 0
      %v5436 = vsel %vm406, %v5407, 0
      %v5439 = vsel %vm406, %v5408, 0
      %v5442 = vsel %vm406, %v5409, 0
      %v5445 = vsel %vm406, %v5410, 0
      %v5448 = vsel %vm406, %v5411, 0
      %v5451 = vsel %vm406, %v5412, 0
      %v5454 = vsel %vm406, %v5413, 0
      %v5457 = vsel %vm406, %v5414, 0
      %v5460 = vsel %vm406, %v5415, 0
      %v5463 = vsel %vm406, %v5416, 0
      %v5466 = vsel %vm406, %v5417, 0
      %v5469 = vsel %vm601, %v5419, 0
      %5471 = vmatprep.subr.mxu0 0.0
      %5472 = vmatpush1.msra.mxu0 0.0
      %5473 = vmatprep.subr.mxu0 0.0
      %5474 = vmatpush1.msra.mxu0 0.0
      %5475 = vmatprep.subr.mxu0 0.0
      %5476 = vmatpush1.msra.mxu0 0.0
      %5477 = vmatprep.subr.mxu0 0.0
      %5478 = vmatpush1.msra.mxu0 0.0
      %5479 = vmatprep.subr.mxu0 0.0
      %5480 = vmatpush1.msra.mxu0 0.0
      %5481 = vmatprep.subr.mxu0 0.0
      %5482 = vmatpush1.msra.mxu0 0.0
      %5483 = vmatprep.subr.mxu0 0.0
      %5484 = vmatpush1.msra.mxu0 0.0
      %5485 = vmatprep.subr.mxu0 0.0
      %5486 = vmatpush1.msra.mxu0 0.0
      %5487 = vmatprep.subr.mxu0 0.0
      %5488 = vmatpush1.msra.mxu0 0.0
      %5489 = vmatprep.subr.mxu0 0.0
      %5490 = vmatpush1.msra.mxu0 0.0
      %5491 = vmatprep.subr.mxu0 0.0
      %5492 = vmatpush1.msra.mxu0 0.0
      %5493 = vmatprep.subr.mxu0 0.0
      %5494 = vmatpush1.msra.mxu0 0.0
      %5495 = vmatprep.subr.mxu0 0.0
      %5496 = vmatpush1.msra.mxu0 0.0
      %5497 = vmatprep.subr.mxu0 0.0
      %5498 = vmatpush1.msra.mxu0 0.0
      %5499 = vmatprep.subr.mxu0 0.0
      %5500 = vmatpush1.msra.mxu0 0.0
      %5501 = vmatprep.subr.mxu0 0.0
      %5502 = vmatpush1.msra.mxu0 %v5469
      %5503 = vmatprep.subr.mxu0 0.0
      %5504 = vmatpush2.msra.mxu0 0.0
      %5505 = vmatprep.subr.mxu0 0.0
      %5506 = vmatpush2.msra.mxu0 0.0
      %5507 = vmatprep.subr.mxu0 0.0
      %5508 = vmatpush2.msra.mxu0 0.0
      %5509 = vmatprep.subr.mxu0 0.0
      %5510 = vmatpush2.msra.mxu0 0.0
      %5511 = vmatprep.subr.mxu0 0.0
      %5512 = vmatpush2.msra.mxu0 0.0
      %5513 = vmatprep.subr.mxu0 0.0
      %5514 = vmatpush2.msra.mxu0 0.0
      %5515 = vmatprep.subr.mxu0 0.0
      %5516 = vmatpush2.msra.mxu0 0.0
      %5517 = vmatprep.subr.mxu0 0.0
      %5518 = vmatpush2.msra.mxu0 0.0
      %5519 = vmatprep.subr.mxu0 0.0
      %5520 = vmatpush2.msra.mxu0 0.0
      %5521 = vmatprep.subr.mxu0 0.0
      %5522 = vmatpush2.msra.mxu0 0.0
      %5523 = vmatprep.subr.mxu0 0.0
      %5524 = vmatpush2.msra.mxu0 0.0
      %5525 = vmatprep.subr.mxu0 0.0
      %5526 = vmatpush2.msra.mxu0 0.0
      %5527 = vmatprep.subr.mxu0 0.0
      %5528 = vmatpush2.msra.mxu0 0.0
      %5529 = vmatprep.subr.mxu0 0.0
      %5530 = vmatpush2.msra.mxu0 0.0
      %5531 = vmatprep.subr.mxu0 0.0
      %5532 = vmatpush2.msra.mxu0 0.0
      %5533 = vmatprep.subr.mxu0 0.0
      %5534 = vmatpush2.msra.mxu0 0.0
      %5535 = vmatprep.mubr.f32.mxu0 0.0
      %5536 = vmatmul.mubr.f32.gmra.mxu0 %v5421
      %v5537 = vpop.f32.mrf.mxu0
      %v5538 = vadd.f32 0.0, %v5537
      %v5539 = vpop.f32.mrf.mxu0
      %5540 = vmatprep.mubr.f32.mxu0 0.0
      %5541 = vmatmul.mubr.f32.gmra.mxu0 %v5424
      %v5542 = vpop.f32.mrf.mxu0
      %v5543 = vadd.f32 0.0, %v5542
      %v5544 = vpop.f32.mrf.mxu0
      %5545 = vmatprep.mubr.f32.mxu0 0.0
      %5546 = vmatmul.mubr.f32.gmra.mxu0 %v5427
      %v5547 = vpop.f32.mrf.mxu0
      %v5548 = vadd.f32 0.0, %v5547
      %v5549 = vpop.f32.mrf.mxu0
      %5550 = vmatprep.mubr.f32.mxu0 0.0
      %5551 = vmatmul.mubr.f32.gmra.mxu0 %v5430
      %v5552 = vpop.f32.mrf.mxu0
      %v5553 = vadd.f32 0.0, %v5552
      %v5554 = vpop.f32.mrf.mxu0
      %5555 = vmatprep.mubr.f32.mxu0 0.0
      %5556 = vmatmul.mubr.f32.gmra.mxu0 %v5433
      %v5557 = vpop.f32.mrf.mxu0
      %v5558 = vadd.f32 0.0, %v5557
      %v5559 = vpop.f32.mrf.mxu0
      %5560 = vmatprep.mubr.f32.mxu0 0.0
      %5561 = vmatmul.mubr.f32.gmra.mxu0 %v5436
      %v5562 = vpop.f32.mrf.mxu0
      %v5563 = vadd.f32 0.0, %v5562
      %v5564 = vpop.f32.mrf.mxu0
      %5565 = vmatprep.mubr.f32.mxu0 0.0
      %5566 = vmatmul.mubr.f32.gmra.mxu0 %v5439
      %v5567 = vpop.f32.mrf.mxu0
      %v5568 = vadd.f32 0.0, %v5567
      %v5569 = vpop.f32.mrf.mxu0
      %5570 = vmatprep.mubr.f32.mxu0 0.0
      %5571 = vmatmul.mubr.f32.gmra.mxu0 %v5442
      %v5572 = vpop.f32.mrf.mxu0
      %v5573 = vadd.f32 0.0, %v5572
      %v5574 = vpop.f32.mrf.mxu0
      %5575 = vmatprep.mubr.f32.mxu0 0.0
      %5576 = vmatmul.mubr.f32.gmra.mxu0 %v5445
      %v5577 = vpop.f32.mrf.mxu0
      %v5578 = vadd.f32 0.0, %v5577
      %v5579 = vpop.f32.mrf.mxu0
      %5580 = vmatprep.mubr.f32.mxu0 0.0
      %5581 = vmatmul.mubr.f32.gmra.mxu0 %v5448
      %v5582 = vpop.f32.mrf.mxu0
      %v5583 = vadd.f32 0.0, %v5582
      %v5584 = vpop.f32.mrf.mxu0
      %5585 = vmatprep.mubr.f32.mxu0 0.0
      %5586 = vmatmul.mubr.f32.gmra.mxu0 %v5451
      %v5587 = vpop.f32.mrf.mxu0
      %v5588 = vadd.f32 0.0, %v5587
      %v5589 = vpop.f32.mrf.mxu0
      %5590 = vmatprep.mubr.f32.mxu0 0.0
      %5591 = vmatmul.mubr.f32.gmra.mxu0 %v5454
      %v5592 = vpop.f32.mrf.mxu0
      %v5593 = vadd.f32 0.0, %v5592
      %v5594 = vpop.f32.mrf.mxu0
      %5595 = vmatprep.mubr.f32.mxu0 0.0
      %5596 = vmatmul.mubr.f32.gmra.mxu0 %v5457
      %v5597 = vpop.f32.mrf.mxu0
      %v5598 = vadd.f32 0.0, %v5597
      %v5599 = vpop.f32.mrf.mxu0
      %5600 = vmatprep.mubr.f32.mxu0 0.0
      %5601 = vmatmul.mubr.f32.gmra.mxu0 %v5460
      %v5602 = vpop.f32.mrf.mxu0
      %v5603 = vadd.f32 0.0, %v5602
      %v5604 = vpop.f32.mrf.mxu0
      %5605 = vmatprep.mubr.f32.mxu0 0.0
      %5606 = vmatmul.mubr.f32.gmra.mxu0 %v5463
      %v5607 = vpop.f32.mrf.mxu0
      %v5608 = vadd.f32 0.0, %v5607
      %v5609 = vpop.f32.mrf.mxu0
      %5610 = vmatprep.mubr.f32.mxu0 0.0
      %5611 = vmatmul.mubr.f32.gmra.mxu0 %v5466
      %v5612 = vpop.f32.mrf.mxu0
      %v5613 = vadd.f32 0.0, %v5612
      %v5614 = vpop.f32.mrf.mxu0
      %5615 = vdwg.mxu0
      %v5616 = vadd.f32 %v5385, %v5538
      %v5617 = vadd.f32 %v5386, %v5543
      %v5618 = vadd.f32 %v5387, %v5548
      %v5619 = vadd.f32 %v5388, %v5553
      %v5620 = vadd.f32 %v5389, %v5558
      %v5621 = vadd.f32 %v5390, %v5563
      %v5622 = vadd.f32 %v5391, %v5568
      %v5623 = vadd.f32 %v5392, %v5573
      %v5624 = vadd.f32 %v5393, %v5578
      %v5625 = vadd.f32 %v5394, %v5583
      %v5626 = vadd.f32 %v5395, %v5588
      %v5627 = vadd.f32 %v5396, %v5593
      %v5628 = vadd.f32 %v5397, %v5598
      %v5629 = vadd.f32 %v5398, %v5603
      %v5630 = vadd.f32 %v5399, %v5608
      %v5631 = vadd.f32 %v5400, %v5613
      %v5632 = vld [vmem:[%s5401 + $0x1] sm:$0xff]
      %v5633 = vld [vmem:[%s5401 + $0x9] sm:$0xff]
      %v5634 = vld [vmem:[%s5401 + $0x19] sm:$0xff]
      %v5635 = vld [vmem:[%s5401 + $0x21] sm:$0xff]
      %v5636 = vld [vmem:[%s5401 + $0x31] sm:$0xff]
      %v5637 = vld [vmem:[%s5401 + $0x39] sm:$0xff]
      %v5638 = vld [vmem:[%s5401 + $0x49] sm:$0xff]
      %v5639 = vld [vmem:[%s5401 + $0x51] sm:$0xff]
      %v5640 = vld [vmem:[%s5401 + $0x61] sm:$0xff]
      %v5641 = vld [vmem:[%s5401 + $0x69] sm:$0xff]
      %v5642 = vld [vmem:[%s5401 + $0x79] sm:$0xff]
      %v5643 = vld [vmem:[%s5401 + $0x81] sm:$0xff]
      %v5644 = vld [vmem:[%s5401 + $0x91] sm:$0xff]
      %v5645 = vld [vmem:[%s5401 + $0x99] sm:$0xff]
      %v5646 = vld [vmem:[%s5401 + $0xa9] sm:$0xff]
      %v5647 = vld [vmem:[%s5401 + $0xb1] sm:$0xff]
      %s5648 = scalar_lea.vmem %s4, 28
      %v5649 = vld [vmem:[%s5648] sm:$0xf]
      %v5651 = vsel %vm406, %v5632, 0
      %v5654 = vsel %vm406, %v5633, 0
      %v5657 = vsel %vm406, %v5634, 0
      %v5660 = vsel %vm406, %v5635, 0
      %v5663 = vsel %vm406, %v5636, 0
      %v5666 = vsel %vm406, %v5637, 0
      %v5669 = vsel %vm406, %v5638, 0
      %v5672 = vsel %vm406, %v5639, 0
      %v5675 = vsel %vm406, %v5640, 0
      %v5678 = vsel %vm406, %v5641, 0
      %v5681 = vsel %vm406, %v5642, 0
      %v5684 = vsel %vm406, %v5643, 0
      %v5687 = vsel %vm406, %v5644, 0
      %v5690 = vsel %vm406, %v5645, 0
      %v5693 = vsel %vm406, %v5646, 0
      %v5696 = vsel %vm406, %v5647, 0
      %v5699 = vsel %vm601, %v5649, 0
      %5701 = vmatprep.subr.mxu0 0.0
      %5702 = vmatpush1.msra.mxu0 0.0
      %5703 = vmatprep.subr.mxu0 0.0
      %5704 = vmatpush1.msra.mxu0 0.0
      %5705 = vmatprep.subr.mxu0 0.0
      %5706 = vmatpush1.msra.mxu0 0.0
      %5707 = vmatprep.subr.mxu0 0.0
      %5708 = vmatpush1.msra.mxu0 0.0
      %5709 = vmatprep.subr.mxu0 0.0
      %5710 = vmatpush1.msra.mxu0 0.0
      %5711 = vmatprep.subr.mxu0 0.0
      %5712 = vmatpush1.msra.mxu0 0.0
      %5713 = vmatprep.subr.mxu0 0.0
      %5714 = vmatpush1.msra.mxu0 0.0
      %5715 = vmatprep.subr.mxu0 0.0
      %5716 = vmatpush1.msra.mxu0 0.0
      %5717 = vmatprep.subr.mxu0 0.0
      %5718 = vmatpush1.msra.mxu0 0.0
      %5719 = vmatprep.subr.mxu0 0.0
      %5720 = vmatpush1.msra.mxu0 0.0
      %5721 = vmatprep.subr.mxu0 0.0
      %5722 = vmatpush1.msra.mxu0 0.0
      %5723 = vmatprep.subr.mxu0 0.0
      %5724 = vmatpush1.msra.mxu0 0.0
      %5725 = vmatprep.subr.mxu0 0.0
      %5726 = vmatpush1.msra.mxu0 0.0
      %5727 = vmatprep.subr.mxu0 0.0
      %5728 = vmatpush1.msra.mxu0 0.0
      %5729 = vmatprep.subr.mxu0 0.0
      %5730 = vmatpush1.msra.mxu0 0.0
      %5731 = vmatprep.subr.mxu0 0.0
      %5732 = vmatpush1.msra.mxu0 %v5699
      %5733 = vmatprep.subr.mxu0 0.0
      %5734 = vmatpush2.msra.mxu0 0.0
      %5735 = vmatprep.subr.mxu0 0.0
      %5736 = vmatpush2.msra.mxu0 0.0
      %5737 = vmatprep.subr.mxu0 0.0
      %5738 = vmatpush2.msra.mxu0 0.0
      %5739 = vmatprep.subr.mxu0 0.0
      %5740 = vmatpush2.msra.mxu0 0.0
      %5741 = vmatprep.subr.mxu0 0.0
      %5742 = vmatpush2.msra.mxu0 0.0
      %5743 = vmatprep.subr.mxu0 0.0
      %5744 = vmatpush2.msra.mxu0 0.0
      %5745 = vmatprep.subr.mxu0 0.0
      %5746 = vmatpush2.msra.mxu0 0.0
      %5747 = vmatprep.subr.mxu0 0.0
      %5748 = vmatpush2.msra.mxu0 0.0
      %5749 = vmatprep.subr.mxu0 0.0
      %5750 = vmatpush2.msra.mxu0 0.0
      %5751 = vmatprep.subr.mxu0 0.0
      %5752 = vmatpush2.msra.mxu0 0.0
      %5753 = vmatprep.subr.mxu0 0.0
      %5754 = vmatpush2.msra.mxu0 0.0
      %5755 = vmatprep.subr.mxu0 0.0
      %5756 = vmatpush2.msra.mxu0 0.0
      %5757 = vmatprep.subr.mxu0 0.0
      %5758 = vmatpush2.msra.mxu0 0.0
      %5759 = vmatprep.subr.mxu0 0.0
      %5760 = vmatpush2.msra.mxu0 0.0
      %5761 = vmatprep.subr.mxu0 0.0
      %5762 = vmatpush2.msra.mxu0 0.0
      %5763 = vmatprep.subr.mxu0 0.0
      %5764 = vmatpush2.msra.mxu0 0.0
      %5765 = vmatprep.mubr.f32.mxu0 0.0
      %5766 = vmatmul.mubr.f32.gmra.mxu0 %v5651
      %v5767 = vpop.f32.mrf.mxu0
      %v5768 = vadd.f32 0.0, %v5767
      %v5769 = vpop.f32.mrf.mxu0
      %5770 = vmatprep.mubr.f32.mxu0 0.0
      %5771 = vmatmul.mubr.f32.gmra.mxu0 %v5654
      %v5772 = vpop.f32.mrf.mxu0
      %v5773 = vadd.f32 0.0, %v5772
      %v5774 = vpop.f32.mrf.mxu0
      %5775 = vmatprep.mubr.f32.mxu0 0.0
      %5776 = vmatmul.mubr.f32.gmra.mxu0 %v5657
      %v5777 = vpop.f32.mrf.mxu0
      %v5778 = vadd.f32 0.0, %v5777
      %v5779 = vpop.f32.mrf.mxu0
      %5780 = vmatprep.mubr.f32.mxu0 0.0
      %5781 = vmatmul.mubr.f32.gmra.mxu0 %v5660
      %v5782 = vpop.f32.mrf.mxu0
      %v5783 = vadd.f32 0.0, %v5782
      %v5784 = vpop.f32.mrf.mxu0
      %5785 = vmatprep.mubr.f32.mxu0 0.0
      %5786 = vmatmul.mubr.f32.gmra.mxu0 %v5663
      %v5787 = vpop.f32.mrf.mxu0
      %v5788 = vadd.f32 0.0, %v5787
      %v5789 = vpop.f32.mrf.mxu0
      %5790 = vmatprep.mubr.f32.mxu0 0.0
      %5791 = vmatmul.mubr.f32.gmra.mxu0 %v5666
      %v5792 = vpop.f32.mrf.mxu0
      %v5793 = vadd.f32 0.0, %v5792
      %v5794 = vpop.f32.mrf.mxu0
      %5795 = vmatprep.mubr.f32.mxu0 0.0
      %5796 = vmatmul.mubr.f32.gmra.mxu0 %v5669
      %v5797 = vpop.f32.mrf.mxu0
      %v5798 = vadd.f32 0.0, %v5797
      %v5799 = vpop.f32.mrf.mxu0
      %5800 = vmatprep.mubr.f32.mxu0 0.0
      %5801 = vmatmul.mubr.f32.gmra.mxu0 %v5672
      %v5802 = vpop.f32.mrf.mxu0
      %v5803 = vadd.f32 0.0, %v5802
      %v5804 = vpop.f32.mrf.mxu0
      %5805 = vmatprep.mubr.f32.mxu0 0.0
      %5806 = vmatmul.mubr.f32.gmra.mxu0 %v5675
      %v5807 = vpop.f32.mrf.mxu0
      %v5808 = vadd.f32 0.0, %v5807
      %v5809 = vpop.f32.mrf.mxu0
      %5810 = vmatprep.mubr.f32.mxu0 0.0
      %5811 = vmatmul.mubr.f32.gmra.mxu0 %v5678
      %v5812 = vpop.f32.mrf.mxu0
      %v5813 = vadd.f32 0.0, %v5812
      %v5814 = vpop.f32.mrf.mxu0
      %5815 = vmatprep.mubr.f32.mxu0 0.0
      %5816 = vmatmul.mubr.f32.gmra.mxu0 %v5681
      %v5817 = vpop.f32.mrf.mxu0
      %v5818 = vadd.f32 0.0, %v5817
      %v5819 = vpop.f32.mrf.mxu0
      %5820 = vmatprep.mubr.f32.mxu0 0.0
      %5821 = vmatmul.mubr.f32.gmra.mxu0 %v5684
      %v5822 = vpop.f32.mrf.mxu0
      %v5823 = vadd.f32 0.0, %v5822
      %v5824 = vpop.f32.mrf.mxu0
      %5825 = vmatprep.mubr.f32.mxu0 0.0
      %5826 = vmatmul.mubr.f32.gmra.mxu0 %v5687
      %v5827 = vpop.f32.mrf.mxu0
      %v5828 = vadd.f32 0.0, %v5827
      %v5829 = vpop.f32.mrf.mxu0
      %5830 = vmatprep.mubr.f32.mxu0 0.0
      %5831 = vmatmul.mubr.f32.gmra.mxu0 %v5690
      %v5832 = vpop.f32.mrf.mxu0
      %v5833 = vadd.f32 0.0, %v5832
      %v5834 = vpop.f32.mrf.mxu0
      %5835 = vmatprep.mubr.f32.mxu0 0.0
      %5836 = vmatmul.mubr.f32.gmra.mxu0 %v5693
      %v5837 = vpop.f32.mrf.mxu0
      %v5838 = vadd.f32 0.0, %v5837
      %v5839 = vpop.f32.mrf.mxu0
      %5840 = vmatprep.mubr.f32.mxu0 0.0
      %5841 = vmatmul.mubr.f32.gmra.mxu0 %v5696
      %v5842 = vpop.f32.mrf.mxu0
      %v5843 = vadd.f32 0.0, %v5842
      %v5844 = vpop.f32.mrf.mxu0
      %5845 = vdwg.mxu0
      %v5846 = vadd.f32 %v5616, %v5768
      %v5847 = vadd.f32 %v5617, %v5773
      %v5848 = vadd.f32 %v5618, %v5778
      %v5849 = vadd.f32 %v5619, %v5783
      %v5850 = vadd.f32 %v5620, %v5788
      %v5851 = vadd.f32 %v5621, %v5793
      %v5852 = vadd.f32 %v5622, %v5798
      %v5853 = vadd.f32 %v5623, %v5803
      %v5854 = vadd.f32 %v5624, %v5808
      %v5855 = vadd.f32 %v5625, %v5813
      %v5856 = vadd.f32 %v5626, %v5818
      %v5857 = vadd.f32 %v5627, %v5823
      %v5858 = vadd.f32 %v5628, %v5828
      %v5859 = vadd.f32 %v5629, %v5833
      %v5860 = vadd.f32 %v5630, %v5838
      %v5861 = vadd.f32 %v5631, %v5843
      %v5862 = vld [vmem:[%s5401 + $0x2] sm:$0xff]
      %v5863 = vld [vmem:[%s5401 + $0xa] sm:$0xff]
      %v5864 = vld [vmem:[%s5401 + $0x1a] sm:$0xff]
      %v5865 = vld [vmem:[%s5401 + $0x22] sm:$0xff]
      %v5866 = vld [vmem:[%s5401 + $0x32] sm:$0xff]
      %v5867 = vld [vmem:[%s5401 + $0x3a] sm:$0xff]
      %v5868 = vld [vmem:[%s5401 + $0x4a] sm:$0xff]
      %v5869 = vld [vmem:[%s5401 + $0x52] sm:$0xff]
      %v5870 = vld [vmem:[%s5401 + $0x62] sm:$0xff]
      %v5871 = vld [vmem:[%s5401 + $0x6a] sm:$0xff]
      %v5872 = vld [vmem:[%s5401 + $0x7a] sm:$0xff]
      %v5873 = vld [vmem:[%s5401 + $0x82] sm:$0xff]
      %v5874 = vld [vmem:[%s5401 + $0x92] sm:$0xff]
      %v5875 = vld [vmem:[%s5401 + $0x9a] sm:$0xff]
      %v5876 = vld [vmem:[%s5401 + $0xaa] sm:$0xff]
      %v5877 = vld [vmem:[%s5401 + $0xb2] sm:$0xff]
      %s5878 = scalar_lea.vmem %s4, 32
      %v5879 = vld [vmem:[%s5878] sm:$0xf]
      %v5881 = vsel %vm406, %v5862, 0
      %v5884 = vsel %vm406, %v5863, 0
      %v5887 = vsel %vm406, %v5864, 0
      %v5890 = vsel %vm406, %v5865, 0
      %v5893 = vsel %vm406, %v5866, 0
      %v5896 = vsel %vm406, %v5867, 0
      %v5899 = vsel %vm406, %v5868, 0
      %v5902 = vsel %vm406, %v5869, 0
      %v5905 = vsel %vm406, %v5870, 0
      %v5908 = vsel %vm406, %v5871, 0
      %v5911 = vsel %vm406, %v5872, 0
      %v5914 = vsel %vm406, %v5873, 0
      %v5917 = vsel %vm406, %v5874, 0
      %v5920 = vsel %vm406, %v5875, 0
      %v5923 = vsel %vm406, %v5876, 0
      %v5926 = vsel %vm406, %v5877, 0
      %v5929 = vsel %vm601, %v5879, 0
      %5931 = vmatprep.subr.mxu0 0.0
      %5932 = vmatpush1.msra.mxu0 0.0
      %5933 = vmatprep.subr.mxu0 0.0
      %5934 = vmatpush1.msra.mxu0 0.0
      %5935 = vmatprep.subr.mxu0 0.0
      %5936 = vmatpush1.msra.mxu0 0.0
      %5937 = vmatprep.subr.mxu0 0.0
      %5938 = vmatpush1.msra.mxu0 0.0
      %5939 = vmatprep.subr.mxu0 0.0
      %5940 = vmatpush1.msra.mxu0 0.0
      %5941 = vmatprep.subr.mxu0 0.0
      %5942 = vmatpush1.msra.mxu0 0.0
      %5943 = vmatprep.subr.mxu0 0.0
      %5944 = vmatpush1.msra.mxu0 0.0
      %5945 = vmatprep.subr.mxu0 0.0
      %5946 = vmatpush1.msra.mxu0 0.0
      %5947 = vmatprep.subr.mxu0 0.0
      %5948 = vmatpush1.msra.mxu0 0.0
      %5949 = vmatprep.subr.mxu0 0.0
      %5950 = vmatpush1.msra.mxu0 0.0
      %5951 = vmatprep.subr.mxu0 0.0
      %5952 = vmatpush1.msra.mxu0 0.0
      %5953 = vmatprep.subr.mxu0 0.0
      %5954 = vmatpush1.msra.mxu0 0.0
      %5955 = vmatprep.subr.mxu0 0.0
      %5956 = vmatpush1.msra.mxu0 0.0
      %5957 = vmatprep.subr.mxu0 0.0
      %5958 = vmatpush1.msra.mxu0 0.0
      %5959 = vmatprep.subr.mxu0 0.0
      %5960 = vmatpush1.msra.mxu0 0.0
      %5961 = vmatprep.subr.mxu0 0.0
      %5962 = vmatpush1.msra.mxu0 %v5929
      %5963 = vmatprep.subr.mxu0 0.0
      %5964 = vmatpush2.msra.mxu0 0.0
      %5965 = vmatprep.subr.mxu0 0.0
      %5966 = vmatpush2.msra.mxu0 0.0
      %5967 = vmatprep.subr.mxu0 0.0
      %5968 = vmatpush2.msra.mxu0 0.0
      %5969 = vmatprep.subr.mxu0 0.0
      %5970 = vmatpush2.msra.mxu0 0.0
      %5971 = vmatprep.subr.mxu0 0.0
      %5972 = vmatpush2.msra.mxu0 0.0
      %5973 = vmatprep.subr.mxu0 0.0
      %5974 = vmatpush2.msra.mxu0 0.0
      %5975 = vmatprep.subr.mxu0 0.0
      %5976 = vmatpush2.msra.mxu0 0.0
      %5977 = vmatprep.subr.mxu0 0.0
      %5978 = vmatpush2.msra.mxu0 0.0
      %5979 = vmatprep.subr.mxu0 0.0
      %5980 = vmatpush2.msra.mxu0 0.0
      %5981 = vmatprep.subr.mxu0 0.0
      %5982 = vmatpush2.msra.mxu0 0.0
      %5983 = vmatprep.subr.mxu0 0.0
      %5984 = vmatpush2.msra.mxu0 0.0
      %5985 = vmatprep.subr.mxu0 0.0
      %5986 = vmatpush2.msra.mxu0 0.0
      %5987 = vmatprep.subr.mxu0 0.0
      %5988 = vmatpush2.msra.mxu0 0.0
      %5989 = vmatprep.subr.mxu0 0.0
      %5990 = vmatpush2.msra.mxu0 0.0
      %5991 = vmatprep.subr.mxu0 0.0
      %5992 = vmatpush2.msra.mxu0 0.0
      %5993 = vmatprep.subr.mxu0 0.0
      %5994 = vmatpush2.msra.mxu0 0.0
      %5995 = vmatprep.mubr.f32.mxu0 0.0
      %5996 = vmatmul.mubr.f32.gmra.mxu0 %v5881
      %v5997 = vpop.f32.mrf.mxu0
      %v5998 = vadd.f32 0.0, %v5997
      %v5999 = vpop.f32.mrf.mxu0
      %6000 = vmatprep.mubr.f32.mxu0 0.0
      %6001 = vmatmul.mubr.f32.gmra.mxu0 %v5884
      %v6002 = vpop.f32.mrf.mxu0
      %v6003 = vadd.f32 0.0, %v6002
      %v6004 = vpop.f32.mrf.mxu0
      %6005 = vmatprep.mubr.f32.mxu0 0.0
      %6006 = vmatmul.mubr.f32.gmra.mxu0 %v5887
      %v6007 = vpop.f32.mrf.mxu0
      %v6008 = vadd.f32 0.0, %v6007
      %v6009 = vpop.f32.mrf.mxu0
      %6010 = vmatprep.mubr.f32.mxu0 0.0
      %6011 = vmatmul.mubr.f32.gmra.mxu0 %v5890
      %v6012 = vpop.f32.mrf.mxu0
      %v6013 = vadd.f32 0.0, %v6012
      %v6014 = vpop.f32.mrf.mxu0
      %6015 = vmatprep.mubr.f32.mxu0 0.0
      %6016 = vmatmul.mubr.f32.gmra.mxu0 %v5893
      %v6017 = vpop.f32.mrf.mxu0
      %v6018 = vadd.f32 0.0, %v6017
      %v6019 = vpop.f32.mrf.mxu0
      %6020 = vmatprep.mubr.f32.mxu0 0.0
      %6021 = vmatmul.mubr.f32.gmra.mxu0 %v5896
      %v6022 = vpop.f32.mrf.mxu0
      %v6023 = vadd.f32 0.0, %v6022
      %v6024 = vpop.f32.mrf.mxu0
      %6025 = vmatprep.mubr.f32.mxu0 0.0
      %6026 = vmatmul.mubr.f32.gmra.mxu0 %v5899
      %v6027 = vpop.f32.mrf.mxu0
      %v6028 = vadd.f32 0.0, %v6027
      %v6029 = vpop.f32.mrf.mxu0
      %6030 = vmatprep.mubr.f32.mxu0 0.0
      %6031 = vmatmul.mubr.f32.gmra.mxu0 %v5902
      %v6032 = vpop.f32.mrf.mxu0
      %v6033 = vadd.f32 0.0, %v6032
      %v6034 = vpop.f32.mrf.mxu0
      %6035 = vmatprep.mubr.f32.mxu0 0.0
      %6036 = vmatmul.mubr.f32.gmra.mxu0 %v5905
      %v6037 = vpop.f32.mrf.mxu0
      %v6038 = vadd.f32 0.0, %v6037
      %v6039 = vpop.f32.mrf.mxu0
      %6040 = vmatprep.mubr.f32.mxu0 0.0
      %6041 = vmatmul.mubr.f32.gmra.mxu0 %v5908
      %v6042 = vpop.f32.mrf.mxu0
      %v6043 = vadd.f32 0.0, %v6042
      %v6044 = vpop.f32.mrf.mxu0
      %6045 = vmatprep.mubr.f32.mxu0 0.0
      %6046 = vmatmul.mubr.f32.gmra.mxu0 %v5911
      %v6047 = vpop.f32.mrf.mxu0
      %v6048 = vadd.f32 0.0, %v6047
      %v6049 = vpop.f32.mrf.mxu0
      %6050 = vmatprep.mubr.f32.mxu0 0.0
      %6051 = vmatmul.mubr.f32.gmra.mxu0 %v5914
      %v6052 = vpop.f32.mrf.mxu0
      %v6053 = vadd.f32 0.0, %v6052
      %v6054 = vpop.f32.mrf.mxu0
      %6055 = vmatprep.mubr.f32.mxu0 0.0
      %6056 = vmatmul.mubr.f32.gmra.mxu0 %v5917
      %v6057 = vpop.f32.mrf.mxu0
      %v6058 = vadd.f32 0.0, %v6057
      %v6059 = vpop.f32.mrf.mxu0
      %6060 = vmatprep.mubr.f32.mxu0 0.0
      %6061 = vmatmul.mubr.f32.gmra.mxu0 %v5920
      %v6062 = vpop.f32.mrf.mxu0
      %v6063 = vadd.f32 0.0, %v6062
      %v6064 = vpop.f32.mrf.mxu0
      %6065 = vmatprep.mubr.f32.mxu0 0.0
      %6066 = vmatmul.mubr.f32.gmra.mxu0 %v5923
      %v6067 = vpop.f32.mrf.mxu0
      %v6068 = vadd.f32 0.0, %v6067
      %v6069 = vpop.f32.mrf.mxu0
      %6070 = vmatprep.mubr.f32.mxu0 0.0
      %6071 = vmatmul.mubr.f32.gmra.mxu0 %v5926
      %v6072 = vpop.f32.mrf.mxu0
      %v6073 = vadd.f32 0.0, %v6072
      %v6074 = vpop.f32.mrf.mxu0
      %6075 = vdwg.mxu0
      %v6076 = vadd.f32 %v5846, %v5998
      %v6077 = vadd.f32 %v5847, %v6003
      %v6078 = vadd.f32 %v5848, %v6008
      %v6079 = vadd.f32 %v5849, %v6013
      %v6080 = vadd.f32 %v5850, %v6018
      %v6081 = vadd.f32 %v5851, %v6023
      %v6082 = vadd.f32 %v5852, %v6028
      %v6083 = vadd.f32 %v5853, %v6033
      %v6084 = vadd.f32 %v5854, %v6038
      %v6085 = vadd.f32 %v5855, %v6043
      %v6086 = vadd.f32 %v5856, %v6048
      %v6087 = vadd.f32 %v5857, %v6053
      %v6088 = vadd.f32 %v5858, %v6058
      %v6089 = vadd.f32 %v5859, %v6063
      %v6090 = vadd.f32 %v5860, %v6068
      %v6091 = vadd.f32 %v5861, %v6073
      %v6092 = vld [vmem:[%s2701 + $0x2] sm:$0xff]
      %v6093 = vld [vmem:[%s2701 + $0xa] sm:$0xff]
      %v6094 = vld [vmem:[%s2701 + $0x22] sm:$0xff]
      %v6095 = vld [vmem:[%s2701 + $0x2a] sm:$0xff]
      %v6096 = vld [vmem:[%s2701 + $0x42] sm:$0xff]
      %v6097 = vld [vmem:[%s2701 + $0x4a] sm:$0xff]
      %v6098 = vld [vmem:[%s2701 + $0x62] sm:$0xff]
      %v6099 = vld [vmem:[%s2701 + $0x6a] sm:$0xff]
      %v6100 = vld [vmem:[%s2701 + $0x82] sm:$0xff]
      %v6101 = vld [vmem:[%s2701 + $0x8a] sm:$0xff]
      %v6102 = vld [vmem:[%s2701 + $0xa2] sm:$0xff]
      %v6103 = vld [vmem:[%s2701 + $0xaa] sm:$0xff]
      %v6104 = vld [vmem:[%s2701 + $0xc2] sm:$0xff]
      %v6105 = vld [vmem:[%s2701 + $0xca] sm:$0xff]
      %v6106 = vld [vmem:[%s2701 + $0xe2] sm:$0xff]
      %v6107 = vld [vmem:[%s2701 + $0xea] sm:$0xff]
      %v6108 = vadd.f32 %v6092, %v6076
      %v6109 = vadd.f32 %v6093, %v6077
      %v6110 = vadd.f32 %v6094, %v6078
      %v6111 = vadd.f32 %v6095, %v6079
      %v6112 = vadd.f32 %v6096, %v6080
      %v6113 = vadd.f32 %v6097, %v6081
      %v6114 = vadd.f32 %v6098, %v6082
      %v6115 = vadd.f32 %v6099, %v6083
      %v6116 = vadd.f32 %v6100, %v6084
      %v6117 = vadd.f32 %v6101, %v6085
      %v6118 = vadd.f32 %v6102, %v6086
      %v6119 = vadd.f32 %v6103, %v6087
      %v6120 = vadd.f32 %v6104, %v6088
      %v6121 = vadd.f32 %v6105, %v6089
      %v6122 = vadd.f32 %v6106, %v6090
      %v6123 = vadd.f32 %v6107, %v6091
      %6124 = vst.msk [vmem:[%s372] sm:$0xff] %vm406, %v6108
      %6125 = vst.msk [vmem:[%s372 + $0x8] sm:$0xff] %vm406, %v6109
      %6126 = vst.msk [vmem:[%s372 + $0x10] sm:$0xff] %vm406, %v6110
      %6127 = vst.msk [vmem:[%s372 + $0x18] sm:$0xff] %vm406, %v6111
      %6128 = vst.msk [vmem:[%s372 + $0x20] sm:$0xff] %vm406, %v6112
      %6129 = vst.msk [vmem:[%s372 + $0x28] sm:$0xff] %vm406, %v6113
      %6130 = vst.msk [vmem:[%s372 + $0x30] sm:$0xff] %vm406, %v6114
      %6131 = vst.msk [vmem:[%s372 + $0x38] sm:$0xff] %vm406, %v6115
      %6132 = vst.msk [vmem:[%s372 + $0x40] sm:$0xff] %vm406, %v6116
      %6133 = vst.msk [vmem:[%s372 + $0x48] sm:$0xff] %vm406, %v6117
      %6134 = vst.msk [vmem:[%s372 + $0x50] sm:$0xff] %vm406, %v6118
      %6135 = vst.msk [vmem:[%s372 + $0x58] sm:$0xff] %vm406, %v6119
      %6136 = vst.msk [vmem:[%s372 + $0x60] sm:$0xff] %vm406, %v6120
      %6137 = vst.msk [vmem:[%s372 + $0x68] sm:$0xff] %vm406, %v6121
      %6138 = vst.msk [vmem:[%s372 + $0x70] sm:$0xff] %vm406, %v6122
      %6139 = vst.msk [vmem:[%s372 + $0x78] sm:$0xff] %vm406, %v6123
      %s6140 = smul.u32 8, %s22
      %p6141 = scmp.lt.s32.totalorder %s21, 1
      %s6142 = scalar_select %p6141, %s21, 1
      %p6143 = scmp.lt.s32.totalorder %s6140, 15
      %s6144 = scalar_select %p6143, %s6140, 15
      %s6145 = smul.addr %s6144, 2
      %s6146 = smul.addr %s6142, 32
      %s6147 = sadd.s32 %s6145, %s6146
      %s6148 = smul.addr %s6147, 8
      %s6149 = scalar_lea.vmem %s6, %s6148
      // Predicated region
      $region45: #{res_block_forward.1} parent=43 // pred_check
        %p6150 = pneg %p193
      $region46: #{res_block_forward.1} parent=43 // pred_check_branch
        %6152 = sbr.rel (%p6150) target = $region48
      $region47: #{res_block_forward.1} parent=43 // pred_region
        %s6153 = smul.u32 8, %s22
      $region48: #{res_block_forward.1} parent=43 // pred_fallthru
        _
    $region44: #{res_block_forward.1} parent=5 // pred_fallthru
      _
    %p6154 = scmp.le.s32.totalorder 2, %s12
    // Predicated region
    $region49: #{res_block_forward.1} parent=5 // pred_check
      %p6155 = pneg %p6154
    $region50: #{res_block_forward.1} parent=5 // pred_check_branch
      %6157 = sbr.rel (%p6155) target = $region52
    $region51: #{res_block_forward.1} parent=5 // pred_region
      %s6158 = ssub.s32 %s12, 2
      // Predicated region
      $region53: #{res_block_forward.1} parent=51 // pred_check
        %p6159 = pneg %p199
      $region54: #{res_block_forward.1} parent=51 // pred_check_branch
        %6161 = sbr.rel (%p6159) target = $region56
      $region55: #{res_block_forward.1} parent=51 // pred_region
        %s6162 = smul.u32 8, %s24
        %p6163 = scmp.lt.s32.totalorder %s23, 1
        %s6164 = scalar_select %p6163, %s23, 1
        %p6165 = scmp.lt.s32.totalorder %s6162, 15
        %s6166 = scalar_select %p6165, %s6162, 15
        %s6167 = smul.addr %s6166, 2
        %s6168 = smul.addr %s6164, 32
        %s6169 = sadd.s32 %s6167, %s6168
        %s6170 = smul.addr %s6169, 8
        %s6171 = scalar_lea.vmem %s6, %s6170
      $region56: #{res_block_forward.1} parent=51 // pred_fallthru
        _
    $region52: #{res_block_forward.1} parent=5 // pred_fallthru
      _
  $region6: #{res_block_forward.1} parent=0 // loop_footer
    %s16 = sadd.s32 1, %s12
  $region7: #{res_block_forward.1} parent=0 // loop_footer_branch
    %11 = sbr.rel target = $region3
  $region8: #{res_block_forward.1} parent=0 // loop_exit
    _

</llo_original>
